<compile_context>
chip_gen: v5e
topology: v5e:2x2
jax: 0.10.0
libtpu: 0.0.40
codegen_flags: <defaults>
</compile_context>

<pallas_src>
import functools

import numpy as np
import jax
import jax.numpy as jnp
from jax import lax
from jax.experimental import pallas as pl
from jax.experimental.pallas import tpu as pltpu

MAX_SEQ_LENGTH = 100
PAD_INDEX = 1
LN_EPS = 1e-5       # torch.nn.LayerNorm default
NEG_INF = -1e30     # large finite negative — avoids NaN for fully-masked rows

# Order in which the per-layer (stacked) weights are passed to the kernel.
_PARAM_ORDER = (
    "s_wq", "s_bq", "s_wk", "s_bk", "s_wv", "s_bv", "s_wo", "s_fcb", "s_lng", "s_lnb",
    "c_wq", "c_bq", "c_wk", "c_bk", "c_wv", "c_bv", "c_wo", "c_fcb", "c_lng", "c_lnb",
    "f_w1", "f_b1", "f_w2", "f_b2", "f_lng", "f_lnb",
)


# --------------------------------------------------------------------------------------
# In-kernel helpers (operate on jnp values inside the Pallas body)
# --------------------------------------------------------------------------------------
def _softmax_rows(s):
    m = jnp.max(s, axis=-1, keepdims=True)
    p = jnp.exp(s - m)
    return p / jnp.sum(p, axis=-1, keepdims=True)        # exact division (parity with torch)


def _add_layernorm(x, residual, gamma, beta, eps):
    y = x + residual
    mu = jnp.mean(y, axis=-1, keepdims=True)
    var = jnp.mean((y - mu) ** 2, axis=-1, keepdims=True)  # biased var, like torch
    return (y - mu) * lax.rsqrt(var + eps) * gamma + beta


def _mha(x_q, x_kv, wq, bq, wk, bk, wv, bv, wo, fcb, bias, n_head):
    """Multi-head attention on flattened (rows, D) activations.

    Heads are indexed on the LEADING axis of the weight refs (sublane-aligned slabs), and the
    output projection is accumulated per head — no lane-offset slicing, no concatenate.
    `bias` is a block-diagonal additive (0 / -1e30) mask over the flattened rows.
    """
    acc = None
    for h in range(n_head):                                           # static unroll
        qh = jnp.dot(x_q, wq[0, h], preferred_element_type=jnp.float32) + bq[0, h]
        kh = jnp.dot(x_kv, wk[0, h], preferred_element_type=jnp.float32) + bk[0, h]
        vh = jnp.dot(x_kv, wv[0, h], preferred_element_type=jnp.float32) + bv[0, h]
        # q @ k^T without an explicit transpose (contract last dims of both operands).
        s = lax.dot_general(qh, kh, (((1,), (1,)), ((), ())),
                            preferred_element_type=jnp.float32) + bias
        ctx = jnp.dot(_softmax_rows(s), vh, preferred_element_type=jnp.float32)
        oh = jnp.dot(ctx, wo[0, h], preferred_element_type=jnp.float32)
        acc = oh if acc is None else acc + oh
    return acc + fcb[0]


# --------------------------------------------------------------------------------------
# Fused decoder-STACK kernel: grid = (batch_blocks, n_layers), activation carried in VMEM
# --------------------------------------------------------------------------------------
def _decoder_stack_kernel(dec_ref, enc_ref, npm_ref, sbias_ref, ebias_ref, *refs,
                          n_head, eps):
    (s_wq, s_bq, s_wk, s_bk, s_wv, s_bv, s_wo, s_fcb, s_lng, s_lnb,
     c_wq, c_bq, c_wk, c_bk, c_wv, c_bv, c_wo, c_fcb, c_lng, c_lnb,
     f_w1, f_b1, f_w2, f_b2, f_lng, f_lnb,
     out_ref, x_scr) = refs

    layer = pl.program_id(1)

    @pl.when(layer == 0)
    def _():                                   # load the embedded decoder input once
        x_scr[...] = dec_ref[...]

    x = x_scr[...]                             # (M, D), M = Bb*Lq, carried across layers
    mem = enc_ref[...]                         # (N, D), N = Bb*Lk
    npm = npm_ref[...]                         # (M, 1) non-pad mask
    sbias = sbias_ref[0]                       # (M, M) block-diagonal additive bias
    ebias = ebias_ref[0]                       # (M, N) block-diagonal additive bias

    # ---- self attention ----
    a = _mha(x, x, s_wq, s_bq, s_wk, s_bk, s_wv, s_bv, s_wo, s_fcb, sbias, n_head)
    x1 = _add_layernorm(a, x, s_lng[0], s_lnb[0], eps) * npm

    # ---- encoder-decoder attention ----
    a = _mha(x1, mem, c_wq, c_bq, c_wk, c_bk, c_wv, c_bv, c_wo, c_fcb, ebias, n_head)
    x2 = _add_layernorm(a, x1, c_lng[0], c_lnb[0], eps) * npm

    # ---- position-wise FFN (Conv1d k=1 == channel-wise linear) ----
    h = jnp.maximum(jnp.dot(x2, f_w1[0], preferred_element_type=jnp.float32) + f_b1[0], 0.0)
    y = jnp.dot(h, f_w2[0], preferred_element_type=jnp.float32) + f_b2[0]
    x3 = _add_layernorm(y, x2, f_lng[0], f_lnb[0], eps) * npm

    x_scr[...] = x3                            # carry to next layer step

    @pl.when(layer == pl.num_programs(1) - 1)
    def _():
        out_ref[...] = x3


def _weight_spec(arr):
    """Block = one layer's slab; index only by the layer grid axis."""
    zeros = (0,) * (arr.ndim - 1)

    def imap(bb, l):
        return (l,) + zeros

    return pl.BlockSpec((1,) + tuple(arr.shape[1:]), imap)


def decoder_stack(stacked, dec_flat, enc_flat, npm_flat, sbias, ebias, *,
                  n_head, batch_block, seq_q, seq_k):
    n_layers = stacked["f_w1"].shape[0]
    d_model = dec_flat.shape[1]
    Mb = batch_block * seq_q
    Nb = batch_block * seq_k
    assert dec_flat.shape[0] % Mb == 0
    G = dec_flat.shape[0] // Mb

    weights = [stacked[k] for k in _PARAM_ORDER]
    kernel = functools.partial(_decoder_stack_kernel, n_head=n_head, eps=LN_EPS)

    act_specs = [
        pl.BlockSpec((Mb, d_model), lambda bb, l: (bb, 0)),     # decoder input (flattened rows)
        pl.BlockSpec((Nb, d_model), lambda bb, l: (bb, 0)),     # encoder memory (flattened rows)
        pl.BlockSpec((Mb, 1), lambda bb, l: (bb, 0)),           # non-pad mask
        pl.BlockSpec((1, Mb, Mb), lambda bb, l: (bb, 0, 0)),    # self-attn additive bias
        pl.BlockSpec((1, Mb, Nb), lambda bb, l: (bb, 0, 0)),    # enc-dec additive bias
    ]
    w_specs = [_weight_spec(w) for w in weights]

    return pl.pallas_call(
        kernel,
        grid=(G, n_layers),
        in_specs=act_specs + w_specs,
        out_specs=pl.BlockSpec((Mb, d_model), lambda bb, l: (bb, 0)),
        out_shape=jax.ShapeDtypeStruct((dec_flat.shape[0], d_model), jnp.float32),
        scratch_shapes=[pltpu.VMEM((Mb, d_model), jnp.float32)],   # activation carry
        compiler_params=pltpu.CompilerParams(
            # batch axis may be split across TCs; layer axis carries state -> arbitrary.
            dimension_semantics=("parallel", "arbitrary"),
        ),
    )(dec_flat, enc_flat, npm_flat, sbias, ebias, *weights)


# --------------------------------------------------------------------------------------
# One-time host-side parameter fusion: per-head split on a leading axis, fold 1/sqrt(d_k)
# into Q, stack everything over the layer axis.
# --------------------------------------------------------------------------------------
def _per_head(w, b, nh, dh):
    d_in = w.shape[0]
    wph = w.reshape(d_in, nh, dh).transpose(1, 0, 2)      # (H, D, dh)
    bph = b.reshape(1, nh, dh).transpose(1, 0, 2)         # (H, 1, dh)
    return wph, bph


def prepare_decoder_params(params, n_head, d_k, d_v):
    temp = float(np.sqrt(d_k))
    per_layer = []
    for lp in params["layers"]:
        d = {}
        for pfx, m in (("s", lp["slf"]), ("c", lp["enc"])):
            wq, bq = _per_head(m["w_qs"], m["b_qs"], n_head, d_k)
            wk, bk = _per_head(m["w_ks"], m["b_ks"], n_head, d_k)
            wv, bv = _per_head(m["w_vs"], m["b_vs"], n_head, d_v)
            d[pfx + "_wq"], d[pfx + "_bq"] = wq / temp, bq / temp
            d[pfx + "_wk"], d[pfx + "_bk"] = wk, bk
            d[pfx + "_wv"], d[pfx + "_bv"] = wv, bv
            d[pfx + "_wo"] = m["fc_w"].reshape(n_head, d_v, m["fc_w"].shape[1])
            d[pfx + "_fcb"] = m["fc_b"]
            d[pfx + "_lng"], d[pfx + "_lnb"] = m["ln_g"], m["ln_b"]
        ffn = lp["ffn"]
        d["f_w1"], d["f_b1"] = ffn["w1"], ffn["b1"]
        d["f_w2"], d["f_b2"] = ffn["w2"], ffn["b2"]
        d["f_lng"], d["f_lnb"] = ffn["ln_g"], ffn["ln_b"]
        per_layer.append(d)
    stacked = {k: jnp.stack([d[k] for d in per_layer], axis=0) for k in _PARAM_ORDER}
    return dict(word_emb=params["word_emb"], pos_enc=params["pos_enc"], stacked=stacked)


# ---- mask helpers (semantics identical to the PyTorch reference) ----
def get_non_pad_mask(seq):
    return (seq != PAD_INDEX).astype(jnp.float32)[:, :, None]


def get_attn_key_pad_mask(seq_k, seq_q):
    len_q = seq_q.shape[1]
    pm = (seq_k == PAD_INDEX)
    return jnp.broadcast_to(pm[:, None, :], (seq_k.shape[0], len_q, seq_k.shape[1]))


def get_subsequent_mask(seq):
    B, L = seq.shape
    sub = jnp.triu(jnp.ones((L, L), dtype=jnp.int32), k=1).astype(bool)
    return jnp.broadcast_to(sub[None], (B, L, L))


def get_sinusoid_encoding_table(n_position, d_hid, padding_idx=None):
    pos = np.arange(n_position, dtype=np.float64)[:, None]
    hid = np.arange(d_hid)[None, :]
    angle = pos / np.power(10000, 2 * (hid // 2) / d_hid)
    table = np.array(angle)
    table[:, 0::2] = np.sin(table[:, 0::2])
    table[:, 1::2] = np.cos(table[:, 1::2])
    if padding_idx is not None:
        table[padding_idx] = 0.0
    return jnp.asarray(table, dtype=jnp.float32)


def _block_diag_bias(mask_bool, bb):
    """(B, Lq, Lk) boolean mask -> (B/bb, bb*Lq, bb*Lk) additive f32 bias.

    Cross-batch blocks are fully masked (NEG_INF) so attention can run on batch-flattened
    rows without a per-element inner loop.
    """
    B, Lq, Lk = mask_bool.shape
    g = B // bb
    bias = jnp.where(mask_bool, jnp.float32(NEG_INF), jnp.float32(0.0))
    bias = bias.reshape(g, bb, Lq, Lk)
    same = jnp.eye(bb, dtype=bool)[None, :, None, :, None]
    full = jnp.where(same, bias[:, :, :, None, :], jnp.float32(NEG_INF))
    return full.reshape(g, bb * Lq, bb * Lk)


def decoder_forward(prepared, tgt_seq, tgt_pos, src_seq, enc_output, n_head,
                    batch_block=None):
    B, Lq = tgt_seq.shape
    Lk = src_seq.shape[1]
    D = enc_output.shape[-1]
    bb = B if batch_block is None else batch_block
    assert B % bb == 0

    non_pad_mask = get_non_pad_mask(tgt_seq)
    slf_attn_mask = get_attn_key_pad_mask(tgt_seq, tgt_seq) | get_subsequent_mask(tgt_seq)
    dec_enc_attn_mask = get_attn_key_pad_mask(src_seq, tgt_seq)

    sbias = _block_diag_bias(slf_attn_mask, bb)          # (B/bb, bb*Lq, bb*Lq)
    ebias = _block_diag_bias(dec_enc_attn_mask, bb)      # (B/bb, bb*Lq, bb*Lk)

    # TODO(synk): embedding gathers stay in plain JAX (data-dependent row gather).
    dec_output = (jnp.take(prepared["word_emb"], tgt_seq, axis=0)
                  + jnp.take(prepared["pos_enc"], tgt_pos, axis=0))

    out_flat = decoder_stack(
        prepared["stacked"],
        dec_output.reshape(B * Lq, D).astype(jnp.float32),
        enc_output.reshape(B * Lk, D).astype(jnp.float32),
        non_pad_mask.reshape(B * Lq, 1),
        sbias, ebias,
        n_head=n_head, batch_block=bb, seq_q=Lq, seq_k=Lk)
    return out_flat.reshape(B, Lq, D)


# --------------------------------------------------------------------------------------
# Deterministic parameter init (stands in for torch's randomly initialized nn.Modules)
# --------------------------------------------------------------------------------------
def _dense(key, din, dout, scale=0.05):
    kw, kb = jax.random.split(key)
    w = scale * jax.random.normal(kw, (din, dout), dtype=jnp.float32)
    b = scale * jax.random.normal(kb, (1, dout), dtype=jnp.float32)
    return w, b


def _mha_params(key, d_model, n_head, d_k, d_v):
    ks = jax.random.split(key, 4)
    w_qs, b_qs = _dense(ks[0], d_model, n_head * d_k)
    w_ks, b_ks = _dense(ks[1], d_model, n_head * d_k)
    w_vs, b_vs = _dense(ks[2], d_model, n_head * d_v)
    fc_w, fc_b = _dense(ks[3], n_head * d_v, d_model)
    return dict(w_qs=w_qs, b_qs=b_qs, w_ks=w_ks, b_ks=b_ks, w_vs=w_vs, b_vs=b_vs,
                fc_w=fc_w, fc_b=fc_b,
                ln_g=jnp.ones((1, d_model), jnp.float32),
                ln_b=jnp.zeros((1, d_model), jnp.float32))


def _ffn_params(key, d_model, d_inner):
    k1, k2 = jax.random.split(key)
    w1, b1 = _dense(k1, d_model, d_inner)
    w2, b2 = _dense(k2, d_inner, d_model)
    return dict(w1=w1, b1=b1, w2=w2, b2=b2,
                ln_g=jnp.ones((1, d_model), jnp.float32),
                ln_b=jnp.zeros((1, d_model), jnp.float32))


def init_params(key, vocab_size, embedding_dim, n_layers, n_head, d_k, d_v, d_model, d_inner):
    keys = jax.random.split(key, n_layers + 1)
    word_emb = 0.05 * jax.random.normal(keys[0], (vocab_size, embedding_dim), dtype=jnp.float32)
    pos_enc = get_sinusoid_encoding_table(MAX_SEQ_LENGTH + 1, embedding_dim, padding_idx=0)
    layers = []
    for i in range(n_layers):
        ka, kb, kc = jax.random.split(keys[i + 1], 3)
        layers.append(dict(slf=_mha_params(ka, d_model, n_head, d_k, d_v),
                           enc=_mha_params(kb, d_model, n_head, d_k, d_v),
                           ffn=_ffn_params(kc, d_model, d_inner)))
    return dict(word_emb=word_emb, pos_enc=pos_enc, layers=layers)


# --------------------------------------------------------------------------------------
# Pure-JAX reference (mirrors the PyTorch module) — used only for a numeric sanity check.
# --------------------------------------------------------------------------------------
def _ln_ref(x, g, b):
    mu = jnp.mean(x, axis=-1, keepdims=True)
    var = jnp.mean((x - mu) ** 2, axis=-1, keepdims=True)
    return (x - mu) / jnp.sqrt(var + LN_EPS) * g + b


def _mha_ref(q_in, kv_in, p, mask, n_head, d_k, d_v):
    b, lq, _ = q_in.shape
    lk = kv_in.shape[1]
    q = (q_in @ p["w_qs"] + p["b_qs"]).reshape(b, lq, n_head, d_k)
    k = (kv_in @ p["w_ks"] + p["b_ks"]).reshape(b, lk, n_head, d_k)
    v = (kv_in @ p["w_vs"] + p["b_vs"]).reshape(b, lk, n_head, d_v)
    s = jnp.einsum("bqhd,bkhd->bhqk", q, k) / np.sqrt(d_k)
    s = s + jnp.where(mask[:, None], NEG_INF, 0.0)
    a = jax.nn.softmax(s, axis=-1)
    ctx = jnp.einsum("bhqk,bkhd->bqhd", a, v).reshape(b, lq, n_head * d_v)
    out = ctx @ p["fc_w"] + p["fc_b"]
    return _ln_ref(out + q_in, p["ln_g"], p["ln_b"])


def _ffn_ref(x, p):
    h = jnp.maximum(x @ p["w1"] + p["b1"], 0.0)
    y = h @ p["w2"] + p["b2"]
    return _ln_ref(y + x, p["ln_g"], p["ln_b"])


def reference_decoder(params, tgt_seq, tgt_pos, src_seq, enc_output, n_head, d_k, d_v):
    non_pad = get_non_pad_mask(tgt_seq)
    slf_mask = get_attn_key_pad_mask(tgt_seq, tgt_seq) | get_subsequent_mask(tgt_seq)
    enc_mask = get_attn_key_pad_mask(src_seq, tgt_seq)
    x = (jnp.take(params["word_emb"], tgt_seq, axis=0)
         + jnp.take(params["pos_enc"], tgt_pos, axis=0))
    for lp in params["layers"]:
        x = _mha_ref(x, x, lp["slf"], slf_mask, n_head, d_k, d_v) * non_pad
        x = _mha_ref(x, enc_output, lp["enc"], enc_mask, n_head, d_k, d_v) * non_pad
        x = _ffn_ref(x, lp["ffn"]) * non_pad
    return x


# --------------------------------------------------------------------------------------
if __name__ == "__main__":
    vocab_size = 50
    d_model = embedding_dim = 32   # residual connection requires embedding_dim == d_model
    n_layers = 2
    n_head = 4
    d_k = d_v = 8
    d_inner = 64
    B, Lt, Ls = 2, 8, 8

    root = jax.random.PRNGKey(0)
    kparam, ktok, ksrc, kenc = jax.random.split(root, 4)

    params = init_params(kparam, vocab_size, embedding_dim, n_layers,
                         n_head, d_k, d_v, d_model, d_inner)
    prepared = prepare_decoder_params(params, n_head, d_k, d_v)   # one-time fusion/stacking

    tgt_seq = jax.random.randint(ktok, (B, Lt), 2, vocab_size, dtype=jnp.int32)
    tgt_seq = tgt_seq.at[1, Lt - 2:].set(PAD_INDEX)               # some padding
    tgt_pos = jnp.where(tgt_seq != PAD_INDEX,
                        jnp.arange(1, Lt + 1, dtype=jnp.int32)[None, :], 0)

    src_seq = jax.random.randint(ksrc, (B, Ls), 2, vocab_size, dtype=jnp.int32)
    src_seq = src_seq.at[0, Ls - 1].set(PAD_INDEX)
    enc_output = jax.random.normal(kenc, (B, Ls, d_model), dtype=jnp.float32)

    out = decoder_forward(prepared, tgt_seq, tgt_pos, src_seq, enc_output, n_head)
    out = jax.block_until_ready(out)

    assert out.shape == (B, Lt, d_model)
    assert bool(jnp.all(jnp.isfinite(out)))

    ref = jax.block_until_ready(
        reference_decoder(params, tgt_seq, tgt_pos, src_seq, enc_output, n_head, d_k, d_v))
    max_err = float(jnp.max(jnp.abs(out - ref)))
    assert max_err < 5e-2, f"mismatch vs pure-JAX reference: {max_err}"

    print("KERNEL_OK")
</pallas_src>

<mosaic_0001>
module attributes {stable_mosaic.version = 11 : i64} {
  func.func @_decoder_stack_kernel(%arg0: i32, %arg1: i32, %arg2: memref<16x32xf32, #tpu.memory_space<vmem>>, %arg3: memref<16x32xf32, #tpu.memory_space<vmem>>, %arg4: memref<16x1xf32, #tpu.memory_space<vmem>>, %arg5: memref<1x16x16xf32, #tpu.memory_space<vmem>>, %arg6: memref<1x16x16xf32, #tpu.memory_space<vmem>>, %arg7: memref<1x4x32x8xf32, #tpu.memory_space<vmem>>, %arg8: memref<1x4x1x8xf32, #tpu.memory_space<vmem>>, %arg9: memref<1x4x32x8xf32, #tpu.memory_space<vmem>>, %arg10: memref<1x4x1x8xf32, #tpu.memory_space<vmem>>, %arg11: memref<1x4x32x8xf32, #tpu.memory_space<vmem>>, %arg12: memref<1x4x1x8xf32, #tpu.memory_space<vmem>>, %arg13: memref<1x4x8x32xf32, #tpu.memory_space<vmem>>, %arg14: memref<1x1x32xf32, #tpu.memory_space<vmem>>, %arg15: memref<1x1x32xf32, #tpu.memory_space<vmem>>, %arg16: memref<1x1x32xf32, #tpu.memory_space<vmem>>, %arg17: memref<1x4x32x8xf32, #tpu.memory_space<vmem>>, %arg18: memref<1x4x1x8xf32, #tpu.memory_space<vmem>>, %arg19: memref<1x4x32x8xf32, #tpu.memory_space<vmem>>, %arg20: memref<1x4x1x8xf32, #tpu.memory_space<vmem>>, %arg21: memref<1x4x32x8xf32, #tpu.memory_space<vmem>>, %arg22: memref<1x4x1x8xf32, #tpu.memory_space<vmem>>, %arg23: memref<1x4x8x32xf32, #tpu.memory_space<vmem>>, %arg24: memref<1x1x32xf32, #tpu.memory_space<vmem>>, %arg25: memref<1x1x32xf32, #tpu.memory_space<vmem>>, %arg26: memref<1x1x32xf32, #tpu.memory_space<vmem>>, %arg27: memref<1x32x64xf32, #tpu.memory_space<vmem>>, %arg28: memref<1x1x64xf32, #tpu.memory_space<vmem>>, %arg29: memref<1x64x32xf32, #tpu.memory_space<vmem>>, %arg30: memref<1x1x32xf32, #tpu.memory_space<vmem>>, %arg31: memref<1x1x32xf32, #tpu.memory_space<vmem>>, %arg32: memref<1x1x32xf32, #tpu.memory_space<vmem>>, %arg33: memref<16x32xf32, #tpu.memory_space<vmem>>, %arg34: memref<16x32xf32, #tpu.memory_space<vmem>>) attributes {dimension_semantics = [#tpu.dimension_semantics<parallel>, #tpu.dimension_semantics<arbitrary>], iteration_bounds = array<i64: 1, 2>, scalar_prefetch = 0 : i64, scratch_operands = 1 : i64, tpu.core_type = #tpu.core_type<tc>, window_params = [{transform_indices = @transform_0, window_bounds = array<i64: 16, 32>}, {transform_indices = @transform_1, window_bounds = array<i64: 16, 32>}, {transform_indices = @transform_2, window_bounds = array<i64: 16, 1>}, {transform_indices = @transform_3, window_bounds = array<i64: 1, 16, 16>}, {transform_indices = @transform_4, window_bounds = array<i64: 1, 16, 16>}, {transform_indices = @transform_5, window_bounds = array<i64: 1, 4, 32, 8>}, {transform_indices = @transform_6, window_bounds = array<i64: 1, 4, 1, 8>}, {transform_indices = @transform_7, window_bounds = array<i64: 1, 4, 32, 8>}, {transform_indices = @transform_8, window_bounds = array<i64: 1, 4, 1, 8>}, {transform_indices = @transform_9, window_bounds = array<i64: 1, 4, 32, 8>}, {transform_indices = @transform_10, window_bounds = array<i64: 1, 4, 1, 8>}, {transform_indices = @transform_11, window_bounds = array<i64: 1, 4, 8, 32>}, {transform_indices = @transform_12, window_bounds = array<i64: 1, 1, 32>}, {transform_indices = @transform_13, window_bounds = array<i64: 1, 1, 32>}, {transform_indices = @transform_14, window_bounds = array<i64: 1, 1, 32>}, {transform_indices = @transform_15, window_bounds = array<i64: 1, 4, 32, 8>}, {transform_indices = @transform_16, window_bounds = array<i64: 1, 4, 1, 8>}, {transform_indices = @transform_17, window_bounds = array<i64: 1, 4, 32, 8>}, {transform_indices = @transform_18, window_bounds = array<i64: 1, 4, 1, 8>}, {transform_indices = @transform_19, window_bounds = array<i64: 1, 4, 32, 8>}, {transform_indices = @transform_20, window_bounds = array<i64: 1, 4, 1, 8>}, {transform_indices = @transform_21, window_bounds = array<i64: 1, 4, 8, 32>}, {transform_indices = @transform_22, window_bounds = array<i64: 1, 1, 32>}, {transform_indices = @transform_23, window_bounds = array<i64: 1, 1, 32>}, {transform_indices = @transform_24, window_bounds = array<i64: 1, 1, 32>}, {transform_indices = @transform_25, window_bounds = array<i64: 1, 32, 64>}, {transform_indices = @transform_26, window_bounds = array<i64: 1, 1, 64>}, {transform_indices = @transform_27, window_bounds = array<i64: 1, 64, 32>}, {transform_indices = @transform_28, window_bounds = array<i64: 1, 1, 32>}, {transform_indices = @transform_29, window_bounds = array<i64: 1, 1, 32>}, {transform_indices = @transform_30, window_bounds = array<i64: 1, 1, 32>}, {transform_indices = @transform_31, window_bounds = array<i64: 16, 32>}]} {
    %c0_i32 = arith.constant 0 : i32
    %0 = arith.cmpi eq, %arg1, %c0_i32 : i32
    %1 = arith.extui %0 : i1 to i32
    %c0_i32_0 = arith.constant 0 : i32
    %2 = arith.cmpi ne, %1, %c0_i32_0 : i32
    scf.if %2 {
      %c0_353 = arith.constant 0 : index
      %c0_354 = arith.constant 0 : index
      %419 = vector.load %arg2[%c0_353, %c0_354] : memref<16x32xf32, #tpu.memory_space<vmem>>, vector<16x32xf32>
      %c0_355 = arith.constant 0 : index
      %c0_356 = arith.constant 0 : index
      %420 = vector.load %arg34[%c0_355, %c0_356] : memref<16x32xf32, #tpu.memory_space<vmem>>, vector<16x32xf32>
      tpu.vector_store %arg34[%c0_355, %c0_356], %419 {strides = array<i32>} : memref<16x32xf32, #tpu.memory_space<vmem>>, vector<16x32xf32>,
    } else {
    }
    %c0 = arith.constant 0 : index
    %c0_1 = arith.constant 0 : index
    %3 = vector.load %arg34[%c0, %c0_1] : memref<16x32xf32, #tpu.memory_space<vmem>>, vector<16x32xf32>
    %c0_2 = arith.constant 0 : index
    %c0_3 = arith.constant 0 : index
    %4 = vector.load %arg3[%c0_2, %c0_3] : memref<16x32xf32, #tpu.memory_space<vmem>>, vector<16x32xf32>
    %c0_4 = arith.constant 0 : index
    %c0_5 = arith.constant 0 : index
    %5 = vector.load %arg4[%c0_4, %c0_5] : memref<16x1xf32, #tpu.memory_space<vmem>>, vector<16x1xf32>
    %c0_6 = arith.constant 0 : index
    %c0_7 = arith.constant 0 : index
    %c0_8 = arith.constant 0 : index
    %6 = vector.load %arg5[%c0_6, %c0_7, %c0_8] : memref<1x16x16xf32, #tpu.memory_space<vmem>>, vector<1x16x16xf32>
    %7 = vector.shape_cast %6 : vector<1x16x16xf32> to vector<16x16xf32>
    %c0_9 = arith.constant 0 : index
    %c0_10 = arith.constant 0 : index
    %c0_11 = arith.constant 0 : index
    %8 = vector.load %arg6[%c0_9, %c0_10, %c0_11] : memref<1x16x16xf32, #tpu.memory_space<vmem>>, vector<1x16x16xf32>
    %9 = vector.shape_cast %8 : vector<1x16x16xf32> to vector<16x16xf32>
    %c0_12 = arith.constant 0 : index
    %c0_13 = arith.constant 0 : index
    %c0_14 = arith.constant 0 : index
    %c0_15 = arith.constant 0 : index
    %10 = vector.load %arg7[%c0_12, %c0_13, %c0_14, %c0_15] : memref<1x4x32x8xf32, #tpu.memory_space<vmem>>, vector<1x1x32x8xf32>
    %11 = vector.shape_cast %10 : vector<1x1x32x8xf32> to vector<32x8xf32>
    %cst = arith.constant dense<0.000000e+00> : vector<16x8xf32>
    %12 = tpu.matmul %3, %11, %cst {dimension_numbers = #tpu.dot_dimension_numbers<[1], [0], [0], [1], [0, 0, 1, 1], [], []>} : vector<16x32xf32>, vector<32x8xf32>, vector<16x8xf32> -> vector<16x8xf32>
    %c0_16 = arith.constant 0 : index
    %c0_17 = arith.constant 0 : index
    %c0_18 = arith.constant 0 : index
    %c0_19 = arith.constant 0 : index
    %13 = vector.load %arg8[%c0_16, %c0_17, %c0_18, %c0_19] : memref<1x4x1x8xf32, #tpu.memory_space<vmem>>, vector<1x1x1x8xf32>
    %14 = vector.shape_cast %13 : vector<1x1x1x8xf32> to vector<1x8xf32>
    %15 = vector.broadcast %14 : vector<1x8xf32> to vector<16x8xf32>
    %16 = arith.addf %12, %15 : vector<16x8xf32>
    %c0_20 = arith.constant 0 : index
    %c0_21 = arith.constant 0 : index
    %c0_22 = arith.constant 0 : index
    %c0_23 = arith.constant 0 : index
    %17 = vector.load %arg9[%c0_20, %c0_21, %c0_22, %c0_23] : memref<1x4x32x8xf32, #tpu.memory_space<vmem>>, vector<1x1x32x8xf32>
    %18 = vector.shape_cast %17 : vector<1x1x32x8xf32> to vector<32x8xf32>
    %cst_24 = arith.constant dense<0.000000e+00> : vector<16x8xf32>
    %19 = tpu.matmul %3, %18, %cst_24 {dimension_numbers = #tpu.dot_dimension_numbers<[1], [0], [0], [1], [0, 0, 1, 1], [], []>} : vector<16x32xf32>, vector<32x8xf32>, vector<16x8xf32> -> vector<16x8xf32>
    %c0_25 = arith.constant 0 : index
    %c0_26 = arith.constant 0 : index
    %c0_27 = arith.constant 0 : index
    %c0_28 = arith.constant 0 : index
    %20 = vector.load %arg10[%c0_25, %c0_26, %c0_27, %c0_28] : memref<1x4x1x8xf32, #tpu.memory_space<vmem>>, vector<1x1x1x8xf32>
    %21 = vector.shape_cast %20 : vector<1x1x1x8xf32> to vector<1x8xf32>
    %22 = vector.broadcast %21 : vector<1x8xf32> to vector<16x8xf32>
    %23 = arith.addf %19, %22 : vector<16x8xf32>
    %c0_29 = arith.constant 0 : index
    %c0_30 = arith.constant 0 : index
    %c0_31 = arith.constant 0 : index
    %c0_32 = arith.constant 0 : index
    %24 = vector.load %arg11[%c0_29, %c0_30, %c0_31, %c0_32] : memref<1x4x32x8xf32, #tpu.memory_space<vmem>>, vector<1x1x32x8xf32>
    %25 = vector.shape_cast %24 : vector<1x1x32x8xf32> to vector<32x8xf32>
    %cst_33 = arith.constant dense<0.000000e+00> : vector<16x8xf32>
    %26 = tpu.matmul %3, %25, %cst_33 {dimension_numbers = #tpu.dot_dimension_numbers<[1], [0], [0], [1], [0, 0, 1, 1], [], []>} : vector<16x32xf32>, vector<32x8xf32>, vector<16x8xf32> -> vector<16x8xf32>
    %c0_34 = arith.constant 0 : index
    %c0_35 = arith.constant 0 : index
    %c0_36 = arith.constant 0 : index
    %c0_37 = arith.constant 0 : index
    %27 = vector.load %arg12[%c0_34, %c0_35, %c0_36, %c0_37] : memref<1x4x1x8xf32, #tpu.memory_space<vmem>>, vector<1x1x1x8xf32>
    %28 = vector.shape_cast %27 : vector<1x1x1x8xf32> to vector<1x8xf32>
    %29 = vector.broadcast %28 : vector<1x8xf32> to vector<16x8xf32>
    %30 = arith.addf %26, %29 : vector<16x8xf32>
    %cst_38 = arith.constant dense<0.000000e+00> : vector<16x16xf32>
    %31 = tpu.matmul %16, %23, %cst_38 {dimension_numbers = #tpu.dot_dimension_numbers<[1], [1], [0], [0], [0, 0, 1, 0], [], []>} : vector<16x8xf32>, vector<16x8xf32>, vector<16x16xf32> -> vector<16x16xf32>
    %32 = arith.addf %31, %7 : vector<16x16xf32>
    %cst_39 = arith.constant dense<0xFF800000> : vector<16xf32>
    %33 = vector.multi_reduction <maximumf>, %32, %cst_39 [1] : vector<16x16xf32> to vector<16xf32>
    %34 = vector.shape_cast %33 : vector<16xf32> to vector<16x1xf32>
    %35 = vector.broadcast %34 : vector<16x1xf32> to vector<16x16xf32>
    %36 = arith.subf %32, %35 : vector<16x16xf32>
    %37 = math.exp %36 : vector<16x16xf32>
    %cst_40 = arith.constant dense<0.000000e+00> : vector<16xf32>
    %38 = vector.multi_reduction <add>, %37, %cst_40 [1] : vector<16x16xf32> to vector<16xf32>
    %39 = vector.shape_cast %38 : vector<16xf32> to vector<16x1xf32>
    %40 = vector.broadcast %39 : vector<16x1xf32> to vector<16x16xf32>
    %41 = arith.divf %37, %40 : vector<16x16xf32>
    %cst_41 = arith.constant dense<0.000000e+00> : vector<16x8xf32>
    %42 = tpu.matmul %41, %30, %cst_41 {dimension_numbers = #tpu.dot_dimension_numbers<[1], [0], [0], [1], [0, 0, 1, 1], [], []>} : vector<16x16xf32>, vector<16x8xf32>, vector<16x8xf32> -> vector<16x8xf32>
    %c0_42 = arith.constant 0 : index
    %c0_43 = arith.constant 0 : index
    %c0_44 = arith.constant 0 : index
    %c0_45 = arith.constant 0 : index
    %43 = vector.load %arg13[%c0_42, %c0_43, %c0_44, %c0_45] : memref<1x4x8x32xf32, #tpu.memory_space<vmem>>, vector<1x1x8x32xf32>
    %44 = vector.shape_cast %43 : vector<1x1x8x32xf32> to vector<8x32xf32>
    %cst_46 = arith.constant dense<0.000000e+00> : vector<16x32xf32>
    %45 = tpu.matmul %42, %44, %cst_46 {dimension_numbers = #tpu.dot_dimension_numbers<[1], [0], [0], [1], [0, 0, 1, 1], [], []>} : vector<16x8xf32>, vector<8x32xf32>, vector<16x32xf32> -> vector<16x32xf32>
    %c0_47 = arith.constant 0 : index
    %c1 = arith.constant 1 : index
    %c0_48 = arith.constant 0 : index
    %c0_49 = arith.constant 0 : index
    %46 = vector.load %arg7[%c0_47, %c1, %c0_48, %c0_49] : memref<1x4x32x8xf32, #tpu.memory_space<vmem>>, vector<1x1x32x8xf32>
    %47 = vector.shape_cast %46 : vector<1x1x32x8xf32> to vector<32x8xf32>
    %cst_50 = arith.constant dense<0.000000e+00> : vector<16x8xf32>
    %48 = tpu.matmul %3, %47, %cst_50 {dimension_numbers = #tpu.dot_dimension_numbers<[1], [0], [0], [1], [0, 0, 1, 1], [], []>} : vector<16x32xf32>, vector<32x8xf32>, vector<16x8xf32> -> vector<16x8xf32>
    %c0_51 = arith.constant 0 : index
    %c1_52 = arith.constant 1 : index
    %c0_53 = arith.constant 0 : index
    %c0_54 = arith.constant 0 : index
    %49 = vector.load %arg8[%c0_51, %c1_52, %c0_53, %c0_54] : memref<1x4x1x8xf32, #tpu.memory_space<vmem>>, vector<1x1x1x8xf32>
    %50 = vector.shape_cast %49 : vector<1x1x1x8xf32> to vector<1x8xf32>
    %51 = vector.broadcast %50 : vector<1x8xf32> to vector<16x8xf32>
    %52 = arith.addf %48, %51 : vector<16x8xf32>
    %c0_55 = arith.constant 0 : index
    %c1_56 = arith.constant 1 : index
    %c0_57 = arith.constant 0 : index
    %c0_58 = arith.constant 0 : index
    %53 = vector.load %arg9[%c0_55, %c1_56, %c0_57, %c0_58] : memref<1x4x32x8xf32, #tpu.memory_space<vmem>>, vector<1x1x32x8xf32>
    %54 = vector.shape_cast %53 : vector<1x1x32x8xf32> to vector<32x8xf32>
    %cst_59 = arith.constant dense<0.000000e+00> : vector<16x8xf32>
    %55 = tpu.matmul %3, %54, %cst_59 {dimension_numbers = #tpu.dot_dimension_numbers<[1], [0], [0], [1], [0, 0, 1, 1], [], []>} : vector<16x32xf32>, vector<32x8xf32>, vector<16x8xf32> -> vector<16x8xf32>
    %c0_60 = arith.constant 0 : index
    %c1_61 = arith.constant 1 : index
    %c0_62 = arith.constant 0 : index
    %c0_63 = arith.constant 0 : index
    %56 = vector.load %arg10[%c0_60, %c1_61, %c0_62, %c0_63] : memref<1x4x1x8xf32, #tpu.memory_space<vmem>>, vector<1x1x1x8xf32>
    %57 = vector.shape_cast %56 : vector<1x1x1x8xf32> to vector<1x8xf32>
    %58 = vector.broadcast %57 : vector<1x8xf32> to vector<16x8xf32>
    %59 = arith.addf %55, %58 : vector<16x8xf32>
    %c0_64 = arith.constant 0 : index
    %c1_65 = arith.constant 1 : index
    %c0_66 = arith.constant 0 : index
    %c0_67 = arith.constant 0 : index
    %60 = vector.load %arg11[%c0_64, %c1_65, %c0_66, %c0_67] : memref<1x4x32x8xf32, #tpu.memory_space<vmem>>, vector<1x1x32x8xf32>
    %61 = vector.shape_cast %60 : vector<1x1x32x8xf32> to vector<32x8xf32>
    %cst_68 = arith.constant dense<0.000000e+00> : vector<16x8xf32>
    %62 = tpu.matmul %3, %61, %cst_68 {dimension_numbers = #tpu.dot_dimension_numbers<[1], [0], [0], [1], [0, 0, 1, 1], [], []>} : vector<16x32xf32>, vector<32x8xf32>, vector<16x8xf32> -> vector<16x8xf32>
    %c0_69 = arith.constant 0 : index
    %c1_70 = arith.constant 1 : index
    %c0_71 = arith.constant 0 : index
    %c0_72 = arith.constant 0 : index
    %63 = vector.load %arg12[%c0_69, %c1_70, %c0_71, %c0_72] : memref<1x4x1x8xf32, #tpu.memory_space<vmem>>, vector<1x1x1x8xf32>
    %64 = vector.shape_cast %63 : vector<1x1x1x8xf32> to vector<1x8xf32>
    %65 = vector.broadcast %64 : vector<1x8xf32> to vector<16x8xf32>
    %66 = arith.addf %62, %65 : vector<16x8xf32>
    %cst_73 = arith.constant dense<0.000000e+00> : vector<16x16xf32>
    %67 = tpu.matmul %52, %59, %cst_73 {dimension_numbers = #tpu.dot_dimension_numbers<[1], [1], [0], [0], [0, 0, 1, 0], [], []>} : vector<16x8xf32>, vector<16x8xf32>, vector<16x16xf32> -> vector<16x16xf32>
    %68 = arith.addf %67, %7 : vector<16x16xf32>
    %cst_74 = arith.constant dense<0xFF800000> : vector<16xf32>
    %69 = vector.multi_reduction <maximumf>, %68, %cst_74 [1] : vector<16x16xf32> to vector<16xf32>
    %70 = vector.shape_cast %69 : vector<16xf32> to vector<16x1xf32>
    %71 = vector.broadcast %70 : vector<16x1xf32> to vector<16x16xf32>
    %72 = arith.subf %68, %71 : vector<16x16xf32>
    %73 = math.exp %72 : vector<16x16xf32>
    %cst_75 = arith.constant dense<0.000000e+00> : vector<16xf32>
    %74 = vector.multi_reduction <add>, %73, %cst_75 [1] : vector<16x16xf32> to vector<16xf32>
    %75 = vector.shape_cast %74 : vector<16xf32> to vector<16x1xf32>
    %76 = vector.broadcast %75 : vector<16x1xf32> to vector<16x16xf32>
    %77 = arith.divf %73, %76 : vector<16x16xf32>
    %cst_76 = arith.constant dense<0.000000e+00> : vector<16x8xf32>
    %78 = tpu.matmul %77, %66, %cst_76 {dimension_numbers = #tpu.dot_dimension_numbers<[1], [0], [0], [1], [0, 0, 1, 1], [], []>} : vector<16x16xf32>, vector<16x8xf32>, vector<16x8xf32> -> vector<16x8xf32>
    %c0_77 = arith.constant 0 : index
    %c1_78 = arith.constant 1 : index
    %c0_79 = arith.constant 0 : index
    %c0_80 = arith.constant 0 : index
    %79 = vector.load %arg13[%c0_77, %c1_78, %c0_79, %c0_80] : memref<1x4x8x32xf32, #tpu.memory_space<vmem>>, vector<1x1x8x32xf32>
    %80 = vector.shape_cast %79 : vector<1x1x8x32xf32> to vector<8x32xf32>
    %cst_81 = arith.constant dense<0.000000e+00> : vector<16x32xf32>
    %81 = tpu.matmul %78, %80, %cst_81 {dimension_numbers = #tpu.dot_dimension_numbers<[1], [0], [0], [1], [0, 0, 1, 1], [], []>} : vector<16x8xf32>, vector<8x32xf32>, vector<16x32xf32> -> vector<16x32xf32>
    %82 = arith.addf %45, %81 : vector<16x32xf32>
    %c0_82 = arith.constant 0 : index
    %c2 = arith.constant 2 : index
    %c0_83 = arith.constant 0 : index
    %c0_84 = arith.constant 0 : index
    %83 = vector.load %arg7[%c0_82, %c2, %c0_83, %c0_84] : memref<1x4x32x8xf32, #tpu.memory_space<vmem>>, vector<1x1x32x8xf32>
    %84 = vector.shape_cast %83 : vector<1x1x32x8xf32> to vector<32x8xf32>
    %cst_85 = arith.constant dense<0.000000e+00> : vector<16x8xf32>
    %85 = tpu.matmul %3, %84, %cst_85 {dimension_numbers = #tpu.dot_dimension_numbers<[1], [0], [0], [1], [0, 0, 1, 1], [], []>} : vector<16x32xf32>, vector<32x8xf32>, vector<16x8xf32> -> vector<16x8xf32>
    %c0_86 = arith.constant 0 : index
    %c2_87 = arith.constant 2 : index
    %c0_88 = arith.constant 0 : index
    %c0_89 = arith.constant 0 : index
    %86 = vector.load %arg8[%c0_86, %c2_87, %c0_88, %c0_89] : memref<1x4x1x8xf32, #tpu.memory_space<vmem>>, vector<1x1x1x8xf32>
    %87 = vector.shape_cast %86 : vector<1x1x1x8xf32> to vector<1x8xf32>
    %88 = vector.broadcast %87 : vector<1x8xf32> to vector<16x8xf32>
    %89 = arith.addf %85, %88 : vector<16x8xf32>
    %c0_90 = arith.constant 0 : index
    %c2_91 = arith.constant 2 : index
    %c0_92 = arith.constant 0 : index
    %c0_93 = arith.constant 0 : index
    %90 = vector.load %arg9[%c0_90, %c2_91, %c0_92, %c0_93] : memref<1x4x32x8xf32, #tpu.memory_space<vmem>>, vector<1x1x32x8xf32>
    %91 = vector.shape_cast %90 : vector<1x1x32x8xf32> to vector<32x8xf32>
    %cst_94 = arith.constant dense<0.000000e+00> : vector<16x8xf32>
    %92 = tpu.matmul %3, %91, %cst_94 {dimension_numbers = #tpu.dot_dimension_numbers<[1], [0], [0], [1], [0, 0, 1, 1], [], []>} : vector<16x32xf32>, vector<32x8xf32>, vector<16x8xf32> -> vector<16x8xf32>
    %c0_95 = arith.constant 0 : index
    %c2_96 = arith.constant 2 : index
    %c0_97 = arith.constant 0 : index
    %c0_98 = arith.constant 0 : index
    %93 = vector.load %arg10[%c0_95, %c2_96, %c0_97, %c0_98] : memref<1x4x1x8xf32, #tpu.memory_space<vmem>>, vector<1x1x1x8xf32>
    %94 = vector.shape_cast %93 : vector<1x1x1x8xf32> to vector<1x8xf32>
    %95 = vector.broadcast %94 : vector<1x8xf32> to vector<16x8xf32>
    %96 = arith.addf %92, %95 : vector<16x8xf32>
    %c0_99 = arith.constant 0 : index
    %c2_100 = arith.constant 2 : index
    %c0_101 = arith.constant 0 : index
    %c0_102 = arith.constant 0 : index
    %97 = vector.load %arg11[%c0_99, %c2_100, %c0_101, %c0_102] : memref<1x4x32x8xf32, #tpu.memory_space<vmem>>, vector<1x1x32x8xf32>
    %98 = vector.shape_cast %97 : vector<1x1x32x8xf32> to vector<32x8xf32>
    %cst_103 = arith.constant dense<0.000000e+00> : vector<16x8xf32>
    %99 = tpu.matmul %3, %98, %cst_103 {dimension_numbers = #tpu.dot_dimension_numbers<[1], [0], [0], [1], [0, 0, 1, 1], [], []>} : vector<16x32xf32>, vector<32x8xf32>, vector<16x8xf32> -> vector<16x8xf32>
    %c0_104 = arith.constant 0 : index
    %c2_105 = arith.constant 2 : index
    %c0_106 = arith.constant 0 : index
    %c0_107 = arith.constant 0 : index
    %100 = vector.load %arg12[%c0_104, %c2_105, %c0_106, %c0_107] : memref<1x4x1x8xf32, #tpu.memory_space<vmem>>, vector<1x1x1x8xf32>
    %101 = vector.shape_cast %100 : vector<1x1x1x8xf32> to vector<1x8xf32>
    %102 = vector.broadcast %101 : vector<1x8xf32> to vector<16x8xf32>
    %103 = arith.addf %99, %102 : vector<16x8xf32>
    %cst_108 = arith.constant dense<0.000000e+00> : vector<16x16xf32>
    %104 = tpu.matmul %89, %96, %cst_108 {dimension_numbers = #tpu.dot_dimension_numbers<[1], [1], [0], [0], [0, 0, 1, 0], [], []>} : vector<16x8xf32>, vector<16x8xf32>, vector<16x16xf32> -> vector<16x16xf32>
    %105 = arith.addf %104, %7 : vector<16x16xf32>
    %cst_109 = arith.constant dense<0xFF800000> : vector<16xf32>
    %106 = vector.multi_reduction <maximumf>, %105, %cst_109 [1] : vector<16x16xf32> to vector<16xf32>
    %107 = vector.shape_cast %106 : vector<16xf32> to vector<16x1xf32>
    %108 = vector.broadcast %107 : vector<16x1xf32> to vector<16x16xf32>
    %109 = arith.subf %105, %108 : vector<16x16xf32>
    %110 = math.exp %109 : vector<16x16xf32>
    %cst_110 = arith.constant dense<0.000000e+00> : vector<16xf32>
    %111 = vector.multi_reduction <add>, %110, %cst_110 [1] : vector<16x16xf32> to vector<16xf32>
    %112 = vector.shape_cast %111 : vector<16xf32> to vector<16x1xf32>
    %113 = vector.broadcast %112 : vector<16x1xf32> to vector<16x16xf32>
    %114 = arith.divf %110, %113 : vector<16x16xf32>
    %cst_111 = arith.constant dense<0.000000e+00> : vector<16x8xf32>
    %115 = tpu.matmul %114, %103, %cst_111 {dimension_numbers = #tpu.dot_dimension_numbers<[1], [0], [0], [1], [0, 0, 1, 1], [], []>} : vector<16x16xf32>, vector<16x8xf32>, vector<16x8xf32> -> vector<16x8xf32>
    %c0_112 = arith.constant 0 : index
    %c2_113 = arith.constant 2 : index
    %c0_114 = arith.constant 0 : index
    %c0_115 = arith.constant 0 : index
    %116 = vector.load %arg13[%c0_112, %c2_113, %c0_114, %c0_115] : memref<1x4x8x32xf32, #tpu.memory_space<vmem>>, vector<1x1x8x32xf32>
    %117 = vector.shape_cast %116 : vector<1x1x8x32xf32> to vector<8x32xf32>
    %cst_116 = arith.constant dense<0.000000e+00> : vector<16x32xf32>
    %118 = tpu.matmul %115, %117, %cst_116 {dimension_numbers = #tpu.dot_dimension_numbers<[1], [0], [0], [1], [0, 0, 1, 1], [], []>} : vector<16x8xf32>, vector<8x32xf32>, vector<16x32xf32> -> vector<16x32xf32>
    %119 = arith.addf %82, %118 : vector<16x32xf32>
    %c0_117 = arith.constant 0 : index
    %c3 = arith.constant 3 : index
    %c0_118 = arith.constant 0 : index
    %c0_119 = arith.constant 0 : index
    %120 = vector.load %arg7[%c0_117, %c3, %c0_118, %c0_119] : memref<1x4x32x8xf32, #tpu.memory_space<vmem>>, vector<1x1x32x8xf32>
    %121 = vector.shape_cast %120 : vector<1x1x32x8xf32> to vector<32x8xf32>
    %cst_120 = arith.constant dense<0.000000e+00> : vector<16x8xf32>
    %122 = tpu.matmul %3, %121, %cst_120 {dimension_numbers = #tpu.dot_dimension_numbers<[1], [0], [0], [1], [0, 0, 1, 1], [], []>} : vector<16x32xf32>, vector<32x8xf32>, vector<16x8xf32> -> vector<16x8xf32>
    %c0_121 = arith.constant 0 : index
    %c3_122 = arith.constant 3 : index
    %c0_123 = arith.constant 0 : index
    %c0_124 = arith.constant 0 : index
    %123 = vector.load %arg8[%c0_121, %c3_122, %c0_123, %c0_124] : memref<1x4x1x8xf32, #tpu.memory_space<vmem>>, vector<1x1x1x8xf32>
    %124 = vector.shape_cast %123 : vector<1x1x1x8xf32> to vector<1x8xf32>
    %125 = vector.broadcast %124 : vector<1x8xf32> to vector<16x8xf32>
    %126 = arith.addf %122, %125 : vector<16x8xf32>
    %c0_125 = arith.constant 0 : index
    %c3_126 = arith.constant 3 : index
    %c0_127 = arith.constant 0 : index
    %c0_128 = arith.constant 0 : index
    %127 = vector.load %arg9[%c0_125, %c3_126, %c0_127, %c0_128] : memref<1x4x32x8xf32, #tpu.memory_space<vmem>>, vector<1x1x32x8xf32>
    %128 = vector.shape_cast %127 : vector<1x1x32x8xf32> to vector<32x8xf32>
    %cst_129 = arith.constant dense<0.000000e+00> : vector<16x8xf32>
    %129 = tpu.matmul %3, %128, %cst_129 {dimension_numbers = #tpu.dot_dimension_numbers<[1], [0], [0], [1], [0, 0, 1, 1], [], []>} : vector<16x32xf32>, vector<32x8xf32>, vector<16x8xf32> -> vector<16x8xf32>
    %c0_130 = arith.constant 0 : index
    %c3_131 = arith.constant 3 : index
    %c0_132 = arith.constant 0 : index
    %c0_133 = arith.constant 0 : index
    %130 = vector.load %arg10[%c0_130, %c3_131, %c0_132, %c0_133] : memref<1x4x1x8xf32, #tpu.memory_space<vmem>>, vector<1x1x1x8xf32>
    %131 = vector.shape_cast %130 : vector<1x1x1x8xf32> to vector<1x8xf32>
    %132 = vector.broadcast %131 : vector<1x8xf32> to vector<16x8xf32>
    %133 = arith.addf %129, %132 : vector<16x8xf32>
    %c0_134 = arith.constant 0 : index
    %c3_135 = arith.constant 3 : index
    %c0_136 = arith.constant 0 : index
    %c0_137 = arith.constant 0 : index
    %134 = vector.load %arg11[%c0_134, %c3_135, %c0_136, %c0_137] : memref<1x4x32x8xf32, #tpu.memory_space<vmem>>, vector<1x1x32x8xf32>
    %135 = vector.shape_cast %134 : vector<1x1x32x8xf32> to vector<32x8xf32>
    %cst_138 = arith.constant dense<0.000000e+00> : vector<16x8xf32>
    %136 = tpu.matmul %3, %135, %cst_138 {dimension_numbers = #tpu.dot_dimension_numbers<[1], [0], [0], [1], [0, 0, 1, 1], [], []>} : vector<16x32xf32>, vector<32x8xf32>, vector<16x8xf32> -> vector<16x8xf32>
    %c0_139 = arith.constant 0 : index
    %c3_140 = arith.constant 3 : index
    %c0_141 = arith.constant 0 : index
    %c0_142 = arith.constant 0 : index
    %137 = vector.load %arg12[%c0_139, %c3_140, %c0_141, %c0_142] : memref<1x4x1x8xf32, #tpu.memory_space<vmem>>, vector<1x1x1x8xf32>
    %138 = vector.shape_cast %137 : vector<1x1x1x8xf32> to vector<1x8xf32>
    %139 = vector.broadcast %138 : vector<1x8xf32> to vector<16x8xf32>
    %140 = arith.addf %136, %139 : vector<16x8xf32>
    %cst_143 = arith.constant dense<0.000000e+00> : vector<16x16xf32>
    %141 = tpu.matmul %126, %133, %cst_143 {dimension_numbers = #tpu.dot_dimension_numbers<[1], [1], [0], [0], [0, 0, 1, 0], [], []>} : vector<16x8xf32>, vector<16x8xf32>, vector<16x16xf32> -> vector<16x16xf32>
    %142 = arith.addf %141, %7 : vector<16x16xf32>
    %cst_144 = arith.constant dense<0xFF800000> : vector<16xf32>
    %143 = vector.multi_reduction <maximumf>, %142, %cst_144 [1] : vector<16x16xf32> to vector<16xf32>
    %144 = vector.shape_cast %143 : vector<16xf32> to vector<16x1xf32>
    %145 = vector.broadcast %144 : vector<16x1xf32> to vector<16x16xf32>
    %146 = arith.subf %142, %145 : vector<16x16xf32>
    %147 = math.exp %146 : vector<16x16xf32>
    %cst_145 = arith.constant dense<0.000000e+00> : vector<16xf32>
    %148 = vector.multi_reduction <add>, %147, %cst_145 [1] : vector<16x16xf32> to vector<16xf32>
    %149 = vector.shape_cast %148 : vector<16xf32> to vector<16x1xf32>
    %150 = vector.broadcast %149 : vector<16x1xf32> to vector<16x16xf32>
    %151 = arith.divf %147, %150 : vector<16x16xf32>
    %cst_146 = arith.constant dense<0.000000e+00> : vector<16x8xf32>
    %152 = tpu.matmul %151, %140, %cst_146 {dimension_numbers = #tpu.dot_dimension_numbers<[1], [0], [0], [1], [0, 0, 1, 1], [], []>} : vector<16x16xf32>, vector<16x8xf32>, vector<16x8xf32> -> vector<16x8xf32>
    %c0_147 = arith.constant 0 : index
    %c3_148 = arith.constant 3 : index
    %c0_149 = arith.constant 0 : index
    %c0_150 = arith.constant 0 : index
    %153 = vector.load %arg13[%c0_147, %c3_148, %c0_149, %c0_150] : memref<1x4x8x32xf32, #tpu.memory_space<vmem>>, vector<1x1x8x32xf32>
    %154 = vector.shape_cast %153 : vector<1x1x8x32xf32> to vector<8x32xf32>
    %cst_151 = arith.constant dense<0.000000e+00> : vector<16x32xf32>
    %155 = tpu.matmul %152, %154, %cst_151 {dimension_numbers = #tpu.dot_dimension_numbers<[1], [0], [0], [1], [0, 0, 1, 1], [], []>} : vector<16x8xf32>, vector<8x32xf32>, vector<16x32xf32> -> vector<16x32xf32>
    %156 = arith.addf %119, %155 : vector<16x32xf32>
    %c0_152 = arith.constant 0 : index
    %c0_153 = arith.constant 0 : index
    %c0_154 = arith.constant 0 : index
    %157 = vector.load %arg14[%c0_152, %c0_153, %c0_154] : memref<1x1x32xf32, #tpu.memory_space<vmem>>, vector<1x1x32xf32>
    %158 = vector.shape_cast %157 : vector<1x1x32xf32> to vector<1x32xf32>
    %159 = vector.broadcast %158 : vector<1x32xf32> to vector<16x32xf32>
    %160 = arith.addf %156, %159 : vector<16x32xf32>
    %c0_155 = arith.constant 0 : index
    %c0_156 = arith.constant 0 : index
    %c0_157 = arith.constant 0 : index
    %161 = vector.load %arg15[%c0_155, %c0_156, %c0_157] : memref<1x1x32xf32, #tpu.memory_space<vmem>>, vector<1x1x32xf32>
    %162 = vector.shape_cast %161 : vector<1x1x32xf32> to vector<1x32xf32>
    %c0_158 = arith.constant 0 : index
    %c0_159 = arith.constant 0 : index
    %c0_160 = arith.constant 0 : index
    %163 = vector.load %arg16[%c0_158, %c0_159, %c0_160] : memref<1x1x32xf32, #tpu.memory_space<vmem>>, vector<1x1x32xf32>
    %164 = vector.shape_cast %163 : vector<1x1x32xf32> to vector<1x32xf32>
    %165 = arith.addf %160, %3 : vector<16x32xf32>
    %cst_161 = arith.constant dense<0.000000e+00> : vector<16xf32>
    %166 = vector.multi_reduction <add>, %165, %cst_161 [1] : vector<16x32xf32> to vector<16xf32>
    %167 = vector.shape_cast %166 : vector<16xf32> to vector<16x1xf32>
    %cst_162 = arith.constant 3.200000e+01 : f32
    %168 = vector.broadcast %cst_162 : f32 to vector<16x1xf32>
    %169 = arith.divf %167, %168 : vector<16x1xf32>
    %170 = vector.broadcast %169 : vector<16x1xf32> to vector<16x32xf32>
    %171 = arith.subf %165, %170 : vector<16x32xf32>
    %172 = arith.mulf %171, %171 : vector<16x32xf32>
    %cst_163 = arith.constant dense<0.000000e+00> : vector<16xf32>
    %173 = vector.multi_reduction <add>, %172, %cst_163 [1] : vector<16x32xf32> to vector<16xf32>
    %174 = vector.shape_cast %173 : vector<16xf32> to vector<16x1xf32>
    %cst_164 = arith.constant 3.200000e+01 : f32
    %175 = vector.broadcast %cst_164 : f32 to vector<16x1xf32>
    %176 = arith.divf %174, %175 : vector<16x1xf32>
    %177 = vector.broadcast %169 : vector<16x1xf32> to vector<16x32xf32>
    %178 = arith.subf %165, %177 : vector<16x32xf32>
    %cst_165 = arith.constant 9.99999974E-6 : f32
    %179 = vector.broadcast %cst_165 : f32 to vector<16x1xf32>
    %180 = arith.addf %176, %179 : vector<16x1xf32>
    %181 = math.rsqrt %180 : vector<16x1xf32>
    %182 = vector.broadcast %181 : vector<16x1xf32> to vector<16x32xf32>
    %183 = arith.mulf %178, %182 : vector<16x32xf32>
    %184 = vector.broadcast %162 : vector<1x32xf32> to vector<16x32xf32>
    %185 = arith.mulf %183, %184 : vector<16x32xf32>
    %186 = vector.broadcast %164 : vector<1x32xf32> to vector<16x32xf32>
    %187 = arith.addf %185, %186 : vector<16x32xf32>
    %188 = vector.broadcast %5 : vector<16x1xf32> to vector<16x32xf32>
    %189 = arith.mulf %187, %188 : vector<16x32xf32>
    %c0_166 = arith.constant 0 : index
    %c0_167 = arith.constant 0 : index
    %c0_168 = arith.constant 0 : index
    %c0_169 = arith.constant 0 : index
    %190 = vector.load %arg17[%c0_166, %c0_167, %c0_168, %c0_169] : memref<1x4x32x8xf32, #tpu.memory_space<vmem>>, vector<1x1x32x8xf32>
    %191 = vector.shape_cast %190 : vector<1x1x32x8xf32> to vector<32x8xf32>
    %cst_170 = arith.constant dense<0.000000e+00> : vector<16x8xf32>
    %192 = tpu.matmul %189, %191, %cst_170 {dimension_numbers = #tpu.dot_dimension_numbers<[1], [0], [0], [1], [0, 0, 1, 1], [], []>} : vector<16x32xf32>, vector<32x8xf32>, vector<16x8xf32> -> vector<16x8xf32>
    %c0_171 = arith.constant 0 : index
    %c0_172 = arith.constant 0 : index
    %c0_173 = arith.constant 0 : index
    %c0_174 = arith.constant 0 : index
    %193 = vector.load %arg18[%c0_171, %c0_172, %c0_173, %c0_174] : memref<1x4x1x8xf32, #tpu.memory_space<vmem>>, vector<1x1x1x8xf32>
    %194 = vector.shape_cast %193 : vector<1x1x1x8xf32> to vector<1x8xf32>
    %195 = vector.broadcast %194 : vector<1x8xf32> to vector<16x8xf32>
    %196 = arith.addf %192, %195 : vector<16x8xf32>
    %c0_175 = arith.constant 0 : index
    %c0_176 = arith.constant 0 : index
    %c0_177 = arith.constant 0 : index
    %c0_178 = arith.constant 0 : index
    %197 = vector.load %arg19[%c0_175, %c0_176, %c0_177, %c0_178] : memref<1x4x32x8xf32, #tpu.memory_space<vmem>>, vector<1x1x32x8xf32>
    %198 = vector.shape_cast %197 : vector<1x1x32x8xf32> to vector<32x8xf32>
    %cst_179 = arith.constant dense<0.000000e+00> : vector<16x8xf32>
    %199 = tpu.matmul %4, %198, %cst_179 {dimension_numbers = #tpu.dot_dimension_numbers<[1], [0], [0], [1], [0, 0, 1, 1], [], []>} : vector<16x32xf32>, vector<32x8xf32>, vector<16x8xf32> -> vector<16x8xf32>
    %c0_180 = arith.constant 0 : index
    %c0_181 = arith.constant 0 : index
    %c0_182 = arith.constant 0 : index
    %c0_183 = arith.constant 0 : index
    %200 = vector.load %arg20[%c0_180, %c0_181, %c0_182, %c0_183] : memref<1x4x1x8xf32, #tpu.memory_space<vmem>>, vector<1x1x1x8xf32>
    %201 = vector.shape_cast %200 : vector<1x1x1x8xf32> to vector<1x8xf32>
    %202 = vector.broadcast %201 : vector<1x8xf32> to vector<16x8xf32>
    %203 = arith.addf %199, %202 : vector<16x8xf32>
    %c0_184 = arith.constant 0 : index
    %c0_185 = arith.constant 0 : index
    %c0_186 = arith.constant 0 : index
    %c0_187 = arith.constant 0 : index
    %204 = vector.load %arg21[%c0_184, %c0_185, %c0_186, %c0_187] : memref<1x4x32x8xf32, #tpu.memory_space<vmem>>, vector<1x1x32x8xf32>
    %205 = vector.shape_cast %204 : vector<1x1x32x8xf32> to vector<32x8xf32>
    %cst_188 = arith.constant dense<0.000000e+00> : vector<16x8xf32>
    %206 = tpu.matmul %4, %205, %cst_188 {dimension_numbers = #tpu.dot_dimension_numbers<[1], [0], [0], [1], [0, 0, 1, 1], [], []>} : vector<16x32xf32>, vector<32x8xf32>, vector<16x8xf32> -> vector<16x8xf32>
    %c0_189 = arith.constant 0 : index
    %c0_190 = arith.constant 0 : index
    %c0_191 = arith.constant 0 : index
    %c0_192 = arith.constant 0 : index
    %207 = vector.load %arg22[%c0_189, %c0_190, %c0_191, %c0_192] : memref<1x4x1x8xf32, #tpu.memory_space<vmem>>, vector<1x1x1x8xf32>
    %208 = vector.shape_cast %207 : vector<1x1x1x8xf32> to vector<1x8xf32>
    %209 = vector.broadcast %208 : vector<1x8xf32> to vector<16x8xf32>
    %210 = arith.addf %206, %209 : vector<16x8xf32>
    %cst_193 = arith.constant dense<0.000000e+00> : vector<16x16xf32>
    %211 = tpu.matmul %196, %203, %cst_193 {dimension_numbers = #tpu.dot_dimension_numbers<[1], [1], [0], [0], [0, 0, 1, 0], [], []>} : vector<16x8xf32>, vector<16x8xf32>, vector<16x16xf32> -> vector<16x16xf32>
    %212 = arith.addf %211, %9 : vector<16x16xf32>
    %cst_194 = arith.constant dense<0xFF800000> : vector<16xf32>
    %213 = vector.multi_reduction <maximumf>, %212, %cst_194 [1] : vector<16x16xf32> to vector<16xf32>
    %214 = vector.shape_cast %213 : vector<16xf32> to vector<16x1xf32>
    %215 = vector.broadcast %214 : vector<16x1xf32> to vector<16x16xf32>
    %216 = arith.subf %212, %215 : vector<16x16xf32>
    %217 = math.exp %216 : vector<16x16xf32>
    %cst_195 = arith.constant dense<0.000000e+00> : vector<16xf32>
    %218 = vector.multi_reduction <add>, %217, %cst_195 [1] : vector<16x16xf32> to vector<16xf32>
    %219 = vector.shape_cast %218 : vector<16xf32> to vector<16x1xf32>
    %220 = vector.broadcast %219 : vector<16x1xf32> to vector<16x16xf32>
    %221 = arith.divf %217, %220 : vector<16x16xf32>
    %cst_196 = arith.constant dense<0.000000e+00> : vector<16x8xf32>
    %222 = tpu.matmul %221, %210, %cst_196 {dimension_numbers = #tpu.dot_dimension_numbers<[1], [0], [0], [1], [0, 0, 1, 1], [], []>} : vector<16x16xf32>, vector<16x8xf32>, vector<16x8xf32> -> vector<16x8xf32>
    %c0_197 = arith.constant 0 : index
    %c0_198 = arith.constant 0 : index
    %c0_199 = arith.constant 0 : index
    %c0_200 = arith.constant 0 : index
    %223 = vector.load %arg23[%c0_197, %c0_198, %c0_199, %c0_200] : memref<1x4x8x32xf32, #tpu.memory_space<vmem>>, vector<1x1x8x32xf32>
    %224 = vector.shape_cast %223 : vector<1x1x8x32xf32> to vector<8x32xf32>
    %cst_201 = arith.constant dense<0.000000e+00> : vector<16x32xf32>
    %225 = tpu.matmul %222, %224, %cst_201 {dimension_numbers = #tpu.dot_dimension_numbers<[1], [0], [0], [1], [0, 0, 1, 1], [], []>} : vector<16x8xf32>, vector<8x32xf32>, vector<16x32xf32> -> vector<16x32xf32>
    %c0_202 = arith.constant 0 : index
    %c1_203 = arith.constant 1 : index
    %c0_204 = arith.constant 0 : index
    %c0_205 = arith.constant 0 : index
    %226 = vector.load %arg17[%c0_202, %c1_203, %c0_204, %c0_205] : memref<1x4x32x8xf32, #tpu.memory_space<vmem>>, vector<1x1x32x8xf32>
    %227 = vector.shape_cast %226 : vector<1x1x32x8xf32> to vector<32x8xf32>
    %cst_206 = arith.constant dense<0.000000e+00> : vector<16x8xf32>
    %228 = tpu.matmul %189, %227, %cst_206 {dimension_numbers = #tpu.dot_dimension_numbers<[1], [0], [0], [1], [0, 0, 1, 1], [], []>} : vector<16x32xf32>, vector<32x8xf32>, vector<16x8xf32> -> vector<16x8xf32>
    %c0_207 = arith.constant 0 : index
    %c1_208 = arith.constant 1 : index
    %c0_209 = arith.constant 0 : index
    %c0_210 = arith.constant 0 : index
    %229 = vector.load %arg18[%c0_207, %c1_208, %c0_209, %c0_210] : memref<1x4x1x8xf32, #tpu.memory_space<vmem>>, vector<1x1x1x8xf32>
    %230 = vector.shape_cast %229 : vector<1x1x1x8xf32> to vector<1x8xf32>
    %231 = vector.broadcast %230 : vector<1x8xf32> to vector<16x8xf32>
    %232 = arith.addf %228, %231 : vector<16x8xf32>
    %c0_211 = arith.constant 0 : index
    %c1_212 = arith.constant 1 : index
    %c0_213 = arith.constant 0 : index
    %c0_214 = arith.constant 0 : index
    %233 = vector.load %arg19[%c0_211, %c1_212, %c0_213, %c0_214] : memref<1x4x32x8xf32, #tpu.memory_space<vmem>>, vector<1x1x32x8xf32>
    %234 = vector.shape_cast %233 : vector<1x1x32x8xf32> to vector<32x8xf32>
    %cst_215 = arith.constant dense<0.000000e+00> : vector<16x8xf32>
    %235 = tpu.matmul %4, %234, %cst_215 {dimension_numbers = #tpu.dot_dimension_numbers<[1], [0], [0], [1], [0, 0, 1, 1], [], []>} : vector<16x32xf32>, vector<32x8xf32>, vector<16x8xf32> -> vector<16x8xf32>
    %c0_216 = arith.constant 0 : index
    %c1_217 = arith.constant 1 : index
    %c0_218 = arith.constant 0 : index
    %c0_219 = arith.constant 0 : index
    %236 = vector.load %arg20[%c0_216, %c1_217, %c0_218, %c0_219] : memref<1x4x1x8xf32, #tpu.memory_space<vmem>>, vector<1x1x1x8xf32>
    %237 = vector.shape_cast %236 : vector<1x1x1x8xf32> to vector<1x8xf32>
    %238 = vector.broadcast %237 : vector<1x8xf32> to vector<16x8xf32>
    %239 = arith.addf %235, %238 : vector<16x8xf32>
    %c0_220 = arith.constant 0 : index
    %c1_221 = arith.constant 1 : index
    %c0_222 = arith.constant 0 : index
    %c0_223 = arith.constant 0 : index
    %240 = vector.load %arg21[%c0_220, %c1_221, %c0_222, %c0_223] : memref<1x4x32x8xf32, #tpu.memory_space<vmem>>, vector<1x1x32x8xf32>
    %241 = vector.shape_cast %240 : vector<1x1x32x8xf32> to vector<32x8xf32>
    %cst_224 = arith.constant dense<0.000000e+00> : vector<16x8xf32>
    %242 = tpu.matmul %4, %241, %cst_224 {dimension_numbers = #tpu.dot_dimension_numbers<[1], [0], [0], [1], [0, 0, 1, 1], [], []>} : vector<16x32xf32>, vector<32x8xf32>, vector<16x8xf32> -> vector<16x8xf32>
    %c0_225 = arith.constant 0 : index
    %c1_226 = arith.constant 1 : index
    %c0_227 = arith.constant 0 : index
    %c0_228 = arith.constant 0 : index
    %243 = vector.load %arg22[%c0_225, %c1_226, %c0_227, %c0_228] : memref<1x4x1x8xf32, #tpu.memory_space<vmem>>, vector<1x1x1x8xf32>
    %244 = vector.shape_cast %243 : vector<1x1x1x8xf32> to vector<1x8xf32>
    %245 = vector.broadcast %244 : vector<1x8xf32> to vector<16x8xf32>
    %246 = arith.addf %242, %245 : vector<16x8xf32>
    %cst_229 = arith.constant dense<0.000000e+00> : vector<16x16xf32>
    %247 = tpu.matmul %232, %239, %cst_229 {dimension_numbers = #tpu.dot_dimension_numbers<[1], [1], [0], [0], [0, 0, 1, 0], [], []>} : vector<16x8xf32>, vector<16x8xf32>, vector<16x16xf32> -> vector<16x16xf32>
    %248 = arith.addf %247, %9 : vector<16x16xf32>
    %cst_230 = arith.constant dense<0xFF800000> : vector<16xf32>
    %249 = vector.multi_reduction <maximumf>, %248, %cst_230 [1] : vector<16x16xf32> to vector<16xf32>
    %250 = vector.shape_cast %249 : vector<16xf32> to vector<16x1xf32>
    %251 = vector.broadcast %250 : vector<16x1xf32> to vector<16x16xf32>
    %252 = arith.subf %248, %251 : vector<16x16xf32>
    %253 = math.exp %252 : vector<16x16xf32>
    %cst_231 = arith.constant dense<0.000000e+00> : vector<16xf32>
    %254 = vector.multi_reduction <add>, %253, %cst_231 [1] : vector<16x16xf32> to vector<16xf32>
    %255 = vector.shape_cast %254 : vector<16xf32> to vector<16x1xf32>
    %256 = vector.broadcast %255 : vector<16x1xf32> to vector<16x16xf32>
    %257 = arith.divf %253, %256 : vector<16x16xf32>
    %cst_232 = arith.constant dense<0.000000e+00> : vector<16x8xf32>
    %258 = tpu.matmul %257, %246, %cst_232 {dimension_numbers = #tpu.dot_dimension_numbers<[1], [0], [0], [1], [0, 0, 1, 1], [], []>} : vector<16x16xf32>, vector<16x8xf32>, vector<16x8xf32> -> vector<16x8xf32>
    %c0_233 = arith.constant 0 : index
    %c1_234 = arith.constant 1 : index
    %c0_235 = arith.constant 0 : index
    %c0_236 = arith.constant 0 : index
    %259 = vector.load %arg23[%c0_233, %c1_234, %c0_235, %c0_236] : memref<1x4x8x32xf32, #tpu.memory_space<vmem>>, vector<1x1x8x32xf32>
    %260 = vector.shape_cast %259 : vector<1x1x8x32xf32> to vector<8x32xf32>
    %cst_237 = arith.constant dense<0.000000e+00> : vector<16x32xf32>
    %261 = tpu.matmul %258, %260, %cst_237 {dimension_numbers = #tpu.dot_dimension_numbers<[1], [0], [0], [1], [0, 0, 1, 1], [], []>} : vector<16x8xf32>, vector<8x32xf32>, vector<16x32xf32> -> vector<16x32xf32>
    %262 = arith.addf %225, %261 : vector<16x32xf32>
    %c0_238 = arith.constant 0 : index
    %c2_239 = arith.constant 2 : index
    %c0_240 = arith.constant 0 : index
    %c0_241 = arith.constant 0 : index
    %263 = vector.load %arg17[%c0_238, %c2_239, %c0_240, %c0_241] : memref<1x4x32x8xf32, #tpu.memory_space<vmem>>, vector<1x1x32x8xf32>
    %264 = vector.shape_cast %263 : vector<1x1x32x8xf32> to vector<32x8xf32>
    %cst_242 = arith.constant dense<0.000000e+00> : vector<16x8xf32>
    %265 = tpu.matmul %189, %264, %cst_242 {dimension_numbers = #tpu.dot_dimension_numbers<[1], [0], [0], [1], [0, 0, 1, 1], [], []>} : vector<16x32xf32>, vector<32x8xf32>, vector<16x8xf32> -> vector<16x8xf32>
    %c0_243 = arith.constant 0 : index
    %c2_244 = arith.constant 2 : index
    %c0_245 = arith.constant 0 : index
    %c0_246 = arith.constant 0 : index
    %266 = vector.load %arg18[%c0_243, %c2_244, %c0_245, %c0_246] : memref<1x4x1x8xf32, #tpu.memory_space<vmem>>, vector<1x1x1x8xf32>
    %267 = vector.shape_cast %266 : vector<1x1x1x8xf32> to vector<1x8xf32>
    %268 = vector.broadcast %267 : vector<1x8xf32> to vector<16x8xf32>
    %269 = arith.addf %265, %268 : vector<16x8xf32>
    %c0_247 = arith.constant 0 : index
    %c2_248 = arith.constant 2 : index
    %c0_249 = arith.constant 0 : index
    %c0_250 = arith.constant 0 : index
    %270 = vector.load %arg19[%c0_247, %c2_248, %c0_249, %c0_250] : memref<1x4x32x8xf32, #tpu.memory_space<vmem>>, vector<1x1x32x8xf32>
    %271 = vector.shape_cast %270 : vector<1x1x32x8xf32> to vector<32x8xf32>
    %cst_251 = arith.constant dense<0.000000e+00> : vector<16x8xf32>
    %272 = tpu.matmul %4, %271, %cst_251 {dimension_numbers = #tpu.dot_dimension_numbers<[1], [0], [0], [1], [0, 0, 1, 1], [], []>} : vector<16x32xf32>, vector<32x8xf32>, vector<16x8xf32> -> vector<16x8xf32>
    %c0_252 = arith.constant 0 : index
    %c2_253 = arith.constant 2 : index
    %c0_254 = arith.constant 0 : index
    %c0_255 = arith.constant 0 : index
    %273 = vector.load %arg20[%c0_252, %c2_253, %c0_254, %c0_255] : memref<1x4x1x8xf32, #tpu.memory_space<vmem>>, vector<1x1x1x8xf32>
    %274 = vector.shape_cast %273 : vector<1x1x1x8xf32> to vector<1x8xf32>
    %275 = vector.broadcast %274 : vector<1x8xf32> to vector<16x8xf32>
    %276 = arith.addf %272, %275 : vector<16x8xf32>
    %c0_256 = arith.constant 0 : index
    %c2_257 = arith.constant 2 : index
    %c0_258 = arith.constant 0 : index
    %c0_259 = arith.constant 0 : index
    %277 = vector.load %arg21[%c0_256, %c2_257, %c0_258, %c0_259] : memref<1x4x32x8xf32, #tpu.memory_space<vmem>>, vector<1x1x32x8xf32>
    %278 = vector.shape_cast %277 : vector<1x1x32x8xf32> to vector<32x8xf32>
    %cst_260 = arith.constant dense<0.000000e+00> : vector<16x8xf32>
    %279 = tpu.matmul %4, %278, %cst_260 {dimension_numbers = #tpu.dot_dimension_numbers<[1], [0], [0], [1], [0, 0, 1, 1], [], []>} : vector<16x32xf32>, vector<32x8xf32>, vector<16x8xf32> -> vector<16x8xf32>
    %c0_261 = arith.constant 0 : index
    %c2_262 = arith.constant 2 : index
    %c0_263 = arith.constant 0 : index
    %c0_264 = arith.constant 0 : index
    %280 = vector.load %arg22[%c0_261, %c2_262, %c0_263, %c0_264] : memref<1x4x1x8xf32, #tpu.memory_space<vmem>>, vector<1x1x1x8xf32>
    %281 = vector.shape_cast %280 : vector<1x1x1x8xf32> to vector<1x8xf32>
    %282 = vector.broadcast %281 : vector<1x8xf32> to vector<16x8xf32>
    %283 = arith.addf %279, %282 : vector<16x8xf32>
    %cst_265 = arith.constant dense<0.000000e+00> : vector<16x16xf32>
    %284 = tpu.matmul %269, %276, %cst_265 {dimension_numbers = #tpu.dot_dimension_numbers<[1], [1], [0], [0], [0, 0, 1, 0], [], []>} : vector<16x8xf32>, vector<16x8xf32>, vector<16x16xf32> -> vector<16x16xf32>
    %285 = arith.addf %284, %9 : vector<16x16xf32>
    %cst_266 = arith.constant dense<0xFF800000> : vector<16xf32>
    %286 = vector.multi_reduction <maximumf>, %285, %cst_266 [1] : vector<16x16xf32> to vector<16xf32>
    %287 = vector.shape_cast %286 : vector<16xf32> to vector<16x1xf32>
    %288 = vector.broadcast %287 : vector<16x1xf32> to vector<16x16xf32>
    %289 = arith.subf %285, %288 : vector<16x16xf32>
    %290 = math.exp %289 : vector<16x16xf32>
    %cst_267 = arith.constant dense<0.000000e+00> : vector<16xf32>
    %291 = vector.multi_reduction <add>, %290, %cst_267 [1] : vector<16x16xf32> to vector<16xf32>
    %292 = vector.shape_cast %291 : vector<16xf32> to vector<16x1xf32>
    %293 = vector.broadcast %292 : vector<16x1xf32> to vector<16x16xf32>
    %294 = arith.divf %290, %293 : vector<16x16xf32>
    %cst_268 = arith.constant dense<0.000000e+00> : vector<16x8xf32>
    %295 = tpu.matmul %294, %283, %cst_268 {dimension_numbers = #tpu.dot_dimension_numbers<[1], [0], [0], [1], [0, 0, 1, 1], [], []>} : vector<16x16xf32>, vector<16x8xf32>, vector<16x8xf32> -> vector<16x8xf32>
    %c0_269 = arith.constant 0 : index
    %c2_270 = arith.constant 2 : index
    %c0_271 = arith.constant 0 : index
    %c0_272 = arith.constant 0 : index
    %296 = vector.load %arg23[%c0_269, %c2_270, %c0_271, %c0_272] : memref<1x4x8x32xf32, #tpu.memory_space<vmem>>, vector<1x1x8x32xf32>
    %297 = vector.shape_cast %296 : vector<1x1x8x32xf32> to vector<8x32xf32>
    %cst_273 = arith.constant dense<0.000000e+00> : vector<16x32xf32>
    %298 = tpu.matmul %295, %297, %cst_273 {dimension_numbers = #tpu.dot_dimension_numbers<[1], [0], [0], [1], [0, 0, 1, 1], [], []>} : vector<16x8xf32>, vector<8x32xf32>, vector<16x32xf32> -> vector<16x32xf32>
    %299 = arith.addf %262, %298 : vector<16x32xf32>
    %c0_274 = arith.constant 0 : index
    %c3_275 = arith.constant 3 : index
    %c0_276 = arith.constant 0 : index
    %c0_277 = arith.constant 0 : index
    %300 = vector.load %arg17[%c0_274, %c3_275, %c0_276, %c0_277] : memref<1x4x32x8xf32, #tpu.memory_space<vmem>>, vector<1x1x32x8xf32>
    %301 = vector.shape_cast %300 : vector<1x1x32x8xf32> to vector<32x8xf32>
    %cst_278 = arith.constant dense<0.000000e+00> : vector<16x8xf32>
    %302 = tpu.matmul %189, %301, %cst_278 {dimension_numbers = #tpu.dot_dimension_numbers<[1], [0], [0], [1], [0, 0, 1, 1], [], []>} : vector<16x32xf32>, vector<32x8xf32>, vector<16x8xf32> -> vector<16x8xf32>
    %c0_279 = arith.constant 0 : index
    %c3_280 = arith.constant 3 : index
    %c0_281 = arith.constant 0 : index
    %c0_282 = arith.constant 0 : index
    %303 = vector.load %arg18[%c0_279, %c3_280, %c0_281, %c0_282] : memref<1x4x1x8xf32, #tpu.memory_space<vmem>>, vector<1x1x1x8xf32>
    %304 = vector.shape_cast %303 : vector<1x1x1x8xf32> to vector<1x8xf32>
    %305 = vector.broadcast %304 : vector<1x8xf32> to vector<16x8xf32>
    %306 = arith.addf %302, %305 : vector<16x8xf32>
    %c0_283 = arith.constant 0 : index
    %c3_284 = arith.constant 3 : index
    %c0_285 = arith.constant 0 : index
    %c0_286 = arith.constant 0 : index
    %307 = vector.load %arg19[%c0_283, %c3_284, %c0_285, %c0_286] : memref<1x4x32x8xf32, #tpu.memory_space<vmem>>, vector<1x1x32x8xf32>
    %308 = vector.shape_cast %307 : vector<1x1x32x8xf32> to vector<32x8xf32>
    %cst_287 = arith.constant dense<0.000000e+00> : vector<16x8xf32>
    %309 = tpu.matmul %4, %308, %cst_287 {dimension_numbers = #tpu.dot_dimension_numbers<[1], [0], [0], [1], [0, 0, 1, 1], [], []>} : vector<16x32xf32>, vector<32x8xf32>, vector<16x8xf32> -> vector<16x8xf32>
    %c0_288 = arith.constant 0 : index
    %c3_289 = arith.constant 3 : index
    %c0_290 = arith.constant 0 : index
    %c0_291 = arith.constant 0 : index
    %310 = vector.load %arg20[%c0_288, %c3_289, %c0_290, %c0_291] : memref<1x4x1x8xf32, #tpu.memory_space<vmem>>, vector<1x1x1x8xf32>
    %311 = vector.shape_cast %310 : vector<1x1x1x8xf32> to vector<1x8xf32>
    %312 = vector.broadcast %311 : vector<1x8xf32> to vector<16x8xf32>
    %313 = arith.addf %309, %312 : vector<16x8xf32>
    %c0_292 = arith.constant 0 : index
    %c3_293 = arith.constant 3 : index
    %c0_294 = arith.constant 0 : index
    %c0_295 = arith.constant 0 : index
    %314 = vector.load %arg21[%c0_292, %c3_293, %c0_294, %c0_295] : memref<1x4x32x8xf32, #tpu.memory_space<vmem>>, vector<1x1x32x8xf32>
    %315 = vector.shape_cast %314 : vector<1x1x32x8xf32> to vector<32x8xf32>
    %cst_296 = arith.constant dense<0.000000e+00> : vector<16x8xf32>
    %316 = tpu.matmul %4, %315, %cst_296 {dimension_numbers = #tpu.dot_dimension_numbers<[1], [0], [0], [1], [0, 0, 1, 1], [], []>} : vector<16x32xf32>, vector<32x8xf32>, vector<16x8xf32> -> vector<16x8xf32>
    %c0_297 = arith.constant 0 : index
    %c3_298 = arith.constant 3 : index
    %c0_299 = arith.constant 0 : index
    %c0_300 = arith.constant 0 : index
    %317 = vector.load %arg22[%c0_297, %c3_298, %c0_299, %c0_300] : memref<1x4x1x8xf32, #tpu.memory_space<vmem>>, vector<1x1x1x8xf32>
    %318 = vector.shape_cast %317 : vector<1x1x1x8xf32> to vector<1x8xf32>
    %319 = vector.broadcast %318 : vector<1x8xf32> to vector<16x8xf32>
    %320 = arith.addf %316, %319 : vector<16x8xf32>
    %cst_301 = arith.constant dense<0.000000e+00> : vector<16x16xf32>
    %321 = tpu.matmul %306, %313, %cst_301 {dimension_numbers = #tpu.dot_dimension_numbers<[1], [1], [0], [0], [0, 0, 1, 0], [], []>} : vector<16x8xf32>, vector<16x8xf32>, vector<16x16xf32> -> vector<16x16xf32>
    %322 = arith.addf %321, %9 : vector<16x16xf32>
    %cst_302 = arith.constant dense<0xFF800000> : vector<16xf32>
    %323 = vector.multi_reduction <maximumf>, %322, %cst_302 [1] : vector<16x16xf32> to vector<16xf32>
    %324 = vector.shape_cast %323 : vector<16xf32> to vector<16x1xf32>
    %325 = vector.broadcast %324 : vector<16x1xf32> to vector<16x16xf32>
    %326 = arith.subf %322, %325 : vector<16x16xf32>
    %327 = math.exp %326 : vector<16x16xf32>
    %cst_303 = arith.constant dense<0.000000e+00> : vector<16xf32>
    %328 = vector.multi_reduction <add>, %327, %cst_303 [1] : vector<16x16xf32> to vector<16xf32>
    %329 = vector.shape_cast %328 : vector<16xf32> to vector<16x1xf32>
    %330 = vector.broadcast %329 : vector<16x1xf32> to vector<16x16xf32>
    %331 = arith.divf %327, %330 : vector<16x16xf32>
    %cst_304 = arith.constant dense<0.000000e+00> : vector<16x8xf32>
    %332 = tpu.matmul %331, %320, %cst_304 {dimension_numbers = #tpu.dot_dimension_numbers<[1], [0], [0], [1], [0, 0, 1, 1], [], []>} : vector<16x16xf32>, vector<16x8xf32>, vector<16x8xf32> -> vector<16x8xf32>
    %c0_305 = arith.constant 0 : index
    %c3_306 = arith.constant 3 : index
    %c0_307 = arith.constant 0 : index
    %c0_308 = arith.constant 0 : index
    %333 = vector.load %arg23[%c0_305, %c3_306, %c0_307, %c0_308] : memref<1x4x8x32xf32, #tpu.memory_space<vmem>>, vector<1x1x8x32xf32>
    %334 = vector.shape_cast %333 : vector<1x1x8x32xf32> to vector<8x32xf32>
    %cst_309 = arith.constant dense<0.000000e+00> : vector<16x32xf32>
    %335 = tpu.matmul %332, %334, %cst_309 {dimension_numbers = #tpu.dot_dimension_numbers<[1], [0], [0], [1], [0, 0, 1, 1], [], []>} : vector<16x8xf32>, vector<8x32xf32>, vector<16x32xf32> -> vector<16x32xf32>
    %336 = arith.addf %299, %335 : vector<16x32xf32>
    %c0_310 = arith.constant 0 : index
    %c0_311 = arith.constant 0 : index
    %c0_312 = arith.constant 0 : index
    %337 = vector.load %arg24[%c0_310, %c0_311, %c0_312] : memref<1x1x32xf32, #tpu.memory_space<vmem>>, vector<1x1x32xf32>
    %338 = vector.shape_cast %337 : vector<1x1x32xf32> to vector<1x32xf32>
    %339 = vector.broadcast %338 : vector<1x32xf32> to vector<16x32xf32>
    %340 = arith.addf %336, %339 : vector<16x32xf32>
    %c0_313 = arith.constant 0 : index
    %c0_314 = arith.constant 0 : index
    %c0_315 = arith.constant 0 : index
    %341 = vector.load %arg25[%c0_313, %c0_314, %c0_315] : memref<1x1x32xf32, #tpu.memory_space<vmem>>, vector<1x1x32xf32>
    %342 = vector.shape_cast %341 : vector<1x1x32xf32> to vector<1x32xf32>
    %c0_316 = arith.constant 0 : index
    %c0_317 = arith.constant 0 : index
    %c0_318 = arith.constant 0 : index
    %343 = vector.load %arg26[%c0_316, %c0_317, %c0_318] : memref<1x1x32xf32, #tpu.memory_space<vmem>>, vector<1x1x32xf32>
    %344 = vector.shape_cast %343 : vector<1x1x32xf32> to vector<1x32xf32>
    %345 = arith.addf %340, %189 : vector<16x32xf32>
    %cst_319 = arith.constant dense<0.000000e+00> : vector<16xf32>
    %346 = vector.multi_reduction <add>, %345, %cst_319 [1] : vector<16x32xf32> to vector<16xf32>
    %347 = vector.shape_cast %346 : vector<16xf32> to vector<16x1xf32>
    %cst_320 = arith.constant 3.200000e+01 : f32
    %348 = vector.broadcast %cst_320 : f32 to vector<16x1xf32>
    %349 = arith.divf %347, %348 : vector<16x1xf32>
    %350 = vector.broadcast %349 : vector<16x1xf32> to vector<16x32xf32>
    %351 = arith.subf %345, %350 : vector<16x32xf32>
    %352 = arith.mulf %351, %351 : vector<16x32xf32>
    %cst_321 = arith.constant dense<0.000000e+00> : vector<16xf32>
    %353 = vector.multi_reduction <add>, %352, %cst_321 [1] : vector<16x32xf32> to vector<16xf32>
    %354 = vector.shape_cast %353 : vector<16xf32> to vector<16x1xf32>
    %cst_322 = arith.constant 3.200000e+01 : f32
    %355 = vector.broadcast %cst_322 : f32 to vector<16x1xf32>
    %356 = arith.divf %354, %355 : vector<16x1xf32>
    %357 = vector.broadcast %349 : vector<16x1xf32> to vector<16x32xf32>
    %358 = arith.subf %345, %357 : vector<16x32xf32>
    %cst_323 = arith.constant 9.99999974E-6 : f32
    %359 = vector.broadcast %cst_323 : f32 to vector<16x1xf32>
    %360 = arith.addf %356, %359 : vector<16x1xf32>
    %361 = math.rsqrt %360 : vector<16x1xf32>
    %362 = vector.broadcast %361 : vector<16x1xf32> to vector<16x32xf32>
    %363 = arith.mulf %358, %362 : vector<16x32xf32>
    %364 = vector.broadcast %342 : vector<1x32xf32> to vector<16x32xf32>
    %365 = arith.mulf %363, %364 : vector<16x32xf32>
    %366 = vector.broadcast %344 : vector<1x32xf32> to vector<16x32xf32>
    %367 = arith.addf %365, %366 : vector<16x32xf32>
    %368 = vector.broadcast %5 : vector<16x1xf32> to vector<16x32xf32>
    %369 = arith.mulf %367, %368 : vector<16x32xf32>
    %c0_324 = arith.constant 0 : index
    %c0_325 = arith.constant 0 : index
    %c0_326 = arith.constant 0 : index
    %370 = vector.load %arg27[%c0_324, %c0_325, %c0_326] : memref<1x32x64xf32, #tpu.memory_space<vmem>>, vector<1x32x64xf32>
    %371 = vector.shape_cast %370 : vector<1x32x64xf32> to vector<32x64xf32>
    %cst_327 = arith.constant dense<0.000000e+00> : vector<16x64xf32>
    %372 = tpu.matmul %369, %371, %cst_327 {dimension_numbers = #tpu.dot_dimension_numbers<[1], [0], [0], [1], [0, 0, 1, 1], [], []>} : vector<16x32xf32>, vector<32x64xf32>, vector<16x64xf32> -> vector<16x64xf32>
    %c0_328 = arith.constant 0 : index
    %c0_329 = arith.constant 0 : index
    %c0_330 = arith.constant 0 : index
    %373 = vector.load %arg28[%c0_328, %c0_329, %c0_330] : memref<1x1x64xf32, #tpu.memory_space<vmem>>, vector<1x1x64xf32>
    %374 = vector.shape_cast %373 : vector<1x1x64xf32> to vector<1x64xf32>
    %375 = vector.broadcast %374 : vector<1x64xf32> to vector<16x64xf32>
    %376 = arith.addf %372, %375 : vector<16x64xf32>
    %cst_331 = arith.constant 0.000000e+00 : f32
    %377 = vector.broadcast %cst_331 : f32 to vector<16x64xf32>
    %378 = arith.maximumf %376, %377 : vector<16x64xf32>
    %c0_332 = arith.constant 0 : index
    %c0_333 = arith.constant 0 : index
    %c0_334 = arith.constant 0 : index
    %379 = vector.load %arg29[%c0_332, %c0_333, %c0_334] : memref<1x64x32xf32, #tpu.memory_space<vmem>>, vector<1x64x32xf32>
    %380 = vector.shape_cast %379 : vector<1x64x32xf32> to vector<64x32xf32>
    %cst_335 = arith.constant dense<0.000000e+00> : vector<16x32xf32>
    %381 = tpu.matmul %378, %380, %cst_335 {dimension_numbers = #tpu.dot_dimension_numbers<[1], [0], [0], [1], [0, 0, 1, 1], [], []>} : vector<16x64xf32>, vector<64x32xf32>, vector<16x32xf32> -> vector<16x32xf32>
    %c0_336 = arith.constant 0 : index
    %c0_337 = arith.constant 0 : index
    %c0_338 = arith.constant 0 : index
    %382 = vector.load %arg30[%c0_336, %c0_337, %c0_338] : memref<1x1x32xf32, #tpu.memory_space<vmem>>, vector<1x1x32xf32>
    %383 = vector.shape_cast %382 : vector<1x1x32xf32> to vector<1x32xf32>
    %384 = vector.broadcast %383 : vector<1x32xf32> to vector<16x32xf32>
    %385 = arith.addf %381, %384 : vector<16x32xf32>
    %c0_339 = arith.constant 0 : index
    %c0_340 = arith.constant 0 : index
    %c0_341 = arith.constant 0 : index
    %386 = vector.load %arg31[%c0_339, %c0_340, %c0_341] : memref<1x1x32xf32, #tpu.memory_space<vmem>>, vector<1x1x32xf32>
    %387 = vector.shape_cast %386 : vector<1x1x32xf32> to vector<1x32xf32>
    %c0_342 = arith.constant 0 : index
    %c0_343 = arith.constant 0 : index
    %c0_344 = arith.constant 0 : index
    %388 = vector.load %arg32[%c0_342, %c0_343, %c0_344] : memref<1x1x32xf32, #tpu.memory_space<vmem>>, vector<1x1x32xf32>
    %389 = vector.shape_cast %388 : vector<1x1x32xf32> to vector<1x32xf32>
    %390 = arith.addf %385, %369 : vector<16x32xf32>
    %cst_345 = arith.constant dense<0.000000e+00> : vector<16xf32>
    %391 = vector.multi_reduction <add>, %390, %cst_345 [1] : vector<16x32xf32> to vector<16xf32>
    %392 = vector.shape_cast %391 : vector<16xf32> to vector<16x1xf32>
    %cst_346 = arith.constant 3.200000e+01 : f32
    %393 = vector.broadcast %cst_346 : f32 to vector<16x1xf32>
    %394 = arith.divf %392, %393 : vector<16x1xf32>
    %395 = vector.broadcast %394 : vector<16x1xf32> to vector<16x32xf32>
    %396 = arith.subf %390, %395 : vector<16x32xf32>
    %397 = arith.mulf %396, %396 : vector<16x32xf32>
    %cst_347 = arith.constant dense<0.000000e+00> : vector<16xf32>
    %398 = vector.multi_reduction <add>, %397, %cst_347 [1] : vector<16x32xf32> to vector<16xf32>
    %399 = vector.shape_cast %398 : vector<16xf32> to vector<16x1xf32>
    %cst_348 = arith.constant 3.200000e+01 : f32
    %400 = vector.broadcast %cst_348 : f32 to vector<16x1xf32>
    %401 = arith.divf %399, %400 : vector<16x1xf32>
    %402 = vector.broadcast %394 : vector<16x1xf32> to vector<16x32xf32>
    %403 = arith.subf %390, %402 : vector<16x32xf32>
    %cst_349 = arith.constant 9.99999974E-6 : f32
    %404 = vector.broadcast %cst_349 : f32 to vector<16x1xf32>
    %405 = arith.addf %401, %404 : vector<16x1xf32>
    %406 = math.rsqrt %405 : vector<16x1xf32>
    %407 = vector.broadcast %406 : vector<16x1xf32> to vector<16x32xf32>
    %408 = arith.mulf %403, %407 : vector<16x32xf32>
    %409 = vector.broadcast %387 : vector<1x32xf32> to vector<16x32xf32>
    %410 = arith.mulf %408, %409 : vector<16x32xf32>
    %411 = vector.broadcast %389 : vector<1x32xf32> to vector<16x32xf32>
    %412 = arith.addf %410, %411 : vector<16x32xf32>
    %413 = vector.broadcast %5 : vector<16x1xf32> to vector<16x32xf32>
    %414 = arith.mulf %412, %413 : vector<16x32xf32>
    %c0_350 = arith.constant 0 : index
    %c0_351 = arith.constant 0 : index
    %415 = vector.load %arg34[%c0_350, %c0_351] : memref<16x32xf32, #tpu.memory_space<vmem>>, vector<16x32xf32>
    tpu.vector_store %arg34[%c0_350, %c0_351], %414 {strides = array<i32>} : memref<16x32xf32, #tpu.memory_space<vmem>>, vector<16x32xf32>,
    %c1_i32 = arith.constant 1 : i32
    %416 = arith.cmpi eq, %arg1, %c1_i32 : i32
    %417 = arith.extui %416 : i1 to i32
    %c0_i32_352 = arith.constant 0 : i32
    %418 = arith.cmpi ne, %417, %c0_i32_352 : i32
    scf.if %418 {
      %c0_353 = arith.constant 0 : index
      %c0_354 = arith.constant 0 : index
      %419 = vector.load %arg33[%c0_353, %c0_354] : memref<16x32xf32, #tpu.memory_space<vmem>>, vector<16x32xf32>
      tpu.vector_store %arg33[%c0_353, %c0_354], %414 {strides = array<i32>} : memref<16x32xf32, #tpu.memory_space<vmem>>, vector<16x32xf32>,
    } else {
    }
    return
  }
  func.func @transform_0(%arg0: i32, %arg1: i32) -> (i32, i32) {
    %c0_i32 = arith.constant 0 : i32
    %c0_i32_0 = arith.constant 0 : i32
    return %arg0, %c0_i32 : i32, i32
  }
  func.func @transform_1(%arg0: i32, %arg1: i32) -> (i32, i32) {
    %c0_i32 = arith.constant 0 : i32
    %c0_i32_0 = arith.constant 0 : i32
    return %arg0, %c0_i32 : i32, i32
  }
  func.func @transform_2(%arg0: i32, %arg1: i32) -> (i32, i32) {
    %c0_i32 = arith.constant 0 : i32
    %c0_i32_0 = arith.constant 0 : i32
    return %arg0, %c0_i32 : i32, i32
  }
  func.func @transform_3(%arg0: i32, %arg1: i32) -> (i32, i32, i32) {
    %c0_i32 = arith.constant 0 : i32
    %c0_i32_0 = arith.constant 0 : i32
    %c0_i32_1 = arith.constant 0 : i32
    return %arg0, %c0_i32, %c0_i32_0 : i32, i32, i32
  }
  func.func @transform_4(%arg0: i32, %arg1: i32) -> (i32, i32, i32) {
    %c0_i32 = arith.constant 0 : i32
    %c0_i32_0 = arith.constant 0 : i32
    %c0_i32_1 = arith.constant 0 : i32
    return %arg0, %c0_i32, %c0_i32_0 : i32, i32, i32
  }
  func.func @transform_5(%arg0: i32, %arg1: i32) -> (i32, i32, i32, i32) {
    %c0_i32 = arith.constant 0 : i32
    %c0_i32_0 = arith.constant 0 : i32
    %c0_i32_1 = arith.constant 0 : i32
    %c0_i32_2 = arith.constant 0 : i32
    return %arg1, %c0_i32, %c0_i32_0, %c0_i32_1 : i32, i32, i32, i32
  }
  func.func @transform_6(%arg0: i32, %arg1: i32) -> (i32, i32, i32, i32) {
    %c0_i32 = arith.constant 0 : i32
    %c0_i32_0 = arith.constant 0 : i32
    %c0_i32_1 = arith.constant 0 : i32
    %c0_i32_2 = arith.constant 0 : i32
    return %arg1, %c0_i32, %c0_i32_0, %c0_i32_1 : i32, i32, i32, i32
  }
  func.func @transform_7(%arg0: i32, %arg1: i32) -> (i32, i32, i32, i32) {
    %c0_i32 = arith.constant 0 : i32
    %c0_i32_0 = arith.constant 0 : i32
    %c0_i32_1 = arith.constant 0 : i32
    %c0_i32_2 = arith.constant 0 : i32
    return %arg1, %c0_i32, %c0_i32_0, %c0_i32_1 : i32, i32, i32, i32
  }
  func.func @transform_8(%arg0: i32, %arg1: i32) -> (i32, i32, i32, i32) {
    %c0_i32 = arith.constant 0 : i32
    %c0_i32_0 = arith.constant 0 : i32
    %c0_i32_1 = arith.constant 0 : i32
    %c0_i32_2 = arith.constant 0 : i32
    return %arg1, %c0_i32, %c0_i32_0, %c0_i32_1 : i32, i32, i32, i32
  }
  func.func @transform_9(%arg0: i32, %arg1: i32) -> (i32, i32, i32, i32) {
    %c0_i32 = arith.constant 0 : i32
    %c0_i32_0 = arith.constant 0 : i32
    %c0_i32_1 = arith.constant 0 : i32
    %c0_i32_2 = arith.constant 0 : i32
    return %arg1, %c0_i32, %c0_i32_0, %c0_i32_1 : i32, i32, i32, i32
  }
  func.func @transform_10(%arg0: i32, %arg1: i32) -> (i32, i32, i32, i32) {
    %c0_i32 = arith.constant 0 : i32
    %c0_i32_0 = arith.constant 0 : i32
    %c0_i32_1 = arith.constant 0 : i32
    %c0_i32_2 = arith.constant 0 : i32
    return %arg1, %c0_i32, %c0_i32_0, %c0_i32_1 : i32, i32, i32, i32
  }
  func.func @transform_11(%arg0: i32, %arg1: i32) -> (i32, i32, i32, i32) {
    %c0_i32 = arith.constant 0 : i32
    %c0_i32_0 = arith.constant 0 : i32
    %c0_i32_1 = arith.constant 0 : i32
    %c0_i32_2 = arith.constant 0 : i32
    return %arg1, %c0_i32, %c0_i32_0, %c0_i32_1 : i32, i32, i32, i32
  }
  func.func @transform_12(%arg0: i32, %arg1: i32) -> (i32, i32, i32) {
    %c0_i32 = arith.constant 0 : i32
    %c0_i32_0 = arith.constant 0 : i32
    %c0_i32_1 = arith.constant 0 : i32
    return %arg1, %c0_i32, %c0_i32_0 : i32, i32, i32
  }
  func.func @transform_13(%arg0: i32, %arg1: i32) -> (i32, i32, i32) {
    %c0_i32 = arith.constant 0 : i32
    %c0_i32_0 = arith.constant 0 : i32
    %c0_i32_1 = arith.constant 0 : i32
    return %arg1, %c0_i32, %c0_i32_0 : i32, i32, i32
  }
  func.func @transform_14(%arg0: i32, %arg1: i32) -> (i32, i32, i32) {
    %c0_i32 = arith.constant 0 : i32
    %c0_i32_0 = arith.constant 0 : i32
    %c0_i32_1 = arith.constant 0 : i32
    return %arg1, %c0_i32, %c0_i32_0 : i32, i32, i32
  }
  func.func @transform_15(%arg0: i32, %arg1: i32) -> (i32, i32, i32, i32) {
    %c0_i32 = arith.constant 0 : i32
    %c0_i32_0 = arith.constant 0 : i32
    %c0_i32_1 = arith.constant 0 : i32
    %c0_i32_2 = arith.constant 0 : i32
    return %arg1, %c0_i32, %c0_i32_0, %c0_i32_1 : i32, i32, i32, i32
  }
  func.func @transform_16(%arg0: i32, %arg1: i32) -> (i32, i32, i32, i32) {
    %c0_i32 = arith.constant 0 : i32
    %c0_i32_0 = arith.constant 0 : i32
    %c0_i32_1 = arith.constant 0 : i32
    %c0_i32_2 = arith.constant 0 : i32
    return %arg1, %c0_i32, %c0_i32_0, %c0_i32_1 : i32, i32, i32, i32
  }
  func.func @transform_17(%arg0: i32, %arg1: i32) -> (i32, i32, i32, i32) {
    %c0_i32 = arith.constant 0 : i32
    %c0_i32_0 = arith.constant 0 : i32
    %c0_i32_1 = arith.constant 0 : i32
    %c0_i32_2 = arith.constant 0 : i32
    return %arg1, %c0_i32, %c0_i32_0, %c0_i32_1 : i32, i32, i32, i32
  }
  func.func @transform_18(%arg0: i32, %arg1: i32) -> (i32, i32, i32, i32) {
    %c0_i32 = arith.constant 0 : i32
    %c0_i32_0 = arith.constant 0 : i32
    %c0_i32_1 = arith.constant 0 : i32
    %c0_i32_2 = arith.constant 0 : i32
    return %arg1, %c0_i32, %c0_i32_0, %c0_i32_1 : i32, i32, i32, i32
  }
  func.func @transform_19(%arg0: i32, %arg1: i32) -> (i32, i32, i32, i32) {
    %c0_i32 = arith.constant 0 : i32
    %c0_i32_0 = arith.constant 0 : i32
    %c0_i32_1 = arith.constant 0 : i32
    %c0_i32_2 = arith.constant 0 : i32
    return %arg1, %c0_i32, %c0_i32_0, %c0_i32_1 : i32, i32, i32, i32
  }
  func.func @transform_20(%arg0: i32, %arg1: i32) -> (i32, i32, i32, i32) {
    %c0_i32 = arith.constant 0 : i32
    %c0_i32_0 = arith.constant 0 : i32
    %c0_i32_1 = arith.constant 0 : i32
    %c0_i32_2 = arith.constant 0 : i32
    return %arg1, %c0_i32, %c0_i32_0, %c0_i32_1 : i32, i32, i32, i32
  }
  func.func @transform_21(%arg0: i32, %arg1: i32) -> (i32, i32, i32, i32) {
    %c0_i32 = arith.constant 0 : i32
    %c0_i32_0 = arith.constant 0 : i32
    %c0_i32_1 = arith.constant 0 : i32
    %c0_i32_2 = arith.constant 0 : i32
    return %arg1, %c0_i32, %c0_i32_0, %c0_i32_1 : i32, i32, i32, i32
  }
  func.func @transform_22(%arg0: i32, %arg1: i32) -> (i32, i32, i32) {
    %c0_i32 = arith.constant 0 : i32
    %c0_i32_0 = arith.constant 0 : i32
    %c0_i32_1 = arith.constant 0 : i32
    return %arg1, %c0_i32, %c0_i32_0 : i32, i32, i32
  }
  func.func @transform_23(%arg0: i32, %arg1: i32) -> (i32, i32, i32) {
    %c0_i32 = arith.constant 0 : i32
    %c0_i32_0 = arith.constant 0 : i32
    %c0_i32_1 = arith.constant 0 : i32
    return %arg1, %c0_i32, %c0_i32_0 : i32, i32, i32
  }
  func.func @transform_24(%arg0: i32, %arg1: i32) -> (i32, i32, i32) {
    %c0_i32 = arith.constant 0 : i32
    %c0_i32_0 = arith.constant 0 : i32
    %c0_i32_1 = arith.constant 0 : i32
    return %arg1, %c0_i32, %c0_i32_0 : i32, i32, i32
  }
  func.func @transform_25(%arg0: i32, %arg1: i32) -> (i32, i32, i32) {
    %c0_i32 = arith.constant 0 : i32
    %c0_i32_0 = arith.constant 0 : i32
    %c0_i32_1 = arith.constant 0 : i32
    return %arg1, %c0_i32, %c0_i32_0 : i32, i32, i32
  }
  func.func @transform_26(%arg0: i32, %arg1: i32) -> (i32, i32, i32) {
    %c0_i32 = arith.constant 0 : i32
    %c0_i32_0 = arith.constant 0 : i32
    %c0_i32_1 = arith.constant 0 : i32
    return %arg1, %c0_i32, %c0_i32_0 : i32, i32, i32
  }
  func.func @transform_27(%arg0: i32, %arg1: i32) -> (i32, i32, i32) {
    %c0_i32 = arith.constant 0 : i32
    %c0_i32_0 = arith.constant 0 : i32
    %c0_i32_1 = arith.constant 0 : i32
    return %arg1, %c0_i32, %c0_i32_0 : i32, i32, i32
  }
  func.func @transform_28(%arg0: i32, %arg1: i32) -> (i32, i32, i32) {
    %c0_i32 = arith.constant 0 : i32
    %c0_i32_0 = arith.constant 0 : i32
    %c0_i32_1 = arith.constant 0 : i32
    return %arg1, %c0_i32, %c0_i32_0 : i32, i32, i32
  }
  func.func @transform_29(%arg0: i32, %arg1: i32) -> (i32, i32, i32) {
    %c0_i32 = arith.constant 0 : i32
    %c0_i32_0 = arith.constant 0 : i32
    %c0_i32_1 = arith.constant 0 : i32
    return %arg1, %c0_i32, %c0_i32_0 : i32, i32, i32
  }
  func.func @transform_30(%arg0: i32, %arg1: i32) -> (i32, i32, i32) {
    %c0_i32 = arith.constant 0 : i32
    %c0_i32_0 = arith.constant 0 : i32
    %c0_i32_1 = arith.constant 0 : i32
    return %arg1, %c0_i32, %c0_i32_0 : i32, i32, i32
  }
  func.func @transform_31(%arg0: i32, %arg1: i32) -> (i32, i32) {
    %c0_i32 = arith.constant 0 : i32
    %c0_i32_0 = arith.constant 0 : i32
    return %arg0, %c0_i32 : i32, i32
  }
}

</mosaic_0001>

<llo_original>
// kernel: tpu_custom_call.1
$region0: #{tpu_custom_call.1}
  #allocation0 [shape = 'u32[]', space=smem, size = 0x4, offset = 0x4, fixed_abs, tag = 'smem constant byte address 0x4 - core index']
  #allocation1 [shape = 'u32[72,128]{1,0:T(1,128)}', space=vmem, size = 0x9000, scoped, tag = 'internal scratch']
  #allocation2 [shape = 'f32[16,32]{1,0:T(8,128)}', space=vmem, size = 0x2000, scoped, tag = 'scratch operand']
  %s0 = inlined_call_operand.smem [shape: u32[32], index: -1, kind: input, shape index: {}]
  %s1 = sld [smem:[%s0]]
  %s2 = scalar_lea.smem %s0, 1
  %s3 = sld [smem:[%s2]]
  %s4 = scalar_lea.smem %s0, 2
  %s5 = sld [smem:[%s4]]
  %s6 = scalar_lea.smem %s0, 3
  %s7 = sld [smem:[%s6]]
  %s8 = scalar_lea.smem %s0, 4
  %s9 = sld [smem:[%s8]]
  %s10 = scalar_lea.smem %s0, 5
  %s11 = sld [smem:[%s10]]
  %s12 = scalar_lea.smem %s0, 6
  %s13 = sld [smem:[%s12]]
  %s14 = scalar_lea.smem %s0, 7
  %s15 = sld [smem:[%s14]]
  %s16 = scalar_lea.smem %s0, 8
  %s17 = sld [smem:[%s16]]
  %s18 = scalar_lea.smem %s0, 9
  %s19 = sld [smem:[%s18]]
  %s20 = scalar_lea.smem %s0, 10
  %s21 = sld [smem:[%s20]]
  %s22 = scalar_lea.smem %s0, 11
  %s23 = sld [smem:[%s22]]
  %s24 = scalar_lea.smem %s0, 12
  %s25 = sld [smem:[%s24]]
  %s26 = scalar_lea.smem %s0, 13
  %s27 = sld [smem:[%s26]]
  %s28 = scalar_lea.smem %s0, 14
  %s29 = sld [smem:[%s28]]
  %s30 = scalar_lea.smem %s0, 15
  %s31 = sld [smem:[%s30]]
  %s32 = scalar_lea.smem %s0, 16
  %s33 = sld [smem:[%s32]]
  %s34 = scalar_lea.smem %s0, 17
  %s35 = sld [smem:[%s34]]
  %s36 = scalar_lea.smem %s0, 18
  %s37 = sld [smem:[%s36]]
  %s38 = scalar_lea.smem %s0, 19
  %s39 = sld [smem:[%s38]]
  %s40 = scalar_lea.smem %s0, 20
  %s41 = sld [smem:[%s40]]
  %s42 = scalar_lea.smem %s0, 21
  %s43 = sld [smem:[%s42]]
  %s44 = scalar_lea.smem %s0, 22
  %s45 = sld [smem:[%s44]]
  %s46 = scalar_lea.smem %s0, 23
  %s47 = sld [smem:[%s46]]
  %s48 = scalar_lea.smem %s0, 24
  %s49 = sld [smem:[%s48]]
  %s50 = scalar_lea.smem %s0, 25
  %s51 = sld [smem:[%s50]]
  %s52 = scalar_lea.smem %s0, 26
  %s53 = sld [smem:[%s52]]
  %s54 = scalar_lea.smem %s0, 27
  %s55 = sld [smem:[%s54]]
  %s56 = scalar_lea.smem %s0, 28
  %s57 = sld [smem:[%s56]]
  %s58 = scalar_lea.smem %s0, 29
  %s59 = sld [smem:[%s58]]
  %s60 = scalar_lea.smem %s0, 30
  %s61 = sld [smem:[%s60]]
  %s62 = scalar_lea.smem %s0, 31
  %s63 = sld [smem:[%s62]]
  %s64 = sld [smem:[#allocation0]]
  $region165: #{tpu_custom_call.1} parent=0
    _
  %s66 = ssub.s32 1, %s64
  %s67 = scalar_select 0, %s66, %s64
  $region1: #{tpu_custom_call.1} parent=0
    #allocation3 [shape = 'u8[8192]{0}', space=vmem, size = 0x2000, scoped, tag = 'output window, operand 0, single buffered']
    #allocation4 [shape = 's32[2]{0}', space=sflag, size = 0x8, scoped, tag = 'scoped memory for tpu_custom_call.1']
    %68 = vsyncpa [#allocation4], 0
    loop: start=0, step=1, limit=4
    $region2: #{tpu_custom_call.1} parent=1 // loop_pre_header
      _
    $region3: #{tpu_custom_call.1} parent=1 // loop_header
      %s70 = sphi 0, %s74
      %p71 = scmp.ge.s32.totalorder %s70, 4
      %s77 = sphi 0, %s89
      %s78 = sphi 0, %s85
      %s79 = sphi 0, %s77
      %s80 = sphi 0, %s78
      %s81 = sphi 0, %s79
      %s82 = sphi 0, %s80
      %s92 = sphi 0, %s94
      %s95 = sphi 0, %s92
      %s96 = sphi 0, %s95
      %s112 = sphi 0, %s96
      %s118 = sphi 0, %s120
      %s121 = sphi 0, %s118
      %s122 = sphi 0, %s121
      %s138 = sphi 0, %s122
      %s144 = sphi 0, %s146
      %s147 = sphi 0, %s144
      %s148 = sphi 0, %s147
      %s164 = sphi 0, %s148
      %s170 = sphi 0, %s172
      %s173 = sphi 0, %s170
      %s174 = sphi 0, %s173
      %s190 = sphi 0, %s174
      %s196 = sphi 0, %s198
      %s199 = sphi 0, %s196
      %s200 = sphi 0, %s199
      %s216 = sphi 0, %s200
      %s222 = sphi 0, %s224
      %s225 = sphi 0, %s222
      %s226 = sphi 0, %s225
      %s242 = sphi 0, %s226
      %s248 = sphi 0, %s250
      %s251 = sphi 0, %s248
      %s252 = sphi 0, %s251
      %s268 = sphi 0, %s252
      %s274 = sphi 0, %s276
      %s277 = sphi 0, %s274
      %s278 = sphi 0, %s277
      %s294 = sphi 0, %s278
      %s300 = sphi 0, %s302
      %s303 = sphi 0, %s300
      %s304 = sphi 0, %s303
      %s320 = sphi 0, %s304
      %s326 = sphi 0, %s328
      %s329 = sphi 0, %s326
      %s330 = sphi 0, %s329
      %s346 = sphi 0, %s330
      %s352 = sphi 0, %s354
      %s355 = sphi 0, %s352
      %s356 = sphi 0, %s355
      %s372 = sphi 0, %s356
      %s378 = sphi 0, %s380
      %s381 = sphi 0, %s378
      %s382 = sphi 0, %s381
      %s398 = sphi 0, %s382
      %s404 = sphi 0, %s406
      %s407 = sphi 0, %s404
      %s408 = sphi 0, %s407
      %s424 = sphi 0, %s408
      %s430 = sphi 0, %s432
      %s433 = sphi 0, %s430
      %s434 = sphi 0, %s433
      %s450 = sphi 0, %s434
      %s456 = sphi 0, %s458
      %s459 = sphi 0, %s456
      %s460 = sphi 0, %s459
      %s476 = sphi 0, %s460
      %s482 = sphi 0, %s484
      %s485 = sphi 0, %s482
      %s486 = sphi 0, %s485
      %s502 = sphi 0, %s486
      %s508 = sphi 0, %s510
      %s511 = sphi 0, %s508
      %s512 = sphi 0, %s511
      %s528 = sphi 0, %s512
      %s534 = sphi 0, %s536
      %s537 = sphi 0, %s534
      %s538 = sphi 0, %s537
      %s554 = sphi 0, %s538
      %s560 = sphi 0, %s562
      %s563 = sphi 0, %s560
      %s564 = sphi 0, %s563
      %s580 = sphi 0, %s564
      %s586 = sphi 0, %s588
      %s589 = sphi 0, %s586
      %s590 = sphi 0, %s589
      %s606 = sphi 0, %s590
      %s612 = sphi 0, %s614
      %s615 = sphi 0, %s612
      %s616 = sphi 0, %s615
      %s632 = sphi 0, %s616
      %s638 = sphi 0, %s640
      %s641 = sphi 0, %s638
      %s642 = sphi 0, %s641
      %s658 = sphi 0, %s642
      %s664 = sphi 0, %s666
      %s667 = sphi 0, %s664
      %s668 = sphi 0, %s667
      %s684 = sphi 0, %s668
      %s690 = sphi 0, %s692
      %s693 = sphi 0, %s690
      %s694 = sphi 0, %s693
      %s710 = sphi 0, %s694
      %s716 = sphi 0, %s718
      %s719 = sphi 0, %s716
      %s720 = sphi 0, %s719
      %s736 = sphi 0, %s720
      %s742 = sphi 0, %s744
      %s745 = sphi 0, %s742
      %s746 = sphi 0, %s745
      %s762 = sphi 0, %s746
      %s768 = sphi 0, %s770
      %s771 = sphi 0, %s768
      %s772 = sphi 0, %s771
      %s788 = sphi 0, %s772
      %s794 = sphi 0, %s796
      %s797 = sphi 0, %s794
      %s798 = sphi 0, %s797
      %s814 = sphi 0, %s798
      %s820 = sphi 0, %s822
      %s823 = sphi 0, %s820
      %s824 = sphi 0, %s823
      %s840 = sphi 0, %s824
      %s846 = sphi 0, %s848
      %s849 = sphi 0, %s846
      %s850 = sphi 0, %s849
      %s866 = sphi 0, %s850
      %s872 = sphi 0, %s874
      %s875 = sphi 0, %s872
      %s876 = sphi 0, %s875
      %s892 = sphi 0, %s876
      %s898 = sphi 0, %s900
      %s901 = sphi 0, %s898
      %s902 = sphi 0, %s901
      %s918 = sphi 0, %s902
    $region4: #{tpu_custom_call.1} parent=1 // loop_header_branch
      %73 = sbr.rel (%p71) target = $region8
    $region5: #{tpu_custom_call.1} parent=1 // loop_body
      %s75 = ssub.s32 %s70, 1
      %s76 = ssub.s32 %s70, 2
      %s83 = sadd.s32 1, %s78
      %p84 = scmp.ge.s32.totalorder %s83, 2
      %s85 = scalar_select %p84, 0, %s83
      %s86 = sadd.s32 1, %s77
      %s87 = scalar_select %p84, %s86, %s77
      %p88 = scmp.ge.s32.totalorder %s87, 1
      %s89 = scalar_select %p88, 0, %s87
      %s90 = ssub.s32 %s77, %s89
      %p91 = scmp.eq.s32.totalorder %s90, 0
      %s93 = sadd.s32 %s92, 1
      %s94 = scalar_select %p91, %s92, %s93
      %p97 = pneg %p91
      %p98 = scmp.eq.s32.totalorder %s70, 1
      %p99 = por %p97, %p98
      %p100 = scmp.ne.s32.totalorder %s92, %s95
      %p101 = scmp.eq.s32.totalorder %s70, 0
      %p102 = por %p100, %p101
      %p103 = scmp.ne.s32.totalorder %s92, %s95
      %p104 = scmp.eq.s32.totalorder %s75, 1
      %p105 = por %p103, %p104
      %p106 = scmp.ne.s32.totalorder %s95, %s96
      %p107 = scmp.eq.s32.totalorder %s75, 0
      %p108 = por %p106, %p107
      %p109 = scmp.ne.s32.totalorder %s95, %s96
      %p110 = scmp.eq.s32.totalorder %s76, 1
      %p111 = por %p109, %p110
      %p113 = scmp.ne.s32.totalorder %s96, %s112
      %p114 = scmp.eq.s32.totalorder %s76, 0
      %p115 = por %p113, %p114
      %s116 = ssub.s32 %s77, %s89
      %p117 = scmp.eq.s32.totalorder %s116, 0
      %s119 = sadd.s32 %s118, 1
      %s120 = scalar_select %p117, %s118, %s119
      %p123 = pneg %p117
      %p124 = scmp.eq.s32.totalorder %s70, 1
      %p125 = por %p123, %p124
      %p126 = scmp.ne.s32.totalorder %s118, %s121
      %p127 = scmp.eq.s32.totalorder %s70, 0
      %p128 = por %p126, %p127
      %p129 = scmp.ne.s32.totalorder %s118, %s121
      %p130 = scmp.eq.s32.totalorder %s75, 1
      %p131 = por %p129, %p130
      %p132 = scmp.ne.s32.totalorder %s121, %s122
      %p133 = scmp.eq.s32.totalorder %s75, 0
      %p134 = por %p132, %p133
      %p135 = scmp.ne.s32.totalorder %s121, %s122
      %p136 = scmp.eq.s32.totalorder %s76, 1
      %p137 = por %p135, %p136
      %p139 = scmp.ne.s32.totalorder %s122, %s138
      %p140 = scmp.eq.s32.totalorder %s76, 0
      %p141 = por %p139, %p140
      %s142 = ssub.s32 %s77, %s89
      %p143 = scmp.eq.s32.totalorder %s142, 0
      %s145 = sadd.s32 %s144, 1
      %s146 = scalar_select %p143, %s144, %s145
      %p149 = pneg %p143
      %p150 = scmp.eq.s32.totalorder %s70, 1
      %p151 = por %p149, %p150
      %p152 = scmp.ne.s32.totalorder %s144, %s147
      %p153 = scmp.eq.s32.totalorder %s70, 0
      %p154 = por %p152, %p153
      %p155 = scmp.ne.s32.totalorder %s144, %s147
      %p156 = scmp.eq.s32.totalorder %s75, 1
      %p157 = por %p155, %p156
      %p158 = scmp.ne.s32.totalorder %s147, %s148
      %p159 = scmp.eq.s32.totalorder %s75, 0
      %p160 = por %p158, %p159
      %p161 = scmp.ne.s32.totalorder %s147, %s148
      %p162 = scmp.eq.s32.totalorder %s76, 1
      %p163 = por %p161, %p162
      %p165 = scmp.ne.s32.totalorder %s148, %s164
      %p166 = scmp.eq.s32.totalorder %s76, 0
      %p167 = por %p165, %p166
      %s168 = ssub.s32 %s77, %s89
      %p169 = scmp.eq.s32.totalorder %s168, 0
      %s171 = sadd.s32 %s170, 1
      %s172 = scalar_select %p169, %s170, %s171
      %p175 = pneg %p169
      %p176 = scmp.eq.s32.totalorder %s70, 1
      %p177 = por %p175, %p176
      %p178 = scmp.ne.s32.totalorder %s170, %s173
      %p179 = scmp.eq.s32.totalorder %s70, 0
      %p180 = por %p178, %p179
      %p181 = scmp.ne.s32.totalorder %s170, %s173
      %p182 = scmp.eq.s32.totalorder %s75, 1
      %p183 = por %p181, %p182
      %p184 = scmp.ne.s32.totalorder %s173, %s174
      %p185 = scmp.eq.s32.totalorder %s75, 0
      %p186 = por %p184, %p185
      %p187 = scmp.ne.s32.totalorder %s173, %s174
      %p188 = scmp.eq.s32.totalorder %s76, 1
      %p189 = por %p187, %p188
      %p191 = scmp.ne.s32.totalorder %s174, %s190
      %p192 = scmp.eq.s32.totalorder %s76, 0
      %p193 = por %p191, %p192
      %s194 = ssub.s32 %s77, %s89
      %p195 = scmp.eq.s32.totalorder %s194, 0
      %s197 = sadd.s32 %s196, 1
      %s198 = scalar_select %p195, %s196, %s197
      %p201 = pneg %p195
      %p202 = scmp.eq.s32.totalorder %s70, 1
      %p203 = por %p201, %p202
      %p204 = scmp.ne.s32.totalorder %s196, %s199
      %p205 = scmp.eq.s32.totalorder %s70, 0
      %p206 = por %p204, %p205
      %p207 = scmp.ne.s32.totalorder %s196, %s199
      %p208 = scmp.eq.s32.totalorder %s75, 1
      %p209 = por %p207, %p208
      %p210 = scmp.ne.s32.totalorder %s199, %s200
      %p211 = scmp.eq.s32.totalorder %s75, 0
      %p212 = por %p210, %p211
      %p213 = scmp.ne.s32.totalorder %s199, %s200
      %p214 = scmp.eq.s32.totalorder %s76, 1
      %p215 = por %p213, %p214
      %p217 = scmp.ne.s32.totalorder %s200, %s216
      %p218 = scmp.eq.s32.totalorder %s76, 0
      %p219 = por %p217, %p218
      %s220 = ssub.s32 %s78, %s85
      %p221 = scmp.eq.s32.totalorder %s220, 0
      %s223 = sadd.s32 %s222, 1
      %s224 = scalar_select %p221, %s222, %s223
      %p227 = pneg %p221
      %p228 = scmp.eq.s32.totalorder %s70, 1
      %p229 = por %p227, %p228
      %p230 = scmp.ne.s32.totalorder %s222, %s225
      %p231 = scmp.eq.s32.totalorder %s70, 0
      %p232 = por %p230, %p231
      %p233 = scmp.ne.s32.totalorder %s222, %s225
      %p234 = scmp.eq.s32.totalorder %s75, 1
      %p235 = por %p233, %p234
      %p236 = scmp.ne.s32.totalorder %s225, %s226
      %p237 = scmp.eq.s32.totalorder %s75, 0
      %p238 = por %p236, %p237
      %p239 = scmp.ne.s32.totalorder %s225, %s226
      %p240 = scmp.eq.s32.totalorder %s76, 1
      %p241 = por %p239, %p240
      %p243 = scmp.ne.s32.totalorder %s226, %s242
      %p244 = scmp.eq.s32.totalorder %s76, 0
      %p245 = por %p243, %p244
      %s246 = ssub.s32 %s78, %s85
      %p247 = scmp.eq.s32.totalorder %s246, 0
      %s249 = sadd.s32 %s248, 1
      %s250 = scalar_select %p247, %s248, %s249
      %p253 = pneg %p247
      %p254 = scmp.eq.s32.totalorder %s70, 1
      %p255 = por %p253, %p254
      %p256 = scmp.ne.s32.totalorder %s248, %s251
      %p257 = scmp.eq.s32.totalorder %s70, 0
      %p258 = por %p256, %p257
      %p259 = scmp.ne.s32.totalorder %s248, %s251
      %p260 = scmp.eq.s32.totalorder %s75, 1
      %p261 = por %p259, %p260
      %p262 = scmp.ne.s32.totalorder %s251, %s252
      %p263 = scmp.eq.s32.totalorder %s75, 0
      %p264 = por %p262, %p263
      %p265 = scmp.ne.s32.totalorder %s251, %s252
      %p266 = scmp.eq.s32.totalorder %s76, 1
      %p267 = por %p265, %p266
      %p269 = scmp.ne.s32.totalorder %s252, %s268
      %p270 = scmp.eq.s32.totalorder %s76, 0
      %p271 = por %p269, %p270
      %s272 = ssub.s32 %s78, %s85
      %p273 = scmp.eq.s32.totalorder %s272, 0
      %s275 = sadd.s32 %s274, 1
      %s276 = scalar_select %p273, %s274, %s275
      %p279 = pneg %p273
      %p280 = scmp.eq.s32.totalorder %s70, 1
      %p281 = por %p279, %p280
      %p282 = scmp.ne.s32.totalorder %s274, %s277
      %p283 = scmp.eq.s32.totalorder %s70, 0
      %p284 = por %p282, %p283
      %p285 = scmp.ne.s32.totalorder %s274, %s277
      %p286 = scmp.eq.s32.totalorder %s75, 1
      %p287 = por %p285, %p286
      %p288 = scmp.ne.s32.totalorder %s277, %s278
      %p289 = scmp.eq.s32.totalorder %s75, 0
      %p290 = por %p288, %p289
      %p291 = scmp.ne.s32.totalorder %s277, %s278
      %p292 = scmp.eq.s32.totalorder %s76, 1
      %p293 = por %p291, %p292
      %p295 = scmp.ne.s32.totalorder %s278, %s294
      %p296 = scmp.eq.s32.totalorder %s76, 0
      %p297 = por %p295, %p296
      %s298 = ssub.s32 %s78, %s85
      %p299 = scmp.eq.s32.totalorder %s298, 0
      %s301 = sadd.s32 %s300, 1
      %s302 = scalar_select %p299, %s300, %s301
      %p305 = pneg %p299
      %p306 = scmp.eq.s32.totalorder %s70, 1
      %p307 = por %p305, %p306
      %p308 = scmp.ne.s32.totalorder %s300, %s303
      %p309 = scmp.eq.s32.totalorder %s70, 0
      %p310 = por %p308, %p309
      %p311 = scmp.ne.s32.totalorder %s300, %s303
      %p312 = scmp.eq.s32.totalorder %s75, 1
      %p313 = por %p311, %p312
      %p314 = scmp.ne.s32.totalorder %s303, %s304
      %p315 = scmp.eq.s32.totalorder %s75, 0
      %p316 = por %p314, %p315
      %p317 = scmp.ne.s32.totalorder %s303, %s304
      %p318 = scmp.eq.s32.totalorder %s76, 1
      %p319 = por %p317, %p318
      %p321 = scmp.ne.s32.totalorder %s304, %s320
      %p322 = scmp.eq.s32.totalorder %s76, 0
      %p323 = por %p321, %p322
      %s324 = ssub.s32 %s78, %s85
      %p325 = scmp.eq.s32.totalorder %s324, 0
      %s327 = sadd.s32 %s326, 1
      %s328 = scalar_select %p325, %s326, %s327
      %p331 = pneg %p325
      %p332 = scmp.eq.s32.totalorder %s70, 1
      %p333 = por %p331, %p332
      %p334 = scmp.ne.s32.totalorder %s326, %s329
      %p335 = scmp.eq.s32.totalorder %s70, 0
      %p336 = por %p334, %p335
      %p337 = scmp.ne.s32.totalorder %s326, %s329
      %p338 = scmp.eq.s32.totalorder %s75, 1
      %p339 = por %p337, %p338
      %p340 = scmp.ne.s32.totalorder %s329, %s330
      %p341 = scmp.eq.s32.totalorder %s75, 0
      %p342 = por %p340, %p341
      %p343 = scmp.ne.s32.totalorder %s329, %s330
      %p344 = scmp.eq.s32.totalorder %s76, 1
      %p345 = por %p343, %p344
      %p347 = scmp.ne.s32.totalorder %s330, %s346
      %p348 = scmp.eq.s32.totalorder %s76, 0
      %p349 = por %p347, %p348
      %s350 = ssub.s32 %s78, %s85
      %p351 = scmp.eq.s32.totalorder %s350, 0
      %s353 = sadd.s32 %s352, 1
      %s354 = scalar_select %p351, %s352, %s353
      %p357 = pneg %p351
      %p358 = scmp.eq.s32.totalorder %s70, 1
      %p359 = por %p357, %p358
      %p360 = scmp.ne.s32.totalorder %s352, %s355
      %p361 = scmp.eq.s32.totalorder %s70, 0
      %p362 = por %p360, %p361
      %p363 = scmp.ne.s32.totalorder %s352, %s355
      %p364 = scmp.eq.s32.totalorder %s75, 1
      %p365 = por %p363, %p364
      %p366 = scmp.ne.s32.totalorder %s355, %s356
      %p367 = scmp.eq.s32.totalorder %s75, 0
      %p368 = por %p366, %p367
      %p369 = scmp.ne.s32.totalorder %s355, %s356
      %p370 = scmp.eq.s32.totalorder %s76, 1
      %p371 = por %p369, %p370
      %p373 = scmp.ne.s32.totalorder %s356, %s372
      %p374 = scmp.eq.s32.totalorder %s76, 0
      %p375 = por %p373, %p374
      %s376 = ssub.s32 %s78, %s85
      %p377 = scmp.eq.s32.totalorder %s376, 0
      %s379 = sadd.s32 %s378, 1
      %s380 = scalar_select %p377, %s378, %s379
      %p383 = pneg %p377
      %p384 = scmp.eq.s32.totalorder %s70, 1
      %p385 = por %p383, %p384
      %p386 = scmp.ne.s32.totalorder %s378, %s381
      %p387 = scmp.eq.s32.totalorder %s70, 0
      %p388 = por %p386, %p387
      %p389 = scmp.ne.s32.totalorder %s378, %s381
      %p390 = scmp.eq.s32.totalorder %s75, 1
      %p391 = por %p389, %p390
      %p392 = scmp.ne.s32.totalorder %s381, %s382
      %p393 = scmp.eq.s32.totalorder %s75, 0
      %p394 = por %p392, %p393
      %p395 = scmp.ne.s32.totalorder %s381, %s382
      %p396 = scmp.eq.s32.totalorder %s76, 1
      %p397 = por %p395, %p396
      %p399 = scmp.ne.s32.totalorder %s382, %s398
      %p400 = scmp.eq.s32.totalorder %s76, 0
      %p401 = por %p399, %p400
      %s402 = ssub.s32 %s78, %s85
      %p403 = scmp.eq.s32.totalorder %s402, 0
      %s405 = sadd.s32 %s404, 1
      %s406 = scalar_select %p403, %s404, %s405
      %p409 = pneg %p403
      %p410 = scmp.eq.s32.totalorder %s70, 1
      %p411 = por %p409, %p410
      %p412 = scmp.ne.s32.totalorder %s404, %s407
      %p413 = scmp.eq.s32.totalorder %s70, 0
      %p414 = por %p412, %p413
      %p415 = scmp.ne.s32.totalorder %s404, %s407
      %p416 = scmp.eq.s32.totalorder %s75, 1
      %p417 = por %p415, %p416
      %p418 = scmp.ne.s32.totalorder %s407, %s408
      %p419 = scmp.eq.s32.totalorder %s75, 0
      %p420 = por %p418, %p419
      %p421 = scmp.ne.s32.totalorder %s407, %s408
      %p422 = scmp.eq.s32.totalorder %s76, 1
      %p423 = por %p421, %p422
      %p425 = scmp.ne.s32.totalorder %s408, %s424
      %p426 = scmp.eq.s32.totalorder %s76, 0
      %p427 = por %p425, %p426
      %s428 = ssub.s32 %s78, %s85
      %p429 = scmp.eq.s32.totalorder %s428, 0
      %s431 = sadd.s32 %s430, 1
      %s432 = scalar_select %p429, %s430, %s431
      %p435 = pneg %p429
      %p436 = scmp.eq.s32.totalorder %s70, 1
      %p437 = por %p435, %p436
      %p438 = scmp.ne.s32.totalorder %s430, %s433
      %p439 = scmp.eq.s32.totalorder %s70, 0
      %p440 = por %p438, %p439
      %p441 = scmp.ne.s32.totalorder %s430, %s433
      %p442 = scmp.eq.s32.totalorder %s75, 1
      %p443 = por %p441, %p442
      %p444 = scmp.ne.s32.totalorder %s433, %s434
      %p445 = scmp.eq.s32.totalorder %s75, 0
      %p446 = por %p444, %p445
      %p447 = scmp.ne.s32.totalorder %s433, %s434
      %p448 = scmp.eq.s32.totalorder %s76, 1
      %p449 = por %p447, %p448
      %p451 = scmp.ne.s32.totalorder %s434, %s450
      %p452 = scmp.eq.s32.totalorder %s76, 0
      %p453 = por %p451, %p452
      %s454 = ssub.s32 %s78, %s85
      %p455 = scmp.eq.s32.totalorder %s454, 0
      %s457 = sadd.s32 %s456, 1
      %s458 = scalar_select %p455, %s456, %s457
      %p461 = pneg %p455
      %p462 = scmp.eq.s32.totalorder %s70, 1
      %p463 = por %p461, %p462
      %p464 = scmp.ne.s32.totalorder %s456, %s459
      %p465 = scmp.eq.s32.totalorder %s70, 0
      %p466 = por %p464, %p465
      %p467 = scmp.ne.s32.totalorder %s456, %s459
      %p468 = scmp.eq.s32.totalorder %s75, 1
      %p469 = por %p467, %p468
      %p470 = scmp.ne.s32.totalorder %s459, %s460
      %p471 = scmp.eq.s32.totalorder %s75, 0
      %p472 = por %p470, %p471
      %p473 = scmp.ne.s32.totalorder %s459, %s460
      %p474 = scmp.eq.s32.totalorder %s76, 1
      %p475 = por %p473, %p474
      %p477 = scmp.ne.s32.totalorder %s460, %s476
      %p478 = scmp.eq.s32.totalorder %s76, 0
      %p479 = por %p477, %p478
      %s480 = ssub.s32 %s78, %s85
      %p481 = scmp.eq.s32.totalorder %s480, 0
      %s483 = sadd.s32 %s482, 1
      %s484 = scalar_select %p481, %s482, %s483
      %p487 = pneg %p481
      %p488 = scmp.eq.s32.totalorder %s70, 1
      %p489 = por %p487, %p488
      %p490 = scmp.ne.s32.totalorder %s482, %s485
      %p491 = scmp.eq.s32.totalorder %s70, 0
      %p492 = por %p490, %p491
      %p493 = scmp.ne.s32.totalorder %s482, %s485
      %p494 = scmp.eq.s32.totalorder %s75, 1
      %p495 = por %p493, %p494
      %p496 = scmp.ne.s32.totalorder %s485, %s486
      %p497 = scmp.eq.s32.totalorder %s75, 0
      %p498 = por %p496, %p497
      %p499 = scmp.ne.s32.totalorder %s485, %s486
      %p500 = scmp.eq.s32.totalorder %s76, 1
      %p501 = por %p499, %p500
      %p503 = scmp.ne.s32.totalorder %s486, %s502
      %p504 = scmp.eq.s32.totalorder %s76, 0
      %p505 = por %p503, %p504
      %s506 = ssub.s32 %s78, %s85
      %p507 = scmp.eq.s32.totalorder %s506, 0
      %s509 = sadd.s32 %s508, 1
      %s510 = scalar_select %p507, %s508, %s509
      %p513 = pneg %p507
      %p514 = scmp.eq.s32.totalorder %s70, 1
      %p515 = por %p513, %p514
      %p516 = scmp.ne.s32.totalorder %s508, %s511
      %p517 = scmp.eq.s32.totalorder %s70, 0
      %p518 = por %p516, %p517
      %p519 = scmp.ne.s32.totalorder %s508, %s511
      %p520 = scmp.eq.s32.totalorder %s75, 1
      %p521 = por %p519, %p520
      %p522 = scmp.ne.s32.totalorder %s511, %s512
      %p523 = scmp.eq.s32.totalorder %s75, 0
      %p524 = por %p522, %p523
      %p525 = scmp.ne.s32.totalorder %s511, %s512
      %p526 = scmp.eq.s32.totalorder %s76, 1
      %p527 = por %p525, %p526
      %p529 = scmp.ne.s32.totalorder %s512, %s528
      %p530 = scmp.eq.s32.totalorder %s76, 0
      %p531 = por %p529, %p530
      %s532 = ssub.s32 %s78, %s85
      %p533 = scmp.eq.s32.totalorder %s532, 0
      %s535 = sadd.s32 %s534, 1
      %s536 = scalar_select %p533, %s534, %s535
      %p539 = pneg %p533
      %p540 = scmp.eq.s32.totalorder %s70, 1
      %p541 = por %p539, %p540
      %p542 = scmp.ne.s32.totalorder %s534, %s537
      %p543 = scmp.eq.s32.totalorder %s70, 0
      %p544 = por %p542, %p543
      %p545 = scmp.ne.s32.totalorder %s534, %s537
      %p546 = scmp.eq.s32.totalorder %s75, 1
      %p547 = por %p545, %p546
      %p548 = scmp.ne.s32.totalorder %s537, %s538
      %p549 = scmp.eq.s32.totalorder %s75, 0
      %p550 = por %p548, %p549
      %p551 = scmp.ne.s32.totalorder %s537, %s538
      %p552 = scmp.eq.s32.totalorder %s76, 1
      %p553 = por %p551, %p552
      %p555 = scmp.ne.s32.totalorder %s538, %s554
      %p556 = scmp.eq.s32.totalorder %s76, 0
      %p557 = por %p555, %p556
      %s558 = ssub.s32 %s78, %s85
      %p559 = scmp.eq.s32.totalorder %s558, 0
      %s561 = sadd.s32 %s560, 1
      %s562 = scalar_select %p559, %s560, %s561
      %p565 = pneg %p559
      %p566 = scmp.eq.s32.totalorder %s70, 1
      %p567 = por %p565, %p566
      %p568 = scmp.ne.s32.totalorder %s560, %s563
      %p569 = scmp.eq.s32.totalorder %s70, 0
      %p570 = por %p568, %p569
      %p571 = scmp.ne.s32.totalorder %s560, %s563
      %p572 = scmp.eq.s32.totalorder %s75, 1
      %p573 = por %p571, %p572
      %p574 = scmp.ne.s32.totalorder %s563, %s564
      %p575 = scmp.eq.s32.totalorder %s75, 0
      %p576 = por %p574, %p575
      %p577 = scmp.ne.s32.totalorder %s563, %s564
      %p578 = scmp.eq.s32.totalorder %s76, 1
      %p579 = por %p577, %p578
      %p581 = scmp.ne.s32.totalorder %s564, %s580
      %p582 = scmp.eq.s32.totalorder %s76, 0
      %p583 = por %p581, %p582
      %s584 = ssub.s32 %s78, %s85
      %p585 = scmp.eq.s32.totalorder %s584, 0
      %s587 = sadd.s32 %s586, 1
      %s588 = scalar_select %p585, %s586, %s587
      %p591 = pneg %p585
      %p592 = scmp.eq.s32.totalorder %s70, 1
      %p593 = por %p591, %p592
      %p594 = scmp.ne.s32.totalorder %s586, %s589
      %p595 = scmp.eq.s32.totalorder %s70, 0
      %p596 = por %p594, %p595
      %p597 = scmp.ne.s32.totalorder %s586, %s589
      %p598 = scmp.eq.s32.totalorder %s75, 1
      %p599 = por %p597, %p598
      %p600 = scmp.ne.s32.totalorder %s589, %s590
      %p601 = scmp.eq.s32.totalorder %s75, 0
      %p602 = por %p600, %p601
      %p603 = scmp.ne.s32.totalorder %s589, %s590
      %p604 = scmp.eq.s32.totalorder %s76, 1
      %p605 = por %p603, %p604
      %p607 = scmp.ne.s32.totalorder %s590, %s606
      %p608 = scmp.eq.s32.totalorder %s76, 0
      %p609 = por %p607, %p608
      %s610 = ssub.s32 %s78, %s85
      %p611 = scmp.eq.s32.totalorder %s610, 0
      %s613 = sadd.s32 %s612, 1
      %s614 = scalar_select %p611, %s612, %s613
      %p617 = pneg %p611
      %p618 = scmp.eq.s32.totalorder %s70, 1
      %p619 = por %p617, %p618
      %p620 = scmp.ne.s32.totalorder %s612, %s615
      %p621 = scmp.eq.s32.totalorder %s70, 0
      %p622 = por %p620, %p621
      %p623 = scmp.ne.s32.totalorder %s612, %s615
      %p624 = scmp.eq.s32.totalorder %s75, 1
      %p625 = por %p623, %p624
      %p626 = scmp.ne.s32.totalorder %s615, %s616
      %p627 = scmp.eq.s32.totalorder %s75, 0
      %p628 = por %p626, %p627
      %p629 = scmp.ne.s32.totalorder %s615, %s616
      %p630 = scmp.eq.s32.totalorder %s76, 1
      %p631 = por %p629, %p630
      %p633 = scmp.ne.s32.totalorder %s616, %s632
      %p634 = scmp.eq.s32.totalorder %s76, 0
      %p635 = por %p633, %p634
      %s636 = ssub.s32 %s78, %s85
      %p637 = scmp.eq.s32.totalorder %s636, 0
      %s639 = sadd.s32 %s638, 1
      %s640 = scalar_select %p637, %s638, %s639
      %p643 = pneg %p637
      %p644 = scmp.eq.s32.totalorder %s70, 1
      %p645 = por %p643, %p644
      %p646 = scmp.ne.s32.totalorder %s638, %s641
      %p647 = scmp.eq.s32.totalorder %s70, 0
      %p648 = por %p646, %p647
      %p649 = scmp.ne.s32.totalorder %s638, %s641
      %p650 = scmp.eq.s32.totalorder %s75, 1
      %p651 = por %p649, %p650
      %p652 = scmp.ne.s32.totalorder %s641, %s642
      %p653 = scmp.eq.s32.totalorder %s75, 0
      %p654 = por %p652, %p653
      %p655 = scmp.ne.s32.totalorder %s641, %s642
      %p656 = scmp.eq.s32.totalorder %s76, 1
      %p657 = por %p655, %p656
      %p659 = scmp.ne.s32.totalorder %s642, %s658
      %p660 = scmp.eq.s32.totalorder %s76, 0
      %p661 = por %p659, %p660
      %s662 = ssub.s32 %s78, %s85
      %p663 = scmp.eq.s32.totalorder %s662, 0
      %s665 = sadd.s32 %s664, 1
      %s666 = scalar_select %p663, %s664, %s665
      %p669 = pneg %p663
      %p670 = scmp.eq.s32.totalorder %s70, 1
      %p671 = por %p669, %p670
      %p672 = scmp.ne.s32.totalorder %s664, %s667
      %p673 = scmp.eq.s32.totalorder %s70, 0
      %p674 = por %p672, %p673
      %p675 = scmp.ne.s32.totalorder %s664, %s667
      %p676 = scmp.eq.s32.totalorder %s75, 1
      %p677 = por %p675, %p676
      %p678 = scmp.ne.s32.totalorder %s667, %s668
      %p679 = scmp.eq.s32.totalorder %s75, 0
      %p680 = por %p678, %p679
      %p681 = scmp.ne.s32.totalorder %s667, %s668
      %p682 = scmp.eq.s32.totalorder %s76, 1
      %p683 = por %p681, %p682
      %p685 = scmp.ne.s32.totalorder %s668, %s684
      %p686 = scmp.eq.s32.totalorder %s76, 0
      %p687 = por %p685, %p686
      %s688 = ssub.s32 %s78, %s85
      %p689 = scmp.eq.s32.totalorder %s688, 0
      %s691 = sadd.s32 %s690, 1
      %s692 = scalar_select %p689, %s690, %s691
      %p695 = pneg %p689
      %p696 = scmp.eq.s32.totalorder %s70, 1
      %p697 = por %p695, %p696
      %p698 = scmp.ne.s32.totalorder %s690, %s693
      %p699 = scmp.eq.s32.totalorder %s70, 0
      %p700 = por %p698, %p699
      %p701 = scmp.ne.s32.totalorder %s690, %s693
      %p702 = scmp.eq.s32.totalorder %s75, 1
      %p703 = por %p701, %p702
      %p704 = scmp.ne.s32.totalorder %s693, %s694
      %p705 = scmp.eq.s32.totalorder %s75, 0
      %p706 = por %p704, %p705
      %p707 = scmp.ne.s32.totalorder %s693, %s694
      %p708 = scmp.eq.s32.totalorder %s76, 1
      %p709 = por %p707, %p708
      %p711 = scmp.ne.s32.totalorder %s694, %s710
      %p712 = scmp.eq.s32.totalorder %s76, 0
      %p713 = por %p711, %p712
      %s714 = ssub.s32 %s78, %s85
      %p715 = scmp.eq.s32.totalorder %s714, 0
      %s717 = sadd.s32 %s716, 1
      %s718 = scalar_select %p715, %s716, %s717
      %p721 = pneg %p715
      %p722 = scmp.eq.s32.totalorder %s70, 1
      %p723 = por %p721, %p722
      %p724 = scmp.ne.s32.totalorder %s716, %s719
      %p725 = scmp.eq.s32.totalorder %s70, 0
      %p726 = por %p724, %p725
      %p727 = scmp.ne.s32.totalorder %s716, %s719
      %p728 = scmp.eq.s32.totalorder %s75, 1
      %p729 = por %p727, %p728
      %p730 = scmp.ne.s32.totalorder %s719, %s720
      %p731 = scmp.eq.s32.totalorder %s75, 0
      %p732 = por %p730, %p731
      %p733 = scmp.ne.s32.totalorder %s719, %s720
      %p734 = scmp.eq.s32.totalorder %s76, 1
      %p735 = por %p733, %p734
      %p737 = scmp.ne.s32.totalorder %s720, %s736
      %p738 = scmp.eq.s32.totalorder %s76, 0
      %p739 = por %p737, %p738
      %s740 = ssub.s32 %s78, %s85
      %p741 = scmp.eq.s32.totalorder %s740, 0
      %s743 = sadd.s32 %s742, 1
      %s744 = scalar_select %p741, %s742, %s743
      %p747 = pneg %p741
      %p748 = scmp.eq.s32.totalorder %s70, 1
      %p749 = por %p747, %p748
      %p750 = scmp.ne.s32.totalorder %s742, %s745
      %p751 = scmp.eq.s32.totalorder %s70, 0
      %p752 = por %p750, %p751
      %p753 = scmp.ne.s32.totalorder %s742, %s745
      %p754 = scmp.eq.s32.totalorder %s75, 1
      %p755 = por %p753, %p754
      %p756 = scmp.ne.s32.totalorder %s745, %s746
      %p757 = scmp.eq.s32.totalorder %s75, 0
      %p758 = por %p756, %p757
      %p759 = scmp.ne.s32.totalorder %s745, %s746
      %p760 = scmp.eq.s32.totalorder %s76, 1
      %p761 = por %p759, %p760
      %p763 = scmp.ne.s32.totalorder %s746, %s762
      %p764 = scmp.eq.s32.totalorder %s76, 0
      %p765 = por %p763, %p764
      %s766 = ssub.s32 %s78, %s85
      %p767 = scmp.eq.s32.totalorder %s766, 0
      %s769 = sadd.s32 %s768, 1
      %s770 = scalar_select %p767, %s768, %s769
      %p773 = pneg %p767
      %p774 = scmp.eq.s32.totalorder %s70, 1
      %p775 = por %p773, %p774
      %p776 = scmp.ne.s32.totalorder %s768, %s771
      %p777 = scmp.eq.s32.totalorder %s70, 0
      %p778 = por %p776, %p777
      %p779 = scmp.ne.s32.totalorder %s768, %s771
      %p780 = scmp.eq.s32.totalorder %s75, 1
      %p781 = por %p779, %p780
      %p782 = scmp.ne.s32.totalorder %s771, %s772
      %p783 = scmp.eq.s32.totalorder %s75, 0
      %p784 = por %p782, %p783
      %p785 = scmp.ne.s32.totalorder %s771, %s772
      %p786 = scmp.eq.s32.totalorder %s76, 1
      %p787 = por %p785, %p786
      %p789 = scmp.ne.s32.totalorder %s772, %s788
      %p790 = scmp.eq.s32.totalorder %s76, 0
      %p791 = por %p789, %p790
      %s792 = ssub.s32 %s78, %s85
      %p793 = scmp.eq.s32.totalorder %s792, 0
      %s795 = sadd.s32 %s794, 1
      %s796 = scalar_select %p793, %s794, %s795
      %p799 = pneg %p793
      %p800 = scmp.eq.s32.totalorder %s70, 1
      %p801 = por %p799, %p800
      %p802 = scmp.ne.s32.totalorder %s794, %s797
      %p803 = scmp.eq.s32.totalorder %s70, 0
      %p804 = por %p802, %p803
      %p805 = scmp.ne.s32.totalorder %s794, %s797
      %p806 = scmp.eq.s32.totalorder %s75, 1
      %p807 = por %p805, %p806
      %p808 = scmp.ne.s32.totalorder %s797, %s798
      %p809 = scmp.eq.s32.totalorder %s75, 0
      %p810 = por %p808, %p809
      %p811 = scmp.ne.s32.totalorder %s797, %s798
      %p812 = scmp.eq.s32.totalorder %s76, 1
      %p813 = por %p811, %p812
      %p815 = scmp.ne.s32.totalorder %s798, %s814
      %p816 = scmp.eq.s32.totalorder %s76, 0
      %p817 = por %p815, %p816
      %s818 = ssub.s32 %s78, %s85
      %p819 = scmp.eq.s32.totalorder %s818, 0
      %s821 = sadd.s32 %s820, 1
      %s822 = scalar_select %p819, %s820, %s821
      %p825 = pneg %p819
      %p826 = scmp.eq.s32.totalorder %s70, 1
      %p827 = por %p825, %p826
      %p828 = scmp.ne.s32.totalorder %s820, %s823
      %p829 = scmp.eq.s32.totalorder %s70, 0
      %p830 = por %p828, %p829
      %p831 = scmp.ne.s32.totalorder %s820, %s823
      %p832 = scmp.eq.s32.totalorder %s75, 1
      %p833 = por %p831, %p832
      %p834 = scmp.ne.s32.totalorder %s823, %s824
      %p835 = scmp.eq.s32.totalorder %s75, 0
      %p836 = por %p834, %p835
      %p837 = scmp.ne.s32.totalorder %s823, %s824
      %p838 = scmp.eq.s32.totalorder %s76, 1
      %p839 = por %p837, %p838
      %p841 = scmp.ne.s32.totalorder %s824, %s840
      %p842 = scmp.eq.s32.totalorder %s76, 0
      %p843 = por %p841, %p842
      %s844 = ssub.s32 %s78, %s85
      %p845 = scmp.eq.s32.totalorder %s844, 0
      %s847 = sadd.s32 %s846, 1
      %s848 = scalar_select %p845, %s846, %s847
      %p851 = pneg %p845
      %p852 = scmp.eq.s32.totalorder %s70, 1
      %p853 = por %p851, %p852
      %p854 = scmp.ne.s32.totalorder %s846, %s849
      %p855 = scmp.eq.s32.totalorder %s70, 0
      %p856 = por %p854, %p855
      %p857 = scmp.ne.s32.totalorder %s846, %s849
      %p858 = scmp.eq.s32.totalorder %s75, 1
      %p859 = por %p857, %p858
      %p860 = scmp.ne.s32.totalorder %s849, %s850
      %p861 = scmp.eq.s32.totalorder %s75, 0
      %p862 = por %p860, %p861
      %p863 = scmp.ne.s32.totalorder %s849, %s850
      %p864 = scmp.eq.s32.totalorder %s76, 1
      %p865 = por %p863, %p864
      %p867 = scmp.ne.s32.totalorder %s850, %s866
      %p868 = scmp.eq.s32.totalorder %s76, 0
      %p869 = por %p867, %p868
      %s870 = ssub.s32 %s78, %s85
      %p871 = scmp.eq.s32.totalorder %s870, 0
      %s873 = sadd.s32 %s872, 1
      %s874 = scalar_select %p871, %s872, %s873
      %p877 = pneg %p871
      %p878 = scmp.eq.s32.totalorder %s70, 1
      %p879 = por %p877, %p878
      %p880 = scmp.ne.s32.totalorder %s872, %s875
      %p881 = scmp.eq.s32.totalorder %s70, 0
      %p882 = por %p880, %p881
      %p883 = scmp.ne.s32.totalorder %s872, %s875
      %p884 = scmp.eq.s32.totalorder %s75, 1
      %p885 = por %p883, %p884
      %p886 = scmp.ne.s32.totalorder %s875, %s876
      %p887 = scmp.eq.s32.totalorder %s75, 0
      %p888 = por %p886, %p887
      %p889 = scmp.ne.s32.totalorder %s875, %s876
      %p890 = scmp.eq.s32.totalorder %s76, 1
      %p891 = por %p889, %p890
      %p893 = scmp.ne.s32.totalorder %s876, %s892
      %p894 = scmp.eq.s32.totalorder %s76, 0
      %p895 = por %p893, %p894
      %s896 = ssub.s32 %s77, %s89
      %p897 = scmp.eq.s32.totalorder %s896, 0
      %s899 = sadd.s32 %s898, 1
      %s900 = scalar_select %p897, %s898, %s899
      %p903 = pneg %p897
      %p904 = scmp.eq.s32.totalorder %s70, 1
      %p905 = por %p903, %p904
      %p906 = scmp.ne.s32.totalorder %s898, %s901
      %p907 = scmp.eq.s32.totalorder %s70, 0
      %p908 = por %p906, %p907
      %p909 = scmp.ne.s32.totalorder %s898, %s901
      %p910 = scmp.eq.s32.totalorder %s75, 1
      %p911 = por %p909, %p910
      %p912 = scmp.ne.s32.totalorder %s901, %s902
      %p913 = scmp.eq.s32.totalorder %s75, 0
      %p914 = por %p912, %p913
      %p915 = scmp.ne.s32.totalorder %s901, %s902
      %p916 = scmp.eq.s32.totalorder %s76, 1
      %p917 = por %p915, %p916
      %p919 = scmp.ne.s32.totalorder %s902, %s918
      %p920 = scmp.eq.s32.totalorder %s76, 0
      %p921 = por %p919, %p920
      %p922 = scmp.le.s32.totalorder 1, %s70
      %p923 = scmp.lt.s32.totalorder %s70, 3
      %p924 = pnand %p922, %p923
      %p925 = pneg %p924
      // Predicated region
      $region9: #{tpu_custom_call.1} parent=5 // pred_check
        _
      $region10: #{tpu_custom_call.1} parent=5 // pred_check_branch
        %927 = sbr.rel (%p924) target = $region12
      $region11: #{tpu_custom_call.1} parent=5 // pred_region
        %s928 = ssub.s32 %s70, 1
        // Predicated region
        $region13: #{tpu_custom_call.1} parent=11 // pred_check
          %p929 = pneg %p108
        $region14: #{tpu_custom_call.1} parent=11 // pred_check_branch
          %931 = sbr.rel (%p929) target = $region16
        $region15: #{tpu_custom_call.1} parent=11 // pred_region
          %s932 = smul.u32 2, %s79
          %p933 = scmp.lt.s32.totalorder %s932, 1
          %s934 = scalar_select %p933, %s932, 1
          %s935 = smul.addr %s934, 8
          %s936 = scalar_lea.vmem %s1, %s935
          %s937 = smul.u32 2, %s79
        $region16: #{tpu_custom_call.1} parent=11 // pred_fallthru
          _
        // Predicated region
        $region17: #{tpu_custom_call.1} parent=11 // pred_check
          %p938 = pneg %p134
        $region18: #{tpu_custom_call.1} parent=11 // pred_check_branch
          %940 = sbr.rel (%p938) target = $region20
        $region19: #{tpu_custom_call.1} parent=11 // pred_region
          %s941 = smul.u32 2, %s79
          %p942 = scmp.lt.s32.totalorder %s941, 1
          %s943 = scalar_select %p942, %s941, 1
          %s944 = smul.addr %s943, 8
          %s945 = scalar_lea.vmem %s3, %s944
          %s946 = smul.u32 2, %s79
        $region20: #{tpu_custom_call.1} parent=11 // pred_fallthru
          _
        // Predicated region
        $region21: #{tpu_custom_call.1} parent=11 // pred_check
          %p947 = pneg %p160
        $region22: #{tpu_custom_call.1} parent=11 // pred_check_branch
          %949 = sbr.rel (%p947) target = $region24
        $region23: #{tpu_custom_call.1} parent=11 // pred_region
          %s950 = smul.u32 2, %s79
          %p951 = scmp.lt.s32.totalorder %s950, 1
          %s952 = scalar_select %p951, %s950, 1
          %s953 = smul.addr %s952, 8
          %s954 = scalar_lea.vmem %s5, %s953
          %s955 = smul.u32 2, %s79
        $region24: #{tpu_custom_call.1} parent=11 // pred_fallthru
          _
        // Predicated region
        $region25: #{tpu_custom_call.1} parent=11 // pred_check
          %p956 = pneg %p186
        $region26: #{tpu_custom_call.1} parent=11 // pred_check_branch
          %958 = sbr.rel (%p956) target = $region28
        $region27: #{tpu_custom_call.1} parent=11 // pred_region
          %p959 = scmp.lt.s32.totalorder %s79, 0
          %s960 = scalar_select %p959, %s79, 0
          %s961 = smul.addr %s960, 2
          %s962 = smul.addr %s961, 8
          %s963 = scalar_lea.vmem %s7, %s962
        $region28: #{tpu_custom_call.1} parent=11 // pred_fallthru
          _
        // Predicated region
        $region29: #{tpu_custom_call.1} parent=11 // pred_check
          %p964 = pneg %p212
        $region30: #{tpu_custom_call.1} parent=11 // pred_check_branch
          %966 = sbr.rel (%p964) target = $region32
        $region31: #{tpu_custom_call.1} parent=11 // pred_region
          %p967 = scmp.lt.s32.totalorder %s79, 0
          %s968 = scalar_select %p967, %s79, 0
          %s969 = smul.addr %s968, 2
          %s970 = smul.addr %s969, 8
          %s971 = scalar_lea.vmem %s9, %s970
        $region32: #{tpu_custom_call.1} parent=11 // pred_fallthru
          _
      $region12: #{tpu_custom_call.1} parent=5 // pred_fallthru
        _
      %p972 = scmp.lt.s32.totalorder %s70, 2
      // Predicated region
      $region33: #{tpu_custom_call.1} parent=5 // pred_check
        %p973 = pneg %p972
      $region34: #{tpu_custom_call.1} parent=5 // pred_check_branch
        %975 = sbr.rel (%p973) target = $region36
      $region35: #{tpu_custom_call.1} parent=5 // pred_region
        // Predicated region
        $region37: #{tpu_custom_call.1} parent=35 // pred_check
          %p976 = pneg %p232
        $region38: #{tpu_custom_call.1} parent=35 // pred_check_branch
          %978 = sbr.rel (%p976) target = $region40
        $region39: #{tpu_custom_call.1} parent=35 // pred_region
          %p979 = scmp.lt.s32.totalorder %s78, 1
          %s980 = scalar_select %p979, %s78, 1
          %s981 = smul.addr %s980, 16
          %s982 = smul.addr %s981, 8
          %s983 = scalar_lea.vmem %s11, %s982
        $region40: #{tpu_custom_call.1} parent=35 // pred_fallthru
          _
        // Predicated region
        $region41: #{tpu_custom_call.1} parent=35 // pred_check
          %p984 = pneg %p258
        $region42: #{tpu_custom_call.1} parent=35 // pred_check_branch
          %986 = sbr.rel (%p984) target = $region44
        $region43: #{tpu_custom_call.1} parent=35 // pred_region
          %p987 = scmp.lt.s32.totalorder %s78, 1
          %s988 = scalar_select %p987, %s78, 1
          %s989 = smul.addr %s988, 4
          %s990 = scalar_lea.vmem %s13, %s989
        $region44: #{tpu_custom_call.1} parent=35 // pred_fallthru
          _
        // Predicated region
        $region45: #{tpu_custom_call.1} parent=35 // pred_check
          %p991 = pneg %p284
        $region46: #{tpu_custom_call.1} parent=35 // pred_check_branch
          %993 = sbr.rel (%p991) target = $region48
        $region47: #{tpu_custom_call.1} parent=35 // pred_region
          %p994 = scmp.lt.s32.totalorder %s78, 1
          %s995 = scalar_select %p994, %s78, 1
          %s996 = smul.addr %s995, 16
          %s997 = smul.addr %s996, 8
          %s998 = scalar_lea.vmem %s15, %s997
        $region48: #{tpu_custom_call.1} parent=35 // pred_fallthru
          _
        // Predicated region
        $region49: #{tpu_custom_call.1} parent=35 // pred_check
          %p999 = pneg %p310
        $region50: #{tpu_custom_call.1} parent=35 // pred_check_branch
          %1001 = sbr.rel (%p999) target = $region52
        $region51: #{tpu_custom_call.1} parent=35 // pred_region
          %p1002 = scmp.lt.s32.totalorder %s78, 1
          %s1003 = scalar_select %p1002, %s78, 1
          %s1004 = smul.addr %s1003, 4
          %s1005 = scalar_lea.vmem %s17, %s1004
        $region52: #{tpu_custom_call.1} parent=35 // pred_fallthru
          _
        // Predicated region
        $region53: #{tpu_custom_call.1} parent=35 // pred_check
          %p1006 = pneg %p336
        $region54: #{tpu_custom_call.1} parent=35 // pred_check_branch
          %1008 = sbr.rel (%p1006) target = $region56
        $region55: #{tpu_custom_call.1} parent=35 // pred_region
          %p1009 = scmp.lt.s32.totalorder %s78, 1
          %s1010 = scalar_select %p1009, %s78, 1
          %s1011 = smul.addr %s1010, 16
          %s1012 = smul.addr %s1011, 8
          %s1013 = scalar_lea.vmem %s19, %s1012
        $region56: #{tpu_custom_call.1} parent=35 // pred_fallthru
          _
        // Predicated region
        $region57: #{tpu_custom_call.1} parent=35 // pred_check
          %p1014 = pneg %p362
        $region58: #{tpu_custom_call.1} parent=35 // pred_check_branch
          %1016 = sbr.rel (%p1014) target = $region60
        $region59: #{tpu_custom_call.1} parent=35 // pred_region
          %p1017 = scmp.lt.s32.totalorder %s78, 1
          %s1018 = scalar_select %p1017, %s78, 1
          %s1019 = smul.addr %s1018, 4
          %s1020 = scalar_lea.vmem %s21, %s1019
        $region60: #{tpu_custom_call.1} parent=35 // pred_fallthru
          _
        // Predicated region
        $region61: #{tpu_custom_call.1} parent=35 // pred_check
          %p1021 = pneg %p388
        $region62: #{tpu_custom_call.1} parent=35 // pred_check_branch
          %1023 = sbr.rel (%p1021) target = $region64
        $region63: #{tpu_custom_call.1} parent=35 // pred_region
          %p1024 = scmp.lt.s32.totalorder %s78, 1
          %s1025 = scalar_select %p1024, %s78, 1
          %s1026 = smul.addr %s1025, 4
          %s1027 = smul.addr %s1026, 8
          %s1028 = scalar_lea.vmem %s23, %s1027
        $region64: #{tpu_custom_call.1} parent=35 // pred_fallthru
          _
        // Predicated region
        $region65: #{tpu_custom_call.1} parent=35 // pred_check
          %p1029 = pneg %p414
        $region66: #{tpu_custom_call.1} parent=35 // pred_check_branch
          %1031 = sbr.rel (%p1029) target = $region68
        $region67: #{tpu_custom_call.1} parent=35 // pred_region
          %p1032 = scmp.lt.s32.totalorder %s78, 1
          %s1033 = scalar_select %p1032, %s78, 1
          %s1034 = scalar_lea.vmem %s25, %s1033
        $region68: #{tpu_custom_call.1} parent=35 // pred_fallthru
          _
        // Predicated region
        $region69: #{tpu_custom_call.1} parent=35 // pred_check
          %p1035 = pneg %p440
        $region70: #{tpu_custom_call.1} parent=35 // pred_check_branch
          %1037 = sbr.rel (%p1035) target = $region72
        $region71: #{tpu_custom_call.1} parent=35 // pred_region
          %p1038 = scmp.lt.s32.totalorder %s78, 1
          %s1039 = scalar_select %p1038, %s78, 1
          %s1040 = scalar_lea.vmem %s27, %s1039
        $region72: #{tpu_custom_call.1} parent=35 // pred_fallthru
          _
        // Predicated region
        $region73: #{tpu_custom_call.1} parent=35 // pred_check
          %p1041 = pneg %p466
        $region74: #{tpu_custom_call.1} parent=35 // pred_check_branch
          %1043 = sbr.rel (%p1041) target = $region76
        $region75: #{tpu_custom_call.1} parent=35 // pred_region
          %p1044 = scmp.lt.s32.totalorder %s78, 1
          %s1045 = scalar_select %p1044, %s78, 1
          %s1046 = scalar_lea.vmem %s29, %s1045
        $region76: #{tpu_custom_call.1} parent=35 // pred_fallthru
          _
        // Predicated region
        $region77: #{tpu_custom_call.1} parent=35 // pred_check
          %p1047 = pneg %p492
        $region78: #{tpu_custom_call.1} parent=35 // pred_check_branch
          %1049 = sbr.rel (%p1047) target = $region80
        $region79: #{tpu_custom_call.1} parent=35 // pred_region
          %p1050 = scmp.lt.s32.totalorder %s78, 1
          %s1051 = scalar_select %p1050, %s78, 1
          %s1052 = smul.addr %s1051, 16
          %s1053 = smul.addr %s1052, 8
          %s1054 = scalar_lea.vmem %s31, %s1053
        $region80: #{tpu_custom_call.1} parent=35 // pred_fallthru
          _
        // Predicated region
        $region81: #{tpu_custom_call.1} parent=35 // pred_check
          %p1055 = pneg %p518
        $region82: #{tpu_custom_call.1} parent=35 // pred_check_branch
          %1057 = sbr.rel (%p1055) target = $region84
        $region83: #{tpu_custom_call.1} parent=35 // pred_region
          %p1058 = scmp.lt.s32.totalorder %s78, 1
          %s1059 = scalar_select %p1058, %s78, 1
          %s1060 = smul.addr %s1059, 4
          %s1061 = scalar_lea.vmem %s33, %s1060
        $region84: #{tpu_custom_call.1} parent=35 // pred_fallthru
          _
        // Predicated region
        $region85: #{tpu_custom_call.1} parent=35 // pred_check
          %p1062 = pneg %p544
        $region86: #{tpu_custom_call.1} parent=35 // pred_check_branch
          %1064 = sbr.rel (%p1062) target = $region88
        $region87: #{tpu_custom_call.1} parent=35 // pred_region
          %p1065 = scmp.lt.s32.totalorder %s78, 1
          %s1066 = scalar_select %p1065, %s78, 1
          %s1067 = smul.addr %s1066, 16
          %s1068 = smul.addr %s1067, 8
          %s1069 = scalar_lea.vmem %s35, %s1068
        $region88: #{tpu_custom_call.1} parent=35 // pred_fallthru
          _
        // Predicated region
        $region89: #{tpu_custom_call.1} parent=35 // pred_check
          %p1070 = pneg %p570
        $region90: #{tpu_custom_call.1} parent=35 // pred_check_branch
          %1072 = sbr.rel (%p1070) target = $region92
        $region91: #{tpu_custom_call.1} parent=35 // pred_region
          %p1073 = scmp.lt.s32.totalorder %s78, 1
          %s1074 = scalar_select %p1073, %s78, 1
          %s1075 = smul.addr %s1074, 4
          %s1076 = scalar_lea.vmem %s37, %s1075
        $region92: #{tpu_custom_call.1} parent=35 // pred_fallthru
          _
        // Predicated region
        $region93: #{tpu_custom_call.1} parent=35 // pred_check
          %p1077 = pneg %p596
        $region94: #{tpu_custom_call.1} parent=35 // pred_check_branch
          %1079 = sbr.rel (%p1077) target = $region96
        $region95: #{tpu_custom_call.1} parent=35 // pred_region
          %p1080 = scmp.lt.s32.totalorder %s78, 1
          %s1081 = scalar_select %p1080, %s78, 1
          %s1082 = smul.addr %s1081, 16
          %s1083 = smul.addr %s1082, 8
          %s1084 = scalar_lea.vmem %s39, %s1083
        $region96: #{tpu_custom_call.1} parent=35 // pred_fallthru
          _
        // Predicated region
        $region97: #{tpu_custom_call.1} parent=35 // pred_check
          %p1085 = pneg %p622
        $region98: #{tpu_custom_call.1} parent=35 // pred_check_branch
          %1087 = sbr.rel (%p1085) target = $region100
        $region99: #{tpu_custom_call.1} parent=35 // pred_region
          %p1088 = scmp.lt.s32.totalorder %s78, 1
          %s1089 = scalar_select %p1088, %s78, 1
          %s1090 = smul.addr %s1089, 4
          %s1091 = scalar_lea.vmem %s41, %s1090
        $region100: #{tpu_custom_call.1} parent=35 // pred_fallthru
          _
        // Predicated region
        $region101: #{tpu_custom_call.1} parent=35 // pred_check
          %p1092 = pneg %p648
        $region102: #{tpu_custom_call.1} parent=35 // pred_check_branch
          %1094 = sbr.rel (%p1092) target = $region104
        $region103: #{tpu_custom_call.1} parent=35 // pred_region
          %p1095 = scmp.lt.s32.totalorder %s78, 1
          %s1096 = scalar_select %p1095, %s78, 1
          %s1097 = smul.addr %s1096, 4
          %s1098 = smul.addr %s1097, 8
          %s1099 = scalar_lea.vmem %s43, %s1098
        $region104: #{tpu_custom_call.1} parent=35 // pred_fallthru
          _
        // Predicated region
        $region105: #{tpu_custom_call.1} parent=35 // pred_check
          %p1100 = pneg %p674
        $region106: #{tpu_custom_call.1} parent=35 // pred_check_branch
          %1102 = sbr.rel (%p1100) target = $region108
        $region107: #{tpu_custom_call.1} parent=35 // pred_region
          %p1103 = scmp.lt.s32.totalorder %s78, 1
          %s1104 = scalar_select %p1103, %s78, 1
          %s1105 = scalar_lea.vmem %s45, %s1104
        $region108: #{tpu_custom_call.1} parent=35 // pred_fallthru
          _
        // Predicated region
        $region109: #{tpu_custom_call.1} parent=35 // pred_check
          %p1106 = pneg %p700
        $region110: #{tpu_custom_call.1} parent=35 // pred_check_branch
          %1108 = sbr.rel (%p1106) target = $region112
        $region111: #{tpu_custom_call.1} parent=35 // pred_region
          %p1109 = scmp.lt.s32.totalorder %s78, 1
          %s1110 = scalar_select %p1109, %s78, 1
          %s1111 = scalar_lea.vmem %s47, %s1110
        $region112: #{tpu_custom_call.1} parent=35 // pred_fallthru
          _
        // Predicated region
        $region113: #{tpu_custom_call.1} parent=35 // pred_check
          %p1112 = pneg %p726
        $region114: #{tpu_custom_call.1} parent=35 // pred_check_branch
          %1114 = sbr.rel (%p1112) target = $region116
        $region115: #{tpu_custom_call.1} parent=35 // pred_region
          %p1115 = scmp.lt.s32.totalorder %s78, 1
          %s1116 = scalar_select %p1115, %s78, 1
          %s1117 = scalar_lea.vmem %s49, %s1116
        $region116: #{tpu_custom_call.1} parent=35 // pred_fallthru
          _
        // Predicated region
        $region117: #{tpu_custom_call.1} parent=35 // pred_check
          %p1118 = pneg %p752
        $region118: #{tpu_custom_call.1} parent=35 // pred_check_branch
          %1120 = sbr.rel (%p1118) target = $region120
        $region119: #{tpu_custom_call.1} parent=35 // pred_region
          %p1121 = scmp.lt.s32.totalorder %s78, 1
          %s1122 = scalar_select %p1121, %s78, 1
          %s1123 = smul.addr %s1122, 4
          %s1124 = smul.addr %s1123, 8
          %s1125 = scalar_lea.vmem %s51, %s1124
        $region120: #{tpu_custom_call.1} parent=35 // pred_fallthru
          _
        // Predicated region
        $region121: #{tpu_custom_call.1} parent=35 // pred_check
          %p1126 = pneg %p778
        $region122: #{tpu_custom_call.1} parent=35 // pred_check_branch
          %1128 = sbr.rel (%p1126) target = $region124
        $region123: #{tpu_custom_call.1} parent=35 // pred_region
          %p1129 = scmp.lt.s32.totalorder %s78, 1
          %s1130 = scalar_select %p1129, %s78, 1
          %s1131 = scalar_lea.vmem %s53, %s1130
        $region124: #{tpu_custom_call.1} parent=35 // pred_fallthru
          _
        // Predicated region
        $region125: #{tpu_custom_call.1} parent=35 // pred_check
          %p1132 = pneg %p804
        $region126: #{tpu_custom_call.1} parent=35 // pred_check_branch
          %1134 = sbr.rel (%p1132) target = $region128
        $region127: #{tpu_custom_call.1} parent=35 // pred_region
          %p1135 = scmp.lt.s32.totalorder %s78, 1
          %s1136 = scalar_select %p1135, %s78, 1
          %s1137 = smul.addr %s1136, 8
          %s1138 = smul.addr %s1137, 8
          %s1139 = scalar_lea.vmem %s55, %s1138
        $region128: #{tpu_custom_call.1} parent=35 // pred_fallthru
          _
        // Predicated region
        $region129: #{tpu_custom_call.1} parent=35 // pred_check
          %p1140 = pneg %p830
        $region130: #{tpu_custom_call.1} parent=35 // pred_check_branch
          %1142 = sbr.rel (%p1140) target = $region132
        $region131: #{tpu_custom_call.1} parent=35 // pred_region
          %p1143 = scmp.lt.s32.totalorder %s78, 1
          %s1144 = scalar_select %p1143, %s78, 1
          %s1145 = scalar_lea.vmem %s57, %s1144
        $region132: #{tpu_custom_call.1} parent=35 // pred_fallthru
          _
        // Predicated region
        $region133: #{tpu_custom_call.1} parent=35 // pred_check
          %p1146 = pneg %p856
        $region134: #{tpu_custom_call.1} parent=35 // pred_check_branch
          %1148 = sbr.rel (%p1146) target = $region136
        $region135: #{tpu_custom_call.1} parent=35 // pred_region
          %p1149 = scmp.lt.s32.totalorder %s78, 1
          %s1150 = scalar_select %p1149, %s78, 1
          %s1151 = scalar_lea.vmem %s59, %s1150
        $region136: #{tpu_custom_call.1} parent=35 // pred_fallthru
          _
        // Predicated region
        $region137: #{tpu_custom_call.1} parent=35 // pred_check
          %p1152 = pneg %p882
        $region138: #{tpu_custom_call.1} parent=35 // pred_check_branch
          %1154 = sbr.rel (%p1152) target = $region140
        $region139: #{tpu_custom_call.1} parent=35 // pred_region
          %p1155 = scmp.lt.s32.totalorder %s78, 1
          %s1156 = scalar_select %p1155, %s78, 1
          %s1157 = scalar_lea.vmem %s61, %s1156
        $region140: #{tpu_custom_call.1} parent=35 // pred_fallthru
          _
      $region36: #{tpu_custom_call.1} parent=5 // pred_fallthru
        _
      %p1158 = scmp.le.s32.totalorder 1, %s70
      %p1159 = scmp.lt.s32.totalorder %s70, 3
      %p1160 = pnand %p1158, %p1159
      %p1161 = pneg %p1160
      // Predicated region
      $region141: #{tpu_custom_call.1} parent=5 // pred_check
        _
      $region142: #{tpu_custom_call.1} parent=5 // pred_check_branch
        %1163 = sbr.rel (%p1160) target = $region144
      $region143: #{tpu_custom_call.1} parent=5 // pred_region
        %s1164 = ssub.s32 %s70, 1
        %s1165 = smul.u32 2, %s79
        %p1166 = scmp.lt.s32.totalorder %s1165, 1
        %s1167 = scalar_select %p1166, %s1165, 1
        %s1168 = smul.addr %s1167, 8
        %s1169 = scalar_lea.vmem %s1, %s1168
        %p1170 = pneg %p108
        %p1171 = pneg %p105
        %s1172 = smul.u32 2, %s79
        %p1173 = scmp.lt.s32.totalorder %s1172, 1
        %s1174 = scalar_select %p1173, %s1172, 1
        %s1175 = smul.addr %s1174, 8
        %s1176 = scalar_lea.vmem %s3, %s1175
        %p1177 = pneg %p134
        %p1178 = pneg %p131
        %s1179 = smul.u32 2, %s79
        %p1180 = scmp.lt.s32.totalorder %s1179, 1
        %s1181 = scalar_select %p1180, %s1179, 1
        %s1182 = smul.addr %s1181, 8
        %s1183 = scalar_lea.vmem %s5, %s1182
        %p1184 = pneg %p160
        %p1185 = pneg %p157
        %p1186 = scmp.lt.s32.totalorder %s79, 0
        %s1187 = scalar_select %p1186, %s79, 0
        %s1188 = smul.addr %s1187, 2
        %s1189 = smul.addr %s1188, 8
        %s1190 = scalar_lea.vmem %s7, %s1189
        %p1191 = pneg %p186
        %p1192 = pneg %p183
        %p1193 = scmp.lt.s32.totalorder %s79, 0
        %s1194 = scalar_select %p1193, %s79, 0
        %s1195 = smul.addr %s1194, 2
        %s1196 = smul.addr %s1195, 8
        %s1197 = scalar_lea.vmem %s9, %s1196
        %p1198 = pneg %p212
        %p1199 = pneg %p209
        %p1200 = scmp.lt.s32.totalorder %s80, 1
        %s1201 = scalar_select %p1200, %s80, 1
        %s1202 = smul.addr %s1201, 16
        %s1203 = smul.addr %s1202, 8
        %s1204 = scalar_lea.vmem %s11, %s1203
        %p1205 = pneg %p238
        %p1206 = pneg %p235
        %p1207 = scmp.lt.s32.totalorder %s80, 1
        %s1208 = scalar_select %p1207, %s80, 1
        %s1209 = smul.addr %s1208, 4
        %s1210 = scalar_lea.vmem %s13, %s1209
        %p1211 = pneg %p264
        %p1212 = pneg %p261
        %p1213 = scmp.lt.s32.totalorder %s80, 1
        %s1214 = scalar_select %p1213, %s80, 1
        %s1215 = smul.addr %s1214, 16
        %s1216 = smul.addr %s1215, 8
        %s1217 = scalar_lea.vmem %s15, %s1216
        %p1218 = pneg %p290
        %p1219 = pneg %p287
        %p1220 = scmp.lt.s32.totalorder %s80, 1
        %s1221 = scalar_select %p1220, %s80, 1
        %s1222 = smul.addr %s1221, 4
        %s1223 = scalar_lea.vmem %s17, %s1222
        %p1224 = pneg %p316
        %p1225 = pneg %p313
        %p1226 = scmp.lt.s32.totalorder %s80, 1
        %s1227 = scalar_select %p1226, %s80, 1
        %s1228 = smul.addr %s1227, 16
        %s1229 = smul.addr %s1228, 8
        %s1230 = scalar_lea.vmem %s19, %s1229
        %p1231 = pneg %p342
        %p1232 = pneg %p339
        %p1233 = scmp.lt.s32.totalorder %s80, 1
        %s1234 = scalar_select %p1233, %s80, 1
        %s1235 = smul.addr %s1234, 4
        %s1236 = scalar_lea.vmem %s21, %s1235
        %p1237 = pneg %p368
        %p1238 = pneg %p365
        %p1239 = scmp.lt.s32.totalorder %s80, 1
        %s1240 = scalar_select %p1239, %s80, 1
        %s1241 = smul.addr %s1240, 4
        %s1242 = smul.addr %s1241, 8
        %s1243 = scalar_lea.vmem %s23, %s1242
        %p1244 = pneg %p394
        %p1245 = pneg %p391
        %p1246 = scmp.lt.s32.totalorder %s80, 1
        %s1247 = scalar_select %p1246, %s80, 1
        %s1248 = scalar_lea.vmem %s25, %s1247
        %p1249 = pneg %p420
        %p1250 = pneg %p417
        %p1251 = scmp.lt.s32.totalorder %s80, 1
        %s1252 = scalar_select %p1251, %s80, 1
        %s1253 = scalar_lea.vmem %s27, %s1252
        %p1254 = pneg %p446
        %p1255 = pneg %p443
        %p1256 = scmp.lt.s32.totalorder %s80, 1
        %s1257 = scalar_select %p1256, %s80, 1
        %s1258 = scalar_lea.vmem %s29, %s1257
        %p1259 = pneg %p472
        %p1260 = pneg %p469
        %p1261 = scmp.lt.s32.totalorder %s80, 1
        %s1262 = scalar_select %p1261, %s80, 1
        %s1263 = smul.addr %s1262, 16
        %s1264 = smul.addr %s1263, 8
        %s1265 = scalar_lea.vmem %s31, %s1264
        %p1266 = pneg %p498
        %p1267 = pneg %p495
        %p1268 = scmp.lt.s32.totalorder %s80, 1
        %s1269 = scalar_select %p1268, %s80, 1
        %s1270 = smul.addr %s1269, 4
        %s1271 = scalar_lea.vmem %s33, %s1270
        %p1272 = pneg %p524
        %p1273 = pneg %p521
        %p1274 = scmp.lt.s32.totalorder %s80, 1
        %s1275 = scalar_select %p1274, %s80, 1
        %s1276 = smul.addr %s1275, 16
        %s1277 = smul.addr %s1276, 8
        %s1278 = scalar_lea.vmem %s35, %s1277
        %p1279 = pneg %p550
        %p1280 = pneg %p547
        %p1281 = scmp.lt.s32.totalorder %s80, 1
        %s1282 = scalar_select %p1281, %s80, 1
        %s1283 = smul.addr %s1282, 4
        %s1284 = scalar_lea.vmem %s37, %s1283
        %p1285 = pneg %p576
        %p1286 = pneg %p573
        %p1287 = scmp.lt.s32.totalorder %s80, 1
        %s1288 = scalar_select %p1287, %s80, 1
        %s1289 = smul.addr %s1288, 16
        %s1290 = smul.addr %s1289, 8
        %s1291 = scalar_lea.vmem %s39, %s1290
        %p1292 = pneg %p602
        %p1293 = pneg %p599
        %p1294 = scmp.lt.s32.totalorder %s80, 1
        %s1295 = scalar_select %p1294, %s80, 1
        %s1296 = smul.addr %s1295, 4
        %s1297 = scalar_lea.vmem %s41, %s1296
        %p1298 = pneg %p628
        %p1299 = pneg %p625
        %p1300 = scmp.lt.s32.totalorder %s80, 1
        %s1301 = scalar_select %p1300, %s80, 1
        %s1302 = smul.addr %s1301, 4
        %s1303 = smul.addr %s1302, 8
        %s1304 = scalar_lea.vmem %s43, %s1303
        %p1305 = pneg %p654
        %p1306 = pneg %p651
        %p1307 = scmp.lt.s32.totalorder %s80, 1
        %s1308 = scalar_select %p1307, %s80, 1
        %s1309 = scalar_lea.vmem %s45, %s1308
        %p1310 = pneg %p680
        %p1311 = pneg %p677
        %p1312 = scmp.lt.s32.totalorder %s80, 1
        %s1313 = scalar_select %p1312, %s80, 1
        %s1314 = scalar_lea.vmem %s47, %s1313
        %p1315 = pneg %p706
        %p1316 = pneg %p703
        %p1317 = scmp.lt.s32.totalorder %s80, 1
        %s1318 = scalar_select %p1317, %s80, 1
        %s1319 = scalar_lea.vmem %s49, %s1318
        %p1320 = pneg %p732
        %p1321 = pneg %p729
        %p1322 = scmp.lt.s32.totalorder %s80, 1
        %s1323 = scalar_select %p1322, %s80, 1
        %s1324 = smul.addr %s1323, 4
        %s1325 = smul.addr %s1324, 8
        %s1326 = scalar_lea.vmem %s51, %s1325
        %p1327 = pneg %p758
        %p1328 = pneg %p755
        %p1329 = scmp.lt.s32.totalorder %s80, 1
        %s1330 = scalar_select %p1329, %s80, 1
        %s1331 = scalar_lea.vmem %s53, %s1330
        %p1332 = pneg %p784
        %p1333 = pneg %p781
        %p1334 = scmp.lt.s32.totalorder %s80, 1
        %s1335 = scalar_select %p1334, %s80, 1
        %s1336 = smul.addr %s1335, 8
        %s1337 = smul.addr %s1336, 8
        %s1338 = scalar_lea.vmem %s55, %s1337
        %p1339 = pneg %p810
        %p1340 = pneg %p807
        %p1341 = scmp.lt.s32.totalorder %s80, 1
        %s1342 = scalar_select %p1341, %s80, 1
        %s1343 = scalar_lea.vmem %s57, %s1342
        %p1344 = pneg %p836
        %p1345 = pneg %p833
        %p1346 = scmp.lt.s32.totalorder %s80, 1
        %s1347 = scalar_select %p1346, %s80, 1
        %s1348 = scalar_lea.vmem %s59, %s1347
        %p1349 = pneg %p862
        %p1350 = pneg %p859
        %p1351 = scmp.lt.s32.totalorder %s80, 1
        %s1352 = scalar_select %p1351, %s80, 1
        %s1353 = scalar_lea.vmem %s61, %s1352
        %p1354 = pneg %p888
        %p1355 = pneg %p885
        %p1356 = pneg %p914
        %p1357 = pneg %p911
        %s1358 = smul.u32 2, %s79
        %p1359 = scmp.lt.s32.totalorder %s1358, 1
        %s1360 = scalar_select %p1359, %s1358, 1
        %s1361 = smul.addr %s1360, 8
        %s1362 = scalar_lea.vmem %s1, %s1361
        %s1363 = smul.u32 2, %s79
        %s1364 = smul.u32 2, %s79
        %p1365 = scmp.lt.s32.totalorder %s1364, 1
        %s1366 = scalar_select %p1365, %s1364, 1
        %s1367 = smul.addr %s1366, 8
        %s1368 = scalar_lea.vmem %s3, %s1367
        %s1369 = smul.u32 2, %s79
        %s1370 = smul.u32 2, %s79
        %p1371 = scmp.lt.s32.totalorder %s1370, 1
        %s1372 = scalar_select %p1371, %s1370, 1
        %s1373 = smul.addr %s1372, 8
        %s1374 = scalar_lea.vmem %s5, %s1373
        %s1375 = smul.u32 2, %s79
        %p1376 = scmp.lt.s32.totalorder %s79, 0
        %s1377 = scalar_select %p1376, %s79, 0
        %s1378 = smul.addr %s1377, 2
        %s1379 = smul.addr %s1378, 8
        %s1380 = scalar_lea.vmem %s7, %s1379
        %p1381 = scmp.lt.s32.totalorder %s79, 0
        %s1382 = scalar_select %p1381, %s79, 0
        %s1383 = smul.addr %s1382, 2
        %s1384 = smul.addr %s1383, 8
        %s1385 = scalar_lea.vmem %s9, %s1384
        %p1386 = scmp.lt.s32.totalorder %s80, 1
        %s1387 = scalar_select %p1386, %s80, 1
        %s1388 = smul.addr %s1387, 16
        %s1389 = smul.addr %s1388, 8
        %s1390 = scalar_lea.vmem %s11, %s1389
        %p1391 = scmp.lt.s32.totalorder %s80, 1
        %s1392 = scalar_select %p1391, %s80, 1
        %s1393 = smul.addr %s1392, 4
        %s1394 = scalar_lea.vmem %s13, %s1393
        %p1395 = scmp.lt.s32.totalorder %s80, 1
        %s1396 = scalar_select %p1395, %s80, 1
        %s1397 = smul.addr %s1396, 16
        %s1398 = smul.addr %s1397, 8
        %s1399 = scalar_lea.vmem %s15, %s1398
        %p1400 = scmp.lt.s32.totalorder %s80, 1
        %s1401 = scalar_select %p1400, %s80, 1
        %s1402 = smul.addr %s1401, 4
        %s1403 = scalar_lea.vmem %s17, %s1402
        %p1404 = scmp.lt.s32.totalorder %s80, 1
        %s1405 = scalar_select %p1404, %s80, 1
        %s1406 = smul.addr %s1405, 16
        %s1407 = smul.addr %s1406, 8
        %s1408 = scalar_lea.vmem %s19, %s1407
        %p1409 = scmp.lt.s32.totalorder %s80, 1
        %s1410 = scalar_select %p1409, %s80, 1
        %s1411 = smul.addr %s1410, 4
        %s1412 = scalar_lea.vmem %s21, %s1411
        %p1413 = scmp.lt.s32.totalorder %s80, 1
        %s1414 = scalar_select %p1413, %s80, 1
        %s1415 = smul.addr %s1414, 4
        %s1416 = smul.addr %s1415, 8
        %s1417 = scalar_lea.vmem %s23, %s1416
        %p1418 = scmp.lt.s32.totalorder %s80, 1
        %s1419 = scalar_select %p1418, %s80, 1
        %s1420 = scalar_lea.vmem %s25, %s1419
        %p1421 = scmp.lt.s32.totalorder %s80, 1
        %s1422 = scalar_select %p1421, %s80, 1
        %s1423 = scalar_lea.vmem %s27, %s1422
        %p1424 = scmp.lt.s32.totalorder %s80, 1
        %s1425 = scalar_select %p1424, %s80, 1
        %s1426 = scalar_lea.vmem %s29, %s1425
        %p1427 = scmp.lt.s32.totalorder %s80, 1
        %s1428 = scalar_select %p1427, %s80, 1
        %s1429 = smul.addr %s1428, 16
        %s1430 = smul.addr %s1429, 8
        %s1431 = scalar_lea.vmem %s31, %s1430
        %p1432 = scmp.lt.s32.totalorder %s80, 1
        %s1433 = scalar_select %p1432, %s80, 1
        %s1434 = smul.addr %s1433, 4
        %s1435 = scalar_lea.vmem %s33, %s1434
        %p1436 = scmp.lt.s32.totalorder %s80, 1
        %s1437 = scalar_select %p1436, %s80, 1
        %s1438 = smul.addr %s1437, 16
        %s1439 = smul.addr %s1438, 8
        %s1440 = scalar_lea.vmem %s35, %s1439
        %p1441 = scmp.lt.s32.totalorder %s80, 1
        %s1442 = scalar_select %p1441, %s80, 1
        %s1443 = smul.addr %s1442, 4
        %s1444 = scalar_lea.vmem %s37, %s1443
        %p1445 = scmp.lt.s32.totalorder %s80, 1
        %s1446 = scalar_select %p1445, %s80, 1
        %s1447 = smul.addr %s1446, 16
        %s1448 = smul.addr %s1447, 8
        %s1449 = scalar_lea.vmem %s39, %s1448
        %p1450 = scmp.lt.s32.totalorder %s80, 1
        %s1451 = scalar_select %p1450, %s80, 1
        %s1452 = smul.addr %s1451, 4
        %s1453 = scalar_lea.vmem %s41, %s1452
        %p1454 = scmp.lt.s32.totalorder %s80, 1
        %s1455 = scalar_select %p1454, %s80, 1
        %s1456 = smul.addr %s1455, 4
        %s1457 = smul.addr %s1456, 8
        %s1458 = scalar_lea.vmem %s43, %s1457
        %p1459 = scmp.lt.s32.totalorder %s80, 1
        %s1460 = scalar_select %p1459, %s80, 1
        %s1461 = scalar_lea.vmem %s45, %s1460
        %p1462 = scmp.lt.s32.totalorder %s80, 1
        %s1463 = scalar_select %p1462, %s80, 1
        %s1464 = scalar_lea.vmem %s47, %s1463
        %p1465 = scmp.lt.s32.totalorder %s80, 1
        %s1466 = scalar_select %p1465, %s80, 1
        %s1467 = scalar_lea.vmem %s49, %s1466
        %p1468 = scmp.lt.s32.totalorder %s80, 1
        %s1469 = scalar_select %p1468, %s80, 1
        %s1470 = smul.addr %s1469, 4
        %s1471 = smul.addr %s1470, 8
        %s1472 = scalar_lea.vmem %s51, %s1471
        %p1473 = scmp.lt.s32.totalorder %s80, 1
        %s1474 = scalar_select %p1473, %s80, 1
        %s1475 = scalar_lea.vmem %s53, %s1474
        %p1476 = scmp.lt.s32.totalorder %s80, 1
        %s1477 = scalar_select %p1476, %s80, 1
        %s1478 = smul.addr %s1477, 8
        %s1479 = smul.addr %s1478, 8
        %s1480 = scalar_lea.vmem %s55, %s1479
        %p1481 = scmp.lt.s32.totalorder %s80, 1
        %s1482 = scalar_select %p1481, %s80, 1
        %s1483 = scalar_lea.vmem %s57, %s1482
        %p1484 = scmp.lt.s32.totalorder %s80, 1
        %s1485 = scalar_select %p1484, %s80, 1
        %s1486 = scalar_lea.vmem %s59, %s1485
        %p1487 = scmp.lt.s32.totalorder %s80, 1
        %s1488 = scalar_select %p1487, %s80, 1
        %s1489 = scalar_lea.vmem %s61, %s1488
        %s1490 = smul.u32 2, %s79
        %p1491 = scmp.eq.s32.totalorder %s80, 0
        // Predicated region
        $region145: #{tpu_custom_call.1} parent=143 // pred_check
          %p1492 = pneg %p1491
        $region146: #{tpu_custom_call.1} parent=143 // pred_check_branch
          %1494 = sbr.rel (%p1492) target = $region148
        $region147: #{tpu_custom_call.1} parent=143 // pred_region
          %v1495 = vld [vmem:[%s1362] sm:$0xff]
          %v1496 = vld [vmem:[%s1362 + $0x8] sm:$0xff]
          %vm1497 = vcmask 261120
          %1498 = vst.msk [vmem:[#allocation2] sm:$0xff] %vm1497, %v1495
          %1499 = vst.msk [vmem:[#allocation2 + $0x8] sm:$0xff] %vm1497, %v1496
        $region148: #{tpu_custom_call.1} parent=143 // pred_fallthru
          _
        %v1500 = vld [vmem:[#allocation2] sm:$0xff]
        %v1501 = vld [vmem:[#allocation2 + $0x8] sm:$0xff]
        %v1502 = vld [vmem:[%s1368] sm:$0xff]
        %v1503 = vld [vmem:[%s1368 + $0x8] sm:$0xff]
        %v1504 = vld [vmem:[%s1374] sm:$0xff]
        %v1505 = vld [vmem:[%s1374 + $0x8] sm:$0xff]
        %v1506 = vld [vmem:[%s1380] sm:$0xff]
        %v1507 = vld [vmem:[%s1380 + $0x8] sm:$0xff]
        %v1508 = vld [vmem:[%s1385] sm:$0xff]
        %v1509 = vld [vmem:[%s1385 + $0x8] sm:$0xff]
        %v1510 = vld [vmem:[%s1390] sm:$0xff]
        %v1511 = vld [vmem:[%s1390 + $0x8] sm:$0xff]
        %v1512 = vld [vmem:[%s1390 + $0x10] sm:$0xff]
        %v1513 = vld [vmem:[%s1390 + $0x18] sm:$0xff]
        %v1514 = vld [vmem:[%s1394] sm:$0x1]
        %v1516 = vperm.slane %v1514, 0
        %vm1518 = vcmask 261120
        %v1520 = vsel %vm1518, %v1500, 0
        %v1523 = vsel %vm1518, %v1501, 0
        %1525 = vmatpush.msra.mxu0 0.0
        %1526 = vmatpush.msra.mxu0 0.0
        %1527 = vmatpush.msra.mxu0 0.0
        %1528 = vmatpush.msra.mxu0 0.0
        %1529 = vmatpush.msra.mxu0 0.0
        %1530 = vmatpush.msra.mxu0 0.0
        %1531 = vmatpush.msra.mxu0 0.0
        %1532 = vmatpush.msra.mxu0 0.0
        %1533 = vmatpush.msra.mxu0 0.0
        %1534 = vmatpush.msra.mxu0 0.0
        %1535 = vmatpush.msra.mxu0 0.0
        %1536 = vmatpush.msra.mxu0 0.0
        %1537 = vmatpush.msra.mxu0 %v1513
        %1538 = vmatpush.msra.mxu0 %v1512
        %1539 = vmatpush.msra.mxu0 %v1511
        %1540 = vmatpush.msra.mxu0 %v1510
        %1541 = vmatmul.f32.gmra.mxu0 %v1520
        %v1542 = vpop.f32.mrf.mxu0
        %v1543 = vadd.f32 %v1516, %v1542
        %1544 = vmatmul.f32.gmra.mxu0 %v1523
        %v1545 = vpop.f32.mrf.mxu0
        %v1546 = vadd.f32 %v1516, %v1545
        %1547 = vdwg.mxu0
        %v1548 = vld [vmem:[%s1399] sm:$0xff]
        %v1549 = vld [vmem:[%s1399 + $0x8] sm:$0xff]
        %v1550 = vld [vmem:[%s1399 + $0x10] sm:$0xff]
        %v1551 = vld [vmem:[%s1399 + $0x18] sm:$0xff]
        %v1552 = vld [vmem:[%s1403] sm:$0x1]
        %v1554 = vperm.slane %v1552, 0
        %1556 = vmatpush.msra.mxu0 0.0
        %1557 = vmatpush.msra.mxu0 0.0
        %1558 = vmatpush.msra.mxu0 0.0
        %1559 = vmatpush.msra.mxu0 0.0
        %1560 = vmatpush.msra.mxu0 0.0
        %1561 = vmatpush.msra.mxu0 0.0
        %1562 = vmatpush.msra.mxu0 0.0
        %1563 = vmatpush.msra.mxu0 0.0
        %1564 = vmatpush.msra.mxu0 0.0
        %1565 = vmatpush.msra.mxu0 0.0
        %1566 = vmatpush.msra.mxu0 0.0
        %1567 = vmatpush.msra.mxu0 0.0
        %1568 = vmatpush.msra.mxu0 %v1551
        %1569 = vmatpush.msra.mxu0 %v1550
        %1570 = vmatpush.msra.mxu0 %v1549
        %1571 = vmatpush.msra.mxu0 %v1548
        %1572 = vmatmul.f32.gmra.mxu0 %v1520
        %v1573 = vpop.f32.mrf.mxu0
        %v1574 = vadd.f32 %v1554, %v1573
        %1575 = vmatmul.f32.gmra.mxu0 %v1523
        %v1576 = vpop.f32.mrf.mxu0
        %v1577 = vadd.f32 %v1554, %v1576
        %1578 = vdwg.mxu0
        %v1579 = vld [vmem:[%s1408] sm:$0xff]
        %v1580 = vld [vmem:[%s1408 + $0x8] sm:$0xff]
        %v1581 = vld [vmem:[%s1408 + $0x10] sm:$0xff]
        %v1582 = vld [vmem:[%s1408 + $0x18] sm:$0xff]
        %v1583 = vld [vmem:[%s1412] sm:$0x1]
        %v1585 = vperm.slane %v1583, 0
        %1587 = vmatpush.msra.mxu0 0.0
        %1588 = vmatpush.msra.mxu0 0.0
        %1589 = vmatpush.msra.mxu0 0.0
        %1590 = vmatpush.msra.mxu0 0.0
        %1591 = vmatpush.msra.mxu0 0.0
        %1592 = vmatpush.msra.mxu0 0.0
        %1593 = vmatpush.msra.mxu0 0.0
        %1594 = vmatpush.msra.mxu0 0.0
        %1595 = vmatpush.msra.mxu0 0.0
        %1596 = vmatpush.msra.mxu0 0.0
        %1597 = vmatpush.msra.mxu0 0.0
        %1598 = vmatpush.msra.mxu0 0.0
        %1599 = vmatpush.msra.mxu0 %v1582
        %1600 = vmatpush.msra.mxu0 %v1581
        %1601 = vmatpush.msra.mxu0 %v1580
        %1602 = vmatpush.msra.mxu0 %v1579
        %1603 = vmatmul.f32.gmra.mxu0 %v1520
        %v1604 = vpop.f32.mrf.mxu0
        %v1605 = vadd.f32 %v1585, %v1604
        %1606 = vmatmul.f32.gmra.mxu0 %v1523
        %v1607 = vpop.f32.mrf.mxu0
        %v1608 = vadd.f32 %v1585, %v1607
        %1609 = vdwg.mxu0
        %vm1610 = vcmask 64512
        %v1612 = vsel %vm1610, %v1543, 0
        %v1615 = vsel %vm1610, %v1546, 0
        %v1618 = vsel %vm1610, %v1574, 0
        %v1621 = vsel %vm1610, %v1577, 0
        %1623 = vmatpush.xpose.msra.mxu0 0.0
        %1624 = vmatpush.xpose.msra.mxu0 0.0
        %1625 = vmatpush.xpose.msra.mxu0 0.0
        %1626 = vmatpush.xpose.msra.mxu0 0.0
        %1627 = vmatpush.xpose.msra.mxu0 0.0
        %1628 = vmatpush.xpose.msra.mxu0 0.0
        %1629 = vmatpush.xpose.msra.mxu0 0.0
        %1630 = vmatpush.xpose.msra.mxu0 0.0
        %1631 = vmatpush.xpose.msra.mxu0 0.0
        %1632 = vmatpush.xpose.msra.mxu0 0.0
        %1633 = vmatpush.xpose.msra.mxu0 0.0
        %1634 = vmatpush.xpose.msra.mxu0 0.0
        %1635 = vmatpush.xpose.msra.mxu0 0.0
        %1636 = vmatpush.xpose.msra.mxu0 0.0
        %1637 = vmatpush.xpose.msra.mxu0 %v1621
        %1638 = vmatpush.xpose.msra.mxu0 %v1618
        %1639 = vmatmul.f32.gmra.mxu0 %v1612
        %v1640 = vpop.f32.mrf.mxu0
        %v1641 = vadd.f32 %v1506, %v1640
        %1642 = vmatmul.f32.gmra.mxu0 %v1615
        %v1643 = vpop.f32.mrf.mxu0
        %v1644 = vadd.f32 %v1507, %v1643
        %1645 = vdwg.mxu0
        %vm1646 = vcmask 130048
        %v1647 = vsel %vm1646, %v1641, -inf
        %1648 = vmax.xlane.f32.xlu0 %v1647
        %v1649 = vpop.xlane.xlu0 %1648
        %v1650 = vsel %vm1646, %v1644, -inf
        %1651 = vmax.xlane.f32.xlu0 %v1650
        %v1652 = vpop.xlane.xlu0 %1651
        %v1653 = vsub.f32 %v1641, %v1649
        %v1654 = vsub.f32 %v1644, %v1652
        %v1655 = vmul.f32 %v1653, 1.442695
        %v1656 = vpow.pop %v1655
        %v1657 = vmul.f32 %v1654, 1.442695
        %v1658 = vpow.pop %v1657
        %v1659 = vsel %vm1646, %v1656, 0.0
        %1660 = vadd.xlane.f32.xlu0 %v1659
        %v1661 = vpop.xlane.xlu0 %1660
        %v1662 = vsel %vm1646, %v1658, 0.0
        %1663 = vadd.xlane.f32.xlu0 %v1662
        %v1664 = vpop.xlane.xlu0 %1663
        %v1665 = vrcp.pop %v1661
        %v1666 = vmul.f32 %v1661, %v1665
        %v1667 = vsub.f32 1.0, %v1666
        %v1668 = vmul.f32 %v1665, %v1667
        %v1669 = vadd.f32 %v1665, %v1668
        %vm1670 = vweird.f32 %v1661
        %vm1671 = vweird.f32 %v1665
        %vm1672 = vmor %vm1670, %vm1671
        %v1673 = vsel %vm1672, %v1665, %v1669
        %v1674 = vand.u32 2147483647, %v1661
        %vm1675 = vcmp.eq.f32.partialorder %v1674, 8.507059e+37
        %v1676 = vand.u32 %v1661, 2147483648
        %v1677 = vor.u32 1.1754944e-38, %v1676
        %v1678 = vsel %vm1675, %v1677, %v1673
        %v1679 = vmul.f32 %v1656, %v1678
        %v1680 = vrcp.pop %v1664
        %v1681 = vmul.f32 %v1664, %v1680
        %v1682 = vsub.f32 1.0, %v1681
        %v1683 = vmul.f32 %v1680, %v1682
        %v1684 = vadd.f32 %v1680, %v1683
        %vm1685 = vweird.f32 %v1664
        %vm1686 = vweird.f32 %v1680
        %vm1687 = vmor %vm1685, %vm1686
        %v1688 = vsel %vm1687, %v1680, %v1684
        %v1689 = vand.u32 2147483647, %v1664
        %vm1690 = vcmp.eq.f32.partialorder %v1689, 8.507059e+37
        %v1691 = vand.u32 %v1664, 2147483648
        %v1692 = vor.u32 1.1754944e-38, %v1691
        %v1693 = vsel %vm1690, %v1692, %v1688
        %v1694 = vmul.f32 %v1658, %v1693
        %v1696 = vsel %vm1646, %v1679, 0
        %v1699 = vsel %vm1646, %v1694, 0
        %1701 = vmatpush.msra.mxu0 0.0
        %1702 = vmatpush.msra.mxu0 0.0
        %1703 = vmatpush.msra.mxu0 0.0
        %1704 = vmatpush.msra.mxu0 0.0
        %1705 = vmatpush.msra.mxu0 0.0
        %1706 = vmatpush.msra.mxu0 0.0
        %1707 = vmatpush.msra.mxu0 0.0
        %1708 = vmatpush.msra.mxu0 0.0
        %1709 = vmatpush.msra.mxu0 0.0
        %1710 = vmatpush.msra.mxu0 0.0
        %1711 = vmatpush.msra.mxu0 0.0
        %1712 = vmatpush.msra.mxu0 0.0
        %1713 = vmatpush.msra.mxu0 0.0
        %1714 = vmatpush.msra.mxu0 0.0
        %1715 = vmatpush.msra.mxu0 %v1608
        %1716 = vmatpush.msra.mxu0 %v1605
        %1717 = vmatmul.f32.gmra.mxu0 %v1696
        %v1718 = vpop.f32.mrf.mxu0
        %v1719 = vadd.f32 0.0, %v1718
        %1720 = vmatmul.f32.gmra.mxu0 %v1699
        %v1721 = vpop.f32.mrf.mxu0
        %v1722 = vadd.f32 0.0, %v1721
        %1723 = vdwg.mxu0
        %v1724 = vld [vmem:[%s1417] sm:$0xff]
        %s1725 = scalar_lea.vmem %s1390, 32
        %v1726 = vld [vmem:[%s1725] sm:$0xff]
        %v1727 = vld [vmem:[%s1725 + $0x8] sm:$0xff]
        %v1728 = vld [vmem:[%s1725 + $0x10] sm:$0xff]
        %v1729 = vld [vmem:[%s1725 + $0x18] sm:$0xff]
        %s1730 = scalar_lea.vmem %s1394, 1
        %v1731 = vld [vmem:[%s1730] sm:$0x1]
        %v1733 = vperm.slane %v1731, 0
        %1735 = vmatpush.msra.mxu0 0.0
        %1736 = vmatpush.msra.mxu0 0.0
        %1737 = vmatpush.msra.mxu0 0.0
        %1738 = vmatpush.msra.mxu0 0.0
        %1739 = vmatpush.msra.mxu0 0.0
        %1740 = vmatpush.msra.mxu0 0.0
        %1741 = vmatpush.msra.mxu0 0.0
        %1742 = vmatpush.msra.mxu0 0.0
        %1743 = vmatpush.msra.mxu0 0.0
        %1744 = vmatpush.msra.mxu0 0.0
        %1745 = vmatpush.msra.mxu0 0.0
        %1746 = vmatpush.msra.mxu0 0.0
        %1747 = vmatpush.msra.mxu0 %v1729
        %1748 = vmatpush.msra.mxu0 %v1728
        %1749 = vmatpush.msra.mxu0 %v1727
        %1750 = vmatpush.msra.mxu0 %v1726
        %1751 = vmatmul.f32.gmra.mxu0 %v1520
        %v1752 = vpop.f32.mrf.mxu0
        %v1753 = vadd.f32 %v1733, %v1752
        %1754 = vmatmul.f32.gmra.mxu0 %v1523
        %v1755 = vpop.f32.mrf.mxu0
        %v1756 = vadd.f32 %v1733, %v1755
        %1757 = vdwg.mxu0
        %s1758 = scalar_lea.vmem %s1399, 32
        %v1759 = vld [vmem:[%s1758] sm:$0xff]
        %v1760 = vld [vmem:[%s1758 + $0x8] sm:$0xff]
        %v1761 = vld [vmem:[%s1758 + $0x10] sm:$0xff]
        %v1762 = vld [vmem:[%s1758 + $0x18] sm:$0xff]
        %s1763 = scalar_lea.vmem %s1403, 1
        %v1764 = vld [vmem:[%s1763] sm:$0x1]
        %v1766 = vperm.slane %v1764, 0
        %1768 = vmatpush.msra.mxu0 0.0
        %1769 = vmatpush.msra.mxu0 0.0
        %1770 = vmatpush.msra.mxu0 0.0
        %1771 = vmatpush.msra.mxu0 0.0
        %1772 = vmatpush.msra.mxu0 0.0
        %1773 = vmatpush.msra.mxu0 0.0
        %1774 = vmatpush.msra.mxu0 0.0
        %1775 = vmatpush.msra.mxu0 0.0
        %1776 = vmatpush.msra.mxu0 0.0
        %1777 = vmatpush.msra.mxu0 0.0
        %1778 = vmatpush.msra.mxu0 0.0
        %1779 = vmatpush.msra.mxu0 0.0
        %1780 = vmatpush.msra.mxu0 %v1762
        %1781 = vmatpush.msra.mxu0 %v1761
        %1782 = vmatpush.msra.mxu0 %v1760
        %1783 = vmatpush.msra.mxu0 %v1759
        %1784 = vmatmul.f32.gmra.mxu0 %v1520
        %v1785 = vpop.f32.mrf.mxu0
        %v1786 = vadd.f32 %v1766, %v1785
        %1787 = vmatmul.f32.gmra.mxu0 %v1523
        %v1788 = vpop.f32.mrf.mxu0
        %v1789 = vadd.f32 %v1766, %v1788
        %1790 = vdwg.mxu0
        %s1791 = scalar_lea.vmem %s1408, 32
        %v1792 = vld [vmem:[%s1791] sm:$0xff]
        %v1793 = vld [vmem:[%s1791 + $0x8] sm:$0xff]
        %v1794 = vld [vmem:[%s1791 + $0x10] sm:$0xff]
        %v1795 = vld [vmem:[%s1791 + $0x18] sm:$0xff]
        %s1796 = scalar_lea.vmem %s1412, 1
        %v1797 = vld [vmem:[%s1796] sm:$0x1]
        %v1799 = vperm.slane %v1797, 0
        %1801 = vmatpush.msra.mxu0 0.0
        %1802 = vmatpush.msra.mxu0 0.0
        %1803 = vmatpush.msra.mxu0 0.0
        %1804 = vmatpush.msra.mxu0 0.0
        %1805 = vmatpush.msra.mxu0 0.0
        %1806 = vmatpush.msra.mxu0 0.0
        %1807 = vmatpush.msra.mxu0 0.0
        %1808 = vmatpush.msra.mxu0 0.0
        %1809 = vmatpush.msra.mxu0 0.0
        %1810 = vmatpush.msra.mxu0 0.0
        %1811 = vmatpush.msra.mxu0 0.0
        %1812 = vmatpush.msra.mxu0 0.0
        %1813 = vmatpush.msra.mxu0 %v1795
        %1814 = vmatpush.msra.mxu0 %v1794
        %1815 = vmatpush.msra.mxu0 %v1793
        %1816 = vmatpush.msra.mxu0 %v1792
        %1817 = vmatmul.f32.gmra.mxu0 %v1520
        %v1818 = vpop.f32.mrf.mxu0
        %v1819 = vadd.f32 %v1799, %v1818
        %1820 = vmatmul.f32.gmra.mxu0 %v1523
        %v1821 = vpop.f32.mrf.mxu0
        %v1822 = vadd.f32 %v1799, %v1821
        %1823 = vdwg.mxu0
        %v1825 = vsel %vm1610, %v1753, 0
        %v1828 = vsel %vm1610, %v1756, 0
        %v1831 = vsel %vm1610, %v1786, 0
        %v1834 = vsel %vm1610, %v1789, 0
        %1836 = vmatpush.xpose.msra.mxu0 0.0
        %1837 = vmatpush.xpose.msra.mxu0 0.0
        %1838 = vmatpush.xpose.msra.mxu0 0.0
        %1839 = vmatpush.xpose.msra.mxu0 0.0
        %1840 = vmatpush.xpose.msra.mxu0 0.0
        %1841 = vmatpush.xpose.msra.mxu0 0.0
        %1842 = vmatpush.xpose.msra.mxu0 0.0
        %1843 = vmatpush.xpose.msra.mxu0 0.0
        %1844 = vmatpush.xpose.msra.mxu0 0.0
        %1845 = vmatpush.xpose.msra.mxu0 0.0
        %1846 = vmatpush.xpose.msra.mxu0 0.0
        %1847 = vmatpush.xpose.msra.mxu0 0.0
        %1848 = vmatpush.xpose.msra.mxu0 0.0
        %1849 = vmatpush.xpose.msra.mxu0 0.0
        %1850 = vmatpush.xpose.msra.mxu0 %v1834
        %1851 = vmatpush.xpose.msra.mxu0 %v1831
        %1852 = vmatmul.f32.gmra.mxu0 %v1825
        %v1853 = vpop.f32.mrf.mxu0
        %v1854 = vadd.f32 %v1506, %v1853
        %1855 = vmatmul.f32.gmra.mxu0 %v1828
        %v1856 = vpop.f32.mrf.mxu0
        %v1857 = vadd.f32 %v1507, %v1856
        %1858 = vdwg.mxu0
        %v1859 = vsel %vm1646, %v1854, -inf
        %1860 = vmax.xlane.f32.xlu0 %v1859
        %v1861 = vpop.xlane.xlu0 %1860
        %v1862 = vsel %vm1646, %v1857, -inf
        %1863 = vmax.xlane.f32.xlu0 %v1862
        %v1864 = vpop.xlane.xlu0 %1863
        %v1865 = vsub.f32 %v1854, %v1861
        %v1866 = vsub.f32 %v1857, %v1864
        %v1867 = vmul.f32 %v1865, 1.442695
        %v1868 = vpow.pop %v1867
        %v1869 = vmul.f32 %v1866, 1.442695
        %v1870 = vpow.pop %v1869
        %v1871 = vsel %vm1646, %v1868, 0.0
        %1872 = vadd.xlane.f32.xlu0 %v1871
        %v1873 = vpop.xlane.xlu0 %1872
        %v1874 = vsel %vm1646, %v1870, 0.0
        %1875 = vadd.xlane.f32.xlu0 %v1874
        %v1876 = vpop.xlane.xlu0 %1875
        %v1877 = vrcp.pop %v1873
        %v1878 = vmul.f32 %v1873, %v1877
        %v1879 = vsub.f32 1.0, %v1878
        %v1880 = vmul.f32 %v1877, %v1879
        %v1881 = vadd.f32 %v1877, %v1880
        %vm1882 = vweird.f32 %v1873
        %vm1883 = vweird.f32 %v1877
        %vm1884 = vmor %vm1882, %vm1883
        %v1885 = vsel %vm1884, %v1877, %v1881
        %v1886 = vand.u32 2147483647, %v1873
        %vm1887 = vcmp.eq.f32.partialorder %v1886, 8.507059e+37
        %v1888 = vand.u32 %v1873, 2147483648
        %v1889 = vor.u32 1.1754944e-38, %v1888
        %v1890 = vsel %vm1887, %v1889, %v1885
        %v1891 = vmul.f32 %v1868, %v1890
        %v1892 = vrcp.pop %v1876
        %v1893 = vmul.f32 %v1876, %v1892
        %v1894 = vsub.f32 1.0, %v1893
        %v1895 = vmul.f32 %v1892, %v1894
        %v1896 = vadd.f32 %v1892, %v1895
        %vm1897 = vweird.f32 %v1876
        %vm1898 = vweird.f32 %v1892
        %vm1899 = vmor %vm1897, %vm1898
        %v1900 = vsel %vm1899, %v1892, %v1896
        %v1901 = vand.u32 2147483647, %v1876
        %vm1902 = vcmp.eq.f32.partialorder %v1901, 8.507059e+37
        %v1903 = vand.u32 %v1876, 2147483648
        %v1904 = vor.u32 1.1754944e-38, %v1903
        %v1905 = vsel %vm1902, %v1904, %v1900
        %v1906 = vmul.f32 %v1870, %v1905
        %v1908 = vsel %vm1646, %v1891, 0
        %v1911 = vsel %vm1646, %v1906, 0
        %1913 = vmatpush.msra.mxu0 0.0
        %1914 = vmatpush.msra.mxu0 0.0
        %1915 = vmatpush.msra.mxu0 0.0
        %1916 = vmatpush.msra.mxu0 0.0
        %1917 = vmatpush.msra.mxu0 0.0
        %1918 = vmatpush.msra.mxu0 0.0
        %1919 = vmatpush.msra.mxu0 0.0
        %1920 = vmatpush.msra.mxu0 0.0
        %1921 = vmatpush.msra.mxu0 0.0
        %1922 = vmatpush.msra.mxu0 0.0
        %1923 = vmatpush.msra.mxu0 0.0
        %1924 = vmatpush.msra.mxu0 0.0
        %1925 = vmatpush.msra.mxu0 0.0
        %1926 = vmatpush.msra.mxu0 0.0
        %1927 = vmatpush.msra.mxu0 %v1822
        %1928 = vmatpush.msra.mxu0 %v1819
        %1929 = vmatmul.f32.gmra.mxu0 %v1908
        %v1930 = vpop.f32.mrf.mxu0
        %v1931 = vadd.f32 0.0, %v1930
        %1932 = vmatmul.f32.gmra.mxu0 %v1911
        %v1933 = vpop.f32.mrf.mxu0
        %v1934 = vadd.f32 0.0, %v1933
        %1935 = vdwg.mxu0
        %s1936 = scalar_lea.vmem %s1417, 8
        %v1937 = vld [vmem:[%s1936] sm:$0xff]
        %v1939 = vsel %vm1610, %v1931, 0
        %v1942 = vsel %vm1610, %v1934, 0
        %1944 = vmatpush.msra.mxu0 0.0
        %1945 = vmatpush.msra.mxu0 0.0
        %1946 = vmatpush.msra.mxu0 0.0
        %1947 = vmatpush.msra.mxu0 0.0
        %1948 = vmatpush.msra.mxu0 0.0
        %1949 = vmatpush.msra.mxu0 0.0
        %1950 = vmatpush.msra.mxu0 0.0
        %1951 = vmatpush.msra.mxu0 0.0
        %1952 = vmatpush.msra.mxu0 0.0
        %1953 = vmatpush.msra.mxu0 0.0
        %1954 = vmatpush.msra.mxu0 0.0
        %1955 = vmatpush.msra.mxu0 0.0
        %1956 = vmatpush.msra.mxu0 0.0
        %1957 = vmatpush.msra.mxu0 0.0
        %1958 = vmatpush.msra.mxu0 0.0
        %1959 = vmatpush.msra.mxu0 %v1937
        %1960 = vmatmul.f32.gmra.mxu0 %v1939
        %v1961 = vpop.f32.mrf.mxu0
        %v1962 = vadd.f32 0.0, %v1961
        %1963 = vmatmul.f32.gmra.mxu0 %v1942
        %v1964 = vpop.f32.mrf.mxu0
        %v1965 = vadd.f32 0.0, %v1964
        %1966 = vdwg.mxu0
        %v1968 = vsel %vm1610, %v1719, 0
        %v1971 = vsel %vm1610, %v1722, 0
        %1973 = vmatpush.msra.mxu0 0.0
        %1974 = vmatpush.msra.mxu0 0.0
        %1975 = vmatpush.msra.mxu0 0.0
        %1976 = vmatpush.msra.mxu0 0.0
        %1977 = vmatpush.msra.mxu0 0.0
        %1978 = vmatpush.msra.mxu0 0.0
        %1979 = vmatpush.msra.mxu0 0.0
        %1980 = vmatpush.msra.mxu0 0.0
        %1981 = vmatpush.msra.mxu0 0.0
        %1982 = vmatpush.msra.mxu0 0.0
        %1983 = vmatpush.msra.mxu0 0.0
        %1984 = vmatpush.msra.mxu0 0.0
        %1985 = vmatpush.msra.mxu0 0.0
        %1986 = vmatpush.msra.mxu0 0.0
        %1987 = vmatpush.msra.mxu0 0.0
        %1988 = vmatpush.msra.mxu0 %v1724
        %1989 = vmatmul.f32.gmra.mxu0 %v1968
        %v1990 = vpop.f32.mrf.mxu0
        %v1991 = vadd.f32 %v1962, %v1990
        %1992 = vmatmul.f32.gmra.mxu0 %v1971
        %v1993 = vpop.f32.mrf.mxu0
        %v1994 = vadd.f32 %v1965, %v1993
        %1995 = vdwg.mxu0
        %s1996 = scalar_lea.vmem %s1390, 64
        %v1997 = vld [vmem:[%s1996] sm:$0xff]
        %v1998 = vld [vmem:[%s1996 + $0x8] sm:$0xff]
        %v1999 = vld [vmem:[%s1996 + $0x10] sm:$0xff]
        %v2000 = vld [vmem:[%s1996 + $0x18] sm:$0xff]
        %s2001 = scalar_lea.vmem %s1394, 2
        %v2002 = vld [vmem:[%s2001] sm:$0x1]
        %v2004 = vperm.slane %v2002, 0
        %2006 = vmatpush.msra.mxu0 0.0
        %2007 = vmatpush.msra.mxu0 0.0
        %2008 = vmatpush.msra.mxu0 0.0
        %2009 = vmatpush.msra.mxu0 0.0
        %2010 = vmatpush.msra.mxu0 0.0
        %2011 = vmatpush.msra.mxu0 0.0
        %2012 = vmatpush.msra.mxu0 0.0
        %2013 = vmatpush.msra.mxu0 0.0
        %2014 = vmatpush.msra.mxu0 0.0
        %2015 = vmatpush.msra.mxu0 0.0
        %2016 = vmatpush.msra.mxu0 0.0
        %2017 = vmatpush.msra.mxu0 0.0
        %2018 = vmatpush.msra.mxu0 %v2000
        %2019 = vmatpush.msra.mxu0 %v1999
        %2020 = vmatpush.msra.mxu0 %v1998
        %2021 = vmatpush.msra.mxu0 %v1997
        %2022 = vmatmul.f32.gmra.mxu0 %v1520
        %v2023 = vpop.f32.mrf.mxu0
        %v2024 = vadd.f32 %v2004, %v2023
        %2025 = vmatmul.f32.gmra.mxu0 %v1523
        %v2026 = vpop.f32.mrf.mxu0
        %v2027 = vadd.f32 %v2004, %v2026
        %2028 = vdwg.mxu0
        %s2029 = scalar_lea.vmem %s1399, 64
        %v2030 = vld [vmem:[%s2029] sm:$0xff]
        %v2031 = vld [vmem:[%s2029 + $0x8] sm:$0xff]
        %v2032 = vld [vmem:[%s2029 + $0x10] sm:$0xff]
        %v2033 = vld [vmem:[%s2029 + $0x18] sm:$0xff]
        %s2034 = scalar_lea.vmem %s1403, 2
        %v2035 = vld [vmem:[%s2034] sm:$0x1]
        %v2037 = vperm.slane %v2035, 0
        %2039 = vmatpush.msra.mxu0 0.0
        %2040 = vmatpush.msra.mxu0 0.0
        %2041 = vmatpush.msra.mxu0 0.0
        %2042 = vmatpush.msra.mxu0 0.0
        %2043 = vmatpush.msra.mxu0 0.0
        %2044 = vmatpush.msra.mxu0 0.0
        %2045 = vmatpush.msra.mxu0 0.0
        %2046 = vmatpush.msra.mxu0 0.0
        %2047 = vmatpush.msra.mxu0 0.0
        %2048 = vmatpush.msra.mxu0 0.0
        %2049 = vmatpush.msra.mxu0 0.0
        %2050 = vmatpush.msra.mxu0 0.0
        %2051 = vmatpush.msra.mxu0 %v2033
        %2052 = vmatpush.msra.mxu0 %v2032
        %2053 = vmatpush.msra.mxu0 %v2031
        %2054 = vmatpush.msra.mxu0 %v2030
        %2055 = vmatmul.f32.gmra.mxu0 %v1520
        %v2056 = vpop.f32.mrf.mxu0
        %v2057 = vadd.f32 %v2037, %v2056
        %2058 = vmatmul.f32.gmra.mxu0 %v1523
        %v2059 = vpop.f32.mrf.mxu0
        %v2060 = vadd.f32 %v2037, %v2059
        %2061 = vdwg.mxu0
        %s2062 = scalar_lea.vmem %s1408, 64
        %v2063 = vld [vmem:[%s2062] sm:$0xff]
        %v2064 = vld [vmem:[%s2062 + $0x8] sm:$0xff]
        %v2065 = vld [vmem:[%s2062 + $0x10] sm:$0xff]
        %v2066 = vld [vmem:[%s2062 + $0x18] sm:$0xff]
        %s2067 = scalar_lea.vmem %s1412, 2
        %v2068 = vld [vmem:[%s2067] sm:$0x1]
        %v2070 = vperm.slane %v2068, 0
        %2072 = vmatpush.msra.mxu0 0.0
        %2073 = vmatpush.msra.mxu0 0.0
        %2074 = vmatpush.msra.mxu0 0.0
        %2075 = vmatpush.msra.mxu0 0.0
        %2076 = vmatpush.msra.mxu0 0.0
        %2077 = vmatpush.msra.mxu0 0.0
        %2078 = vmatpush.msra.mxu0 0.0
        %2079 = vmatpush.msra.mxu0 0.0
        %2080 = vmatpush.msra.mxu0 0.0
        %2081 = vmatpush.msra.mxu0 0.0
        %2082 = vmatpush.msra.mxu0 0.0
        %2083 = vmatpush.msra.mxu0 0.0
        %2084 = vmatpush.msra.mxu0 %v2066
        %2085 = vmatpush.msra.mxu0 %v2065
        %2086 = vmatpush.msra.mxu0 %v2064
        %2087 = vmatpush.msra.mxu0 %v2063
        %2088 = vmatmul.f32.gmra.mxu0 %v1520
        %v2089 = vpop.f32.mrf.mxu0
        %v2090 = vadd.f32 %v2070, %v2089
        %2091 = vmatmul.f32.gmra.mxu0 %v1523
        %v2092 = vpop.f32.mrf.mxu0
        %v2093 = vadd.f32 %v2070, %v2092
        %2094 = vdwg.mxu0
        %v2096 = vsel %vm1610, %v2024, 0
        %v2099 = vsel %vm1610, %v2027, 0
        %v2102 = vsel %vm1610, %v2057, 0
        %v2105 = vsel %vm1610, %v2060, 0
        %2107 = vmatpush.xpose.msra.mxu0 0.0
        %2108 = vmatpush.xpose.msra.mxu0 0.0
        %2109 = vmatpush.xpose.msra.mxu0 0.0
        %2110 = vmatpush.xpose.msra.mxu0 0.0
        %2111 = vmatpush.xpose.msra.mxu0 0.0
        %2112 = vmatpush.xpose.msra.mxu0 0.0
        %2113 = vmatpush.xpose.msra.mxu0 0.0
        %2114 = vmatpush.xpose.msra.mxu0 0.0
        %2115 = vmatpush.xpose.msra.mxu0 0.0
        %2116 = vmatpush.xpose.msra.mxu0 0.0
        %2117 = vmatpush.xpose.msra.mxu0 0.0
        %2118 = vmatpush.xpose.msra.mxu0 0.0
        %2119 = vmatpush.xpose.msra.mxu0 0.0
        %2120 = vmatpush.xpose.msra.mxu0 0.0
        %2121 = vmatpush.xpose.msra.mxu0 %v2105
        %2122 = vmatpush.xpose.msra.mxu0 %v2102
        %2123 = vmatmul.f32.gmra.mxu0 %v2096
        %v2124 = vpop.f32.mrf.mxu0
        %v2125 = vadd.f32 %v1506, %v2124
        %2126 = vmatmul.f32.gmra.mxu0 %v2099
        %v2127 = vpop.f32.mrf.mxu0
        %v2128 = vadd.f32 %v1507, %v2127
        %2129 = vdwg.mxu0
        %v2130 = vsel %vm1646, %v2125, -inf
        %2131 = vmax.xlane.f32.xlu0 %v2130
        %v2132 = vpop.xlane.xlu0 %2131
        %v2133 = vsel %vm1646, %v2128, -inf
        %2134 = vmax.xlane.f32.xlu0 %v2133
        %v2135 = vpop.xlane.xlu0 %2134
        %v2136 = vsub.f32 %v2125, %v2132
        %v2137 = vsub.f32 %v2128, %v2135
        %v2138 = vmul.f32 %v2136, 1.442695
        %v2139 = vpow.pop %v2138
        %v2140 = vmul.f32 %v2137, 1.442695
        %v2141 = vpow.pop %v2140
        %v2142 = vsel %vm1646, %v2139, 0.0
        %2143 = vadd.xlane.f32.xlu0 %v2142
        %v2144 = vpop.xlane.xlu0 %2143
        %v2145 = vsel %vm1646, %v2141, 0.0
        %2146 = vadd.xlane.f32.xlu0 %v2145
        %v2147 = vpop.xlane.xlu0 %2146
        %v2148 = vrcp.pop %v2144
        %v2149 = vmul.f32 %v2144, %v2148
        %v2150 = vsub.f32 1.0, %v2149
        %v2151 = vmul.f32 %v2148, %v2150
        %v2152 = vadd.f32 %v2148, %v2151
        %vm2153 = vweird.f32 %v2144
        %vm2154 = vweird.f32 %v2148
        %vm2155 = vmor %vm2153, %vm2154
        %v2156 = vsel %vm2155, %v2148, %v2152
        %v2157 = vand.u32 2147483647, %v2144
        %vm2158 = vcmp.eq.f32.partialorder %v2157, 8.507059e+37
        %v2159 = vand.u32 %v2144, 2147483648
        %v2160 = vor.u32 1.1754944e-38, %v2159
        %v2161 = vsel %vm2158, %v2160, %v2156
        %v2162 = vmul.f32 %v2139, %v2161
        %v2163 = vrcp.pop %v2147
        %v2164 = vmul.f32 %v2147, %v2163
        %v2165 = vsub.f32 1.0, %v2164
        %v2166 = vmul.f32 %v2163, %v2165
        %v2167 = vadd.f32 %v2163, %v2166
        %vm2168 = vweird.f32 %v2147
        %vm2169 = vweird.f32 %v2163
        %vm2170 = vmor %vm2168, %vm2169
        %v2171 = vsel %vm2170, %v2163, %v2167
        %v2172 = vand.u32 2147483647, %v2147
        %vm2173 = vcmp.eq.f32.partialorder %v2172, 8.507059e+37
        %v2174 = vand.u32 %v2147, 2147483648
        %v2175 = vor.u32 1.1754944e-38, %v2174
        %v2176 = vsel %vm2173, %v2175, %v2171
        %v2177 = vmul.f32 %v2141, %v2176
        %v2179 = vsel %vm1646, %v2162, 0
        %v2182 = vsel %vm1646, %v2177, 0
        %2184 = vmatpush.msra.mxu0 0.0
        %2185 = vmatpush.msra.mxu0 0.0
        %2186 = vmatpush.msra.mxu0 0.0
        %2187 = vmatpush.msra.mxu0 0.0
        %2188 = vmatpush.msra.mxu0 0.0
        %2189 = vmatpush.msra.mxu0 0.0
        %2190 = vmatpush.msra.mxu0 0.0
        %2191 = vmatpush.msra.mxu0 0.0
        %2192 = vmatpush.msra.mxu0 0.0
        %2193 = vmatpush.msra.mxu0 0.0
        %2194 = vmatpush.msra.mxu0 0.0
        %2195 = vmatpush.msra.mxu0 0.0
        %2196 = vmatpush.msra.mxu0 0.0
        %2197 = vmatpush.msra.mxu0 0.0
        %2198 = vmatpush.msra.mxu0 %v2093
        %2199 = vmatpush.msra.mxu0 %v2090
        %2200 = vmatmul.f32.gmra.mxu0 %v2179
        %v2201 = vpop.f32.mrf.mxu0
        %v2202 = vadd.f32 0.0, %v2201
        %2203 = vmatmul.f32.gmra.mxu0 %v2182
        %v2204 = vpop.f32.mrf.mxu0
        %v2205 = vadd.f32 0.0, %v2204
        %2206 = vdwg.mxu0
        %s2207 = scalar_lea.vmem %s1417, 16
        %v2208 = vld [vmem:[%s2207] sm:$0xff]
        %v2210 = vsel %vm1610, %v2202, 0
        %v2213 = vsel %vm1610, %v2205, 0
        %2215 = vmatpush.msra.mxu0 0.0
        %2216 = vmatpush.msra.mxu0 0.0
        %2217 = vmatpush.msra.mxu0 0.0
        %2218 = vmatpush.msra.mxu0 0.0
        %2219 = vmatpush.msra.mxu0 0.0
        %2220 = vmatpush.msra.mxu0 0.0
        %2221 = vmatpush.msra.mxu0 0.0
        %2222 = vmatpush.msra.mxu0 0.0
        %2223 = vmatpush.msra.mxu0 0.0
        %2224 = vmatpush.msra.mxu0 0.0
        %2225 = vmatpush.msra.mxu0 0.0
        %2226 = vmatpush.msra.mxu0 0.0
        %2227 = vmatpush.msra.mxu0 0.0
        %2228 = vmatpush.msra.mxu0 0.0
        %2229 = vmatpush.msra.mxu0 0.0
        %2230 = vmatpush.msra.mxu0 %v2208
        %2231 = vmatmul.f32.gmra.mxu0 %v2210
        %v2232 = vpop.f32.mrf.mxu0
        %v2233 = vadd.f32 0.0, %v2232
        %2234 = vmatmul.f32.gmra.mxu0 %v2213
        %v2235 = vpop.f32.mrf.mxu0
        %v2236 = vadd.f32 0.0, %v2235
        %2237 = vdwg.mxu0
        %v2238 = vadd.f32 %v1991, %v2233
        %v2239 = vadd.f32 %v1994, %v2236
        %s2240 = scalar_lea.vmem %s1390, 96
        %v2241 = vld [vmem:[%s2240] sm:$0xff]
        %v2242 = vld [vmem:[%s2240 + $0x8] sm:$0xff]
        %v2243 = vld [vmem:[%s2240 + $0x10] sm:$0xff]
        %v2244 = vld [vmem:[%s2240 + $0x18] sm:$0xff]
        %s2245 = scalar_lea.vmem %s1394, 3
        %v2246 = vld [vmem:[%s2245] sm:$0x1]
        %v2248 = vperm.slane %v2246, 0
        %2250 = vmatpush.msra.mxu0 0.0
        %2251 = vmatpush.msra.mxu0 0.0
        %2252 = vmatpush.msra.mxu0 0.0
        %2253 = vmatpush.msra.mxu0 0.0
        %2254 = vmatpush.msra.mxu0 0.0
        %2255 = vmatpush.msra.mxu0 0.0
        %2256 = vmatpush.msra.mxu0 0.0
        %2257 = vmatpush.msra.mxu0 0.0
        %2258 = vmatpush.msra.mxu0 0.0
        %2259 = vmatpush.msra.mxu0 0.0
        %2260 = vmatpush.msra.mxu0 0.0
        %2261 = vmatpush.msra.mxu0 0.0
        %2262 = vmatpush.msra.mxu0 %v2244
        %2263 = vmatpush.msra.mxu0 %v2243
        %2264 = vmatpush.msra.mxu0 %v2242
        %2265 = vmatpush.msra.mxu0 %v2241
        %2266 = vmatmul.f32.gmra.mxu0 %v1520
        %v2267 = vpop.f32.mrf.mxu0
        %v2268 = vadd.f32 %v2248, %v2267
        %2269 = vmatmul.f32.gmra.mxu0 %v1523
        %v2270 = vpop.f32.mrf.mxu0
        %v2271 = vadd.f32 %v2248, %v2270
        %2272 = vdwg.mxu0
        %s2273 = scalar_lea.vmem %s1399, 96
        %v2274 = vld [vmem:[%s2273] sm:$0xff]
        %v2275 = vld [vmem:[%s2273 + $0x8] sm:$0xff]
        %v2276 = vld [vmem:[%s2273 + $0x10] sm:$0xff]
        %v2277 = vld [vmem:[%s2273 + $0x18] sm:$0xff]
        %s2278 = scalar_lea.vmem %s1403, 3
        %v2279 = vld [vmem:[%s2278] sm:$0x1]
        %v2281 = vperm.slane %v2279, 0
        %2283 = vmatpush.msra.mxu0 0.0
        %2284 = vmatpush.msra.mxu0 0.0
        %2285 = vmatpush.msra.mxu0 0.0
        %2286 = vmatpush.msra.mxu0 0.0
        %2287 = vmatpush.msra.mxu0 0.0
        %2288 = vmatpush.msra.mxu0 0.0
        %2289 = vmatpush.msra.mxu0 0.0
        %2290 = vmatpush.msra.mxu0 0.0
        %2291 = vmatpush.msra.mxu0 0.0
        %2292 = vmatpush.msra.mxu0 0.0
        %2293 = vmatpush.msra.mxu0 0.0
        %2294 = vmatpush.msra.mxu0 0.0
        %2295 = vmatpush.msra.mxu0 %v2277
        %2296 = vmatpush.msra.mxu0 %v2276
        %2297 = vmatpush.msra.mxu0 %v2275
        %2298 = vmatpush.msra.mxu0 %v2274
        %2299 = vmatmul.f32.gmra.mxu0 %v1520
        %v2300 = vpop.f32.mrf.mxu0
        %v2301 = vadd.f32 %v2281, %v2300
        %2302 = vmatmul.f32.gmra.mxu0 %v1523
        %v2303 = vpop.f32.mrf.mxu0
        %v2304 = vadd.f32 %v2281, %v2303
        %2305 = vdwg.mxu0
        %s2306 = scalar_lea.vmem %s1408, 96
        %v2307 = vld [vmem:[%s2306] sm:$0xff]
        %v2308 = vld [vmem:[%s2306 + $0x8] sm:$0xff]
        %v2309 = vld [vmem:[%s2306 + $0x10] sm:$0xff]
        %v2310 = vld [vmem:[%s2306 + $0x18] sm:$0xff]
        %s2311 = scalar_lea.vmem %s1412, 3
        %v2312 = vld [vmem:[%s2311] sm:$0x1]
        %v2314 = vperm.slane %v2312, 0
        %2316 = vmatpush.msra.mxu0 0.0
        %2317 = vmatpush.msra.mxu0 0.0
        %2318 = vmatpush.msra.mxu0 0.0
        %2319 = vmatpush.msra.mxu0 0.0
        %2320 = vmatpush.msra.mxu0 0.0
        %2321 = vmatpush.msra.mxu0 0.0
        %2322 = vmatpush.msra.mxu0 0.0
        %2323 = vmatpush.msra.mxu0 0.0
        %2324 = vmatpush.msra.mxu0 0.0
        %2325 = vmatpush.msra.mxu0 0.0
        %2326 = vmatpush.msra.mxu0 0.0
        %2327 = vmatpush.msra.mxu0 0.0
        %2328 = vmatpush.msra.mxu0 %v2310
        %2329 = vmatpush.msra.mxu0 %v2309
        %2330 = vmatpush.msra.mxu0 %v2308
        %2331 = vmatpush.msra.mxu0 %v2307
        %2332 = vmatmul.f32.gmra.mxu0 %v1520
        %v2333 = vpop.f32.mrf.mxu0
        %v2334 = vadd.f32 %v2314, %v2333
        %2335 = vmatmul.f32.gmra.mxu0 %v1523
        %v2336 = vpop.f32.mrf.mxu0
        %v2337 = vadd.f32 %v2314, %v2336
        %2338 = vdwg.mxu0
        %v2340 = vsel %vm1610, %v2268, 0
        %v2343 = vsel %vm1610, %v2271, 0
        %v2346 = vsel %vm1610, %v2301, 0
        %v2349 = vsel %vm1610, %v2304, 0
        %2351 = vmatpush.xpose.msra.mxu0 0.0
        %2352 = vmatpush.xpose.msra.mxu0 0.0
        %2353 = vmatpush.xpose.msra.mxu0 0.0
        %2354 = vmatpush.xpose.msra.mxu0 0.0
        %2355 = vmatpush.xpose.msra.mxu0 0.0
        %2356 = vmatpush.xpose.msra.mxu0 0.0
        %2357 = vmatpush.xpose.msra.mxu0 0.0
        %2358 = vmatpush.xpose.msra.mxu0 0.0
        %2359 = vmatpush.xpose.msra.mxu0 0.0
        %2360 = vmatpush.xpose.msra.mxu0 0.0
        %2361 = vmatpush.xpose.msra.mxu0 0.0
        %2362 = vmatpush.xpose.msra.mxu0 0.0
        %2363 = vmatpush.xpose.msra.mxu0 0.0
        %2364 = vmatpush.xpose.msra.mxu0 0.0
        %2365 = vmatpush.xpose.msra.mxu0 %v2349
        %2366 = vmatpush.xpose.msra.mxu0 %v2346
        %2367 = vmatmul.f32.gmra.mxu0 %v2340
        %v2368 = vpop.f32.mrf.mxu0
        %v2369 = vadd.f32 %v1506, %v2368
        %2370 = vmatmul.f32.gmra.mxu0 %v2343
        %v2371 = vpop.f32.mrf.mxu0
        %v2372 = vadd.f32 %v1507, %v2371
        %2373 = vdwg.mxu0
        %v2374 = vsel %vm1646, %v2369, -inf
        %2375 = vmax.xlane.f32.xlu0 %v2374
        %v2376 = vpop.xlane.xlu0 %2375
        %v2377 = vsel %vm1646, %v2372, -inf
        %2378 = vmax.xlane.f32.xlu0 %v2377
        %v2379 = vpop.xlane.xlu0 %2378
        %v2380 = vsub.f32 %v2369, %v2376
        %v2381 = vsub.f32 %v2372, %v2379
        %v2382 = vmul.f32 %v2380, 1.442695
        %v2383 = vpow.pop %v2382
        %v2384 = vmul.f32 %v2381, 1.442695
        %v2385 = vpow.pop %v2384
        %v2386 = vsel %vm1646, %v2383, 0.0
        %2387 = vadd.xlane.f32.xlu0 %v2386
        %v2388 = vpop.xlane.xlu0 %2387
        %v2389 = vsel %vm1646, %v2385, 0.0
        %2390 = vadd.xlane.f32.xlu0 %v2389
        %v2391 = vpop.xlane.xlu0 %2390
        %v2392 = vrcp.pop %v2388
        %v2393 = vmul.f32 %v2388, %v2392
        %v2394 = vsub.f32 1.0, %v2393
        %v2395 = vmul.f32 %v2392, %v2394
        %v2396 = vadd.f32 %v2392, %v2395
        %vm2397 = vweird.f32 %v2388
        %vm2398 = vweird.f32 %v2392
        %vm2399 = vmor %vm2397, %vm2398
        %v2400 = vsel %vm2399, %v2392, %v2396
        %v2401 = vand.u32 2147483647, %v2388
        %vm2402 = vcmp.eq.f32.partialorder %v2401, 8.507059e+37
        %v2403 = vand.u32 %v2388, 2147483648
        %v2404 = vor.u32 1.1754944e-38, %v2403
        %v2405 = vsel %vm2402, %v2404, %v2400
        %v2406 = vmul.f32 %v2383, %v2405
        %v2407 = vrcp.pop %v2391
        %v2408 = vmul.f32 %v2391, %v2407
        %v2409 = vsub.f32 1.0, %v2408
        %v2410 = vmul.f32 %v2407, %v2409
        %v2411 = vadd.f32 %v2407, %v2410
        %vm2412 = vweird.f32 %v2391
        %vm2413 = vweird.f32 %v2407
        %vm2414 = vmor %vm2412, %vm2413
        %v2415 = vsel %vm2414, %v2407, %v2411
        %v2416 = vand.u32 2147483647, %v2391
        %vm2417 = vcmp.eq.f32.partialorder %v2416, 8.507059e+37
        %v2418 = vand.u32 %v2391, 2147483648
        %v2419 = vor.u32 1.1754944e-38, %v2418
        %v2420 = vsel %vm2417, %v2419, %v2415
        %v2421 = vmul.f32 %v2385, %v2420
        %v2423 = vsel %vm1646, %v2406, 0
        %v2426 = vsel %vm1646, %v2421, 0
        %2428 = vmatpush.msra.mxu0 0.0
        %2429 = vmatpush.msra.mxu0 0.0
        %2430 = vmatpush.msra.mxu0 0.0
        %2431 = vmatpush.msra.mxu0 0.0
        %2432 = vmatpush.msra.mxu0 0.0
        %2433 = vmatpush.msra.mxu0 0.0
        %2434 = vmatpush.msra.mxu0 0.0
        %2435 = vmatpush.msra.mxu0 0.0
        %2436 = vmatpush.msra.mxu0 0.0
        %2437 = vmatpush.msra.mxu0 0.0
        %2438 = vmatpush.msra.mxu0 0.0
        %2439 = vmatpush.msra.mxu0 0.0
        %2440 = vmatpush.msra.mxu0 0.0
        %2441 = vmatpush.msra.mxu0 0.0
        %2442 = vmatpush.msra.mxu0 %v2337
        %2443 = vmatpush.msra.mxu0 %v2334
        %2444 = vmatmul.f32.gmra.mxu0 %v2423
        %v2445 = vpop.f32.mrf.mxu0
        %v2446 = vadd.f32 0.0, %v2445
        %2447 = vmatmul.f32.gmra.mxu0 %v2426
        %v2448 = vpop.f32.mrf.mxu0
        %v2449 = vadd.f32 0.0, %v2448
        %2450 = vdwg.mxu0
        %s2451 = scalar_lea.vmem %s1417, 24
        %v2452 = vld [vmem:[%s2451] sm:$0xff]
        %v2454 = vsel %vm1610, %v2446, 0
        %v2457 = vsel %vm1610, %v2449, 0
        %2459 = vmatpush.msra.mxu0 0.0
        %2460 = vmatpush.msra.mxu0 0.0
        %2461 = vmatpush.msra.mxu0 0.0
        %2462 = vmatpush.msra.mxu0 0.0
        %2463 = vmatpush.msra.mxu0 0.0
        %2464 = vmatpush.msra.mxu0 0.0
        %2465 = vmatpush.msra.mxu0 0.0
        %2466 = vmatpush.msra.mxu0 0.0
        %2467 = vmatpush.msra.mxu0 0.0
        %2468 = vmatpush.msra.mxu0 0.0
        %2469 = vmatpush.msra.mxu0 0.0
        %2470 = vmatpush.msra.mxu0 0.0
        %2471 = vmatpush.msra.mxu0 0.0
        %2472 = vmatpush.msra.mxu0 0.0
        %2473 = vmatpush.msra.mxu0 0.0
        %2474 = vmatpush.msra.mxu0 %v2452
        %2475 = vmatmul.f32.gmra.mxu0 %v2454
        %v2476 = vpop.f32.mrf.mxu0
        %v2477 = vadd.f32 0.0, %v2476
        %2478 = vmatmul.f32.gmra.mxu0 %v2457
        %v2479 = vpop.f32.mrf.mxu0
        %v2480 = vadd.f32 0.0, %v2479
        %2481 = vdwg.mxu0
        %v2482 = vadd.f32 %v2238, %v2477
        %v2483 = vadd.f32 %v2239, %v2480
        %v2484 = vld [vmem:[%s1420] sm:$0x1]
        %v2486 = vperm.slane %v2484, 0
        %v2488 = vadd.f32 %v2482, %v2486
        %v2489 = vadd.f32 %v2483, %v2486
        %v2490 = vld [vmem:[%s1423] sm:$0x1]
        %v2491 = vld [vmem:[%s1426] sm:$0x1]
        %v2492 = vadd.f32 %v2488, %v1500
        %v2493 = vadd.f32 %v2489, %v1501
        %v2494 = vsel %vm1518, %v2492, 0.0
        %2495 = vadd.xlane.f32.xlu0 %v2494
        %v2496 = vpop.xlane.xlu0 %2495
        %v2497 = vsel %vm1518, %v2493, 0.0
        %2498 = vadd.xlane.f32.xlu0 %v2497
        %v2499 = vpop.xlane.xlu0 %2498
        %v2500 = vrcp.pop 32.0
        %v2501 = vmul.f32 32.0, %v2500
        %v2502 = vsub.f32 1.0, %v2501
        %v2503 = vmul.f32 %v2500, %v2502
        %v2504 = vadd.f32 %v2500, %v2503
        %vm2505 = vweird.f32 %v2500
        %v2506 = vsel %vm2505, %v2500, %v2504
        %v2507 = vmul.f32 %v2496, %v2506
        %v2508 = vmul.f32 %v2499, %v2506
        %v2509 = vsub.f32 %v2492, %v2507
        %v2510 = vsub.f32 %v2493, %v2508
        %v2511 = vmul.f32 %v2509, %v2509
        %v2512 = vmul.f32 %v2510, %v2510
        %v2513 = vsel %vm1518, %v2511, 0.0
        %2514 = vadd.xlane.f32.xlu0 %v2513
        %v2515 = vpop.xlane.xlu0 %2514
        %v2516 = vsel %vm1518, %v2512, 0.0
        %2517 = vadd.xlane.f32.xlu0 %v2516
        %v2518 = vpop.xlane.xlu0 %2517
        %v2519 = vmul.f32 %v2515, %v2506
        %v2520 = vmul.f32 %v2518, %v2506
        %v2521 = vadd.f32 %v2519, 1e-05
        %v2522 = vadd.f32 %v2520, 1e-05
        %v2523 = vrsqrt.pop %v2521
        %v2524 = vmul.f32 %v2523, %v2521
        %v2525 = vmul.f32 %v2524, %v2523
        %v2526 = vmul.f32 0.5, %v2525
        %v2527 = vsub.f32 1.5, %v2526
        %v2528 = vmul.f32 %v2523, %v2527
        %vm2529 = vweird.f32 %v2521
        %vm2530 = vweird.f32 %v2523
        %vm2531 = vmor %vm2529, %vm2530
        %v2532 = vsel %vm2531, %v2523, %v2528
        %v2533 = vrsqrt.pop %v2522
        %v2534 = vmul.f32 %v2533, %v2522
        %v2535 = vmul.f32 %v2534, %v2533
        %v2536 = vmul.f32 0.5, %v2535
        %v2537 = vsub.f32 1.5, %v2536
        %v2538 = vmul.f32 %v2533, %v2537
        %vm2539 = vweird.f32 %v2522
        %vm2540 = vweird.f32 %v2533
        %vm2541 = vmor %vm2539, %vm2540
        %v2542 = vsel %vm2541, %v2533, %v2538
        %v2543 = vmul.f32 %v2509, %v2532
        %v2544 = vmul.f32 %v2510, %v2542
        %v2546 = vperm.slane %v2490, 0
        %v2548 = vmul.f32 %v2543, %v2546
        %v2549 = vmul.f32 %v2544, %v2546
        %v2551 = vperm.slane %v2491, 0
        %v2553 = vadd.f32 %v2548, %v2551
        %v2554 = vadd.f32 %v2549, %v2551
        %2556 = vset.pattern.permute.xlu0 0
        %2557 = vperm.xlu0 %2556, %v1504
        %v2558 = vpop.permute.xlu0 %2557
        %2561 = vset.pattern.permute.xlu0 0
        %2562 = vperm.xlu0 %2561, %v1505
        %v2563 = vpop.permute.xlu0 %2562
        %v2565 = vmul.f32 %v2553, %v2558
        %v2566 = vmul.f32 %v2554, %v2563
        %v2567 = vld [vmem:[%s1431] sm:$0xff]
        %v2568 = vld [vmem:[%s1431 + $0x8] sm:$0xff]
        %v2569 = vld [vmem:[%s1431 + $0x10] sm:$0xff]
        %v2570 = vld [vmem:[%s1431 + $0x18] sm:$0xff]
        %v2571 = vld [vmem:[%s1435] sm:$0x1]
        %v2573 = vperm.slane %v2571, 0
        %v2576 = vsel %vm1518, %v2565, 0
        %v2579 = vsel %vm1518, %v2566, 0
        %2581 = vmatpush.msra.mxu0 0.0
        %2582 = vmatpush.msra.mxu0 0.0
        %2583 = vmatpush.msra.mxu0 0.0
        %2584 = vmatpush.msra.mxu0 0.0
        %2585 = vmatpush.msra.mxu0 0.0
        %2586 = vmatpush.msra.mxu0 0.0
        %2587 = vmatpush.msra.mxu0 0.0
        %2588 = vmatpush.msra.mxu0 0.0
        %2589 = vmatpush.msra.mxu0 0.0
        %2590 = vmatpush.msra.mxu0 0.0
        %2591 = vmatpush.msra.mxu0 0.0
        %2592 = vmatpush.msra.mxu0 0.0
        %2593 = vmatpush.msra.mxu0 %v2570
        %2594 = vmatpush.msra.mxu0 %v2569
        %2595 = vmatpush.msra.mxu0 %v2568
        %2596 = vmatpush.msra.mxu0 %v2567
        %2597 = vmatmul.f32.gmra.mxu0 %v2576
        %v2598 = vpop.f32.mrf.mxu0
        %v2599 = vadd.f32 %v2573, %v2598
        %2600 = vmatmul.f32.gmra.mxu0 %v2579
        %v2601 = vpop.f32.mrf.mxu0
        %v2602 = vadd.f32 %v2573, %v2601
        %2603 = vdwg.mxu0
        %v2604 = vld [vmem:[%s1440] sm:$0xff]
        %v2605 = vld [vmem:[%s1440 + $0x8] sm:$0xff]
        %v2606 = vld [vmem:[%s1440 + $0x10] sm:$0xff]
        %v2607 = vld [vmem:[%s1440 + $0x18] sm:$0xff]
        %v2608 = vld [vmem:[%s1444] sm:$0x1]
        %v2610 = vperm.slane %v2608, 0
        %v2613 = vsel %vm1518, %v1502, 0
        %v2616 = vsel %vm1518, %v1503, 0
        %2618 = vmatpush.msra.mxu0 0.0
        %2619 = vmatpush.msra.mxu0 0.0
        %2620 = vmatpush.msra.mxu0 0.0
        %2621 = vmatpush.msra.mxu0 0.0
        %2622 = vmatpush.msra.mxu0 0.0
        %2623 = vmatpush.msra.mxu0 0.0
        %2624 = vmatpush.msra.mxu0 0.0
        %2625 = vmatpush.msra.mxu0 0.0
        %2626 = vmatpush.msra.mxu0 0.0
        %2627 = vmatpush.msra.mxu0 0.0
        %2628 = vmatpush.msra.mxu0 0.0
        %2629 = vmatpush.msra.mxu0 0.0
        %2630 = vmatpush.msra.mxu0 %v2607
        %2631 = vmatpush.msra.mxu0 %v2606
        %2632 = vmatpush.msra.mxu0 %v2605
        %2633 = vmatpush.msra.mxu0 %v2604
        %2634 = vmatmul.f32.gmra.mxu0 %v2613
        %v2635 = vpop.f32.mrf.mxu0
        %v2636 = vadd.f32 %v2610, %v2635
        %2637 = vmatmul.f32.gmra.mxu0 %v2616
        %v2638 = vpop.f32.mrf.mxu0
        %v2639 = vadd.f32 %v2610, %v2638
        %2640 = vdwg.mxu0
        %v2641 = vld [vmem:[%s1449] sm:$0xff]
        %v2642 = vld [vmem:[%s1449 + $0x8] sm:$0xff]
        %v2643 = vld [vmem:[%s1449 + $0x10] sm:$0xff]
        %v2644 = vld [vmem:[%s1449 + $0x18] sm:$0xff]
        %v2645 = vld [vmem:[%s1453] sm:$0x1]
        %v2647 = vperm.slane %v2645, 0
        %2649 = vmatpush.msra.mxu0 0.0
        %2650 = vmatpush.msra.mxu0 0.0
        %2651 = vmatpush.msra.mxu0 0.0
        %2652 = vmatpush.msra.mxu0 0.0
        %2653 = vmatpush.msra.mxu0 0.0
        %2654 = vmatpush.msra.mxu0 0.0
        %2655 = vmatpush.msra.mxu0 0.0
        %2656 = vmatpush.msra.mxu0 0.0
        %2657 = vmatpush.msra.mxu0 0.0
        %2658 = vmatpush.msra.mxu0 0.0
        %2659 = vmatpush.msra.mxu0 0.0
        %2660 = vmatpush.msra.mxu0 0.0
        %2661 = vmatpush.msra.mxu0 %v2644
        %2662 = vmatpush.msra.mxu0 %v2643
        %2663 = vmatpush.msra.mxu0 %v2642
        %2664 = vmatpush.msra.mxu0 %v2641
        %2665 = vmatmul.f32.gmra.mxu0 %v2613
        %v2666 = vpop.f32.mrf.mxu0
        %v2667 = vadd.f32 %v2647, %v2666
        %2668 = vmatmul.f32.gmra.mxu0 %v2616
        %v2669 = vpop.f32.mrf.mxu0
        %v2670 = vadd.f32 %v2647, %v2669
        %2671 = vdwg.mxu0
        %v2673 = vsel %vm1610, %v2599, 0
        %v2676 = vsel %vm1610, %v2602, 0
        %v2679 = vsel %vm1610, %v2636, 0
        %v2682 = vsel %vm1610, %v2639, 0
        %2684 = vmatpush.xpose.msra.mxu0 0.0
        %2685 = vmatpush.xpose.msra.mxu0 0.0
        %2686 = vmatpush.xpose.msra.mxu0 0.0
        %2687 = vmatpush.xpose.msra.mxu0 0.0
        %2688 = vmatpush.xpose.msra.mxu0 0.0
        %2689 = vmatpush.xpose.msra.mxu0 0.0
        %2690 = vmatpush.xpose.msra.mxu0 0.0
        %2691 = vmatpush.xpose.msra.mxu0 0.0
        %2692 = vmatpush.xpose.msra.mxu0 0.0
        %2693 = vmatpush.xpose.msra.mxu0 0.0
        %2694 = vmatpush.xpose.msra.mxu0 0.0
        %2695 = vmatpush.xpose.msra.mxu0 0.0
        %2696 = vmatpush.xpose.msra.mxu0 0.0
        %2697 = vmatpush.xpose.msra.mxu0 0.0
        %2698 = vmatpush.xpose.msra.mxu0 %v2682
        %2699 = vmatpush.xpose.msra.mxu0 %v2679
        %2700 = vmatmul.f32.gmra.mxu0 %v2673
        %v2701 = vpop.f32.mrf.mxu0
        %v2702 = vadd.f32 %v1508, %v2701
        %2703 = vmatmul.f32.gmra.mxu0 %v2676
        %v2704 = vpop.f32.mrf.mxu0
        %v2705 = vadd.f32 %v1509, %v2704
        %2706 = vdwg.mxu0
        %v2707 = vsel %vm1646, %v2702, -inf
        %2708 = vmax.xlane.f32.xlu0 %v2707
        %v2709 = vpop.xlane.xlu0 %2708
        %v2710 = vsel %vm1646, %v2705, -inf
        %2711 = vmax.xlane.f32.xlu0 %v2710
        %v2712 = vpop.xlane.xlu0 %2711
        %v2713 = vsub.f32 %v2702, %v2709
        %v2714 = vsub.f32 %v2705, %v2712
        %v2715 = vmul.f32 %v2713, 1.442695
        %v2716 = vpow.pop %v2715
        %v2717 = vmul.f32 %v2714, 1.442695
        %v2718 = vpow.pop %v2717
        %v2719 = vsel %vm1646, %v2716, 0.0
        %2720 = vadd.xlane.f32.xlu0 %v2719
        %v2721 = vpop.xlane.xlu0 %2720
        %v2722 = vsel %vm1646, %v2718, 0.0
        %2723 = vadd.xlane.f32.xlu0 %v2722
        %v2724 = vpop.xlane.xlu0 %2723
        %v2725 = vrcp.pop %v2721
        %v2726 = vmul.f32 %v2721, %v2725
        %v2727 = vsub.f32 1.0, %v2726
        %v2728 = vmul.f32 %v2725, %v2727
        %v2729 = vadd.f32 %v2725, %v2728
        %vm2730 = vweird.f32 %v2721
        %vm2731 = vweird.f32 %v2725
        %vm2732 = vmor %vm2730, %vm2731
        %v2733 = vsel %vm2732, %v2725, %v2729
        %v2734 = vand.u32 2147483647, %v2721
        %vm2735 = vcmp.eq.f32.partialorder %v2734, 8.507059e+37
        %v2736 = vand.u32 %v2721, 2147483648
        %v2737 = vor.u32 1.1754944e-38, %v2736
        %v2738 = vsel %vm2735, %v2737, %v2733
        %v2739 = vmul.f32 %v2716, %v2738
        %v2740 = vrcp.pop %v2724
        %v2741 = vmul.f32 %v2724, %v2740
        %v2742 = vsub.f32 1.0, %v2741
        %v2743 = vmul.f32 %v2740, %v2742
        %v2744 = vadd.f32 %v2740, %v2743
        %vm2745 = vweird.f32 %v2724
        %vm2746 = vweird.f32 %v2740
        %vm2747 = vmor %vm2745, %vm2746
        %v2748 = vsel %vm2747, %v2740, %v2744
        %v2749 = vand.u32 2147483647, %v2724
        %vm2750 = vcmp.eq.f32.partialorder %v2749, 8.507059e+37
        %v2751 = vand.u32 %v2724, 2147483648
        %v2752 = vor.u32 1.1754944e-38, %v2751
        %v2753 = vsel %vm2750, %v2752, %v2748
        %v2754 = vmul.f32 %v2718, %v2753
        %v2756 = vsel %vm1646, %v2739, 0
        %v2759 = vsel %vm1646, %v2754, 0
        %2761 = vmatpush.msra.mxu0 0.0
        %2762 = vmatpush.msra.mxu0 0.0
        %2763 = vmatpush.msra.mxu0 0.0
        %2764 = vmatpush.msra.mxu0 0.0
        %2765 = vmatpush.msra.mxu0 0.0
        %2766 = vmatpush.msra.mxu0 0.0
        %2767 = vmatpush.msra.mxu0 0.0
        %2768 = vmatpush.msra.mxu0 0.0
        %2769 = vmatpush.msra.mxu0 0.0
        %2770 = vmatpush.msra.mxu0 0.0
        %2771 = vmatpush.msra.mxu0 0.0
        %2772 = vmatpush.msra.mxu0 0.0
        %2773 = vmatpush.msra.mxu0 0.0
        %2774 = vmatpush.msra.mxu0 0.0
        %2775 = vmatpush.msra.mxu0 %v2670
        %2776 = vmatpush.msra.mxu0 %v2667
        %2777 = vmatmul.f32.gmra.mxu0 %v2756
        %v2778 = vpop.f32.mrf.mxu0
        %v2779 = vadd.f32 0.0, %v2778
        %2780 = vmatmul.f32.gmra.mxu0 %v2759
        %v2781 = vpop.f32.mrf.mxu0
        %v2782 = vadd.f32 0.0, %v2781
        %2783 = vdwg.mxu0
        %v2784 = vld [vmem:[%s1458] sm:$0xff]
        %s2785 = scalar_lea.vmem %s1431, 32
        %v2786 = vld [vmem:[%s2785] sm:$0xff]
        %v2787 = vld [vmem:[%s2785 + $0x8] sm:$0xff]
        %v2788 = vld [vmem:[%s2785 + $0x10] sm:$0xff]
        %v2789 = vld [vmem:[%s2785 + $0x18] sm:$0xff]
        %s2790 = scalar_lea.vmem %s1435, 1
        %v2791 = vld [vmem:[%s2790] sm:$0x1]
        %v2793 = vperm.slane %v2791, 0
        %2795 = vmatpush.msra.mxu0 0.0
        %2796 = vmatpush.msra.mxu0 0.0
        %2797 = vmatpush.msra.mxu0 0.0
        %2798 = vmatpush.msra.mxu0 0.0
        %2799 = vmatpush.msra.mxu0 0.0
        %2800 = vmatpush.msra.mxu0 0.0
        %2801 = vmatpush.msra.mxu0 0.0
        %2802 = vmatpush.msra.mxu0 0.0
        %2803 = vmatpush.msra.mxu0 0.0
        %2804 = vmatpush.msra.mxu0 0.0
        %2805 = vmatpush.msra.mxu0 0.0
        %2806 = vmatpush.msra.mxu0 0.0
        %2807 = vmatpush.msra.mxu0 %v2789
        %2808 = vmatpush.msra.mxu0 %v2788
        %2809 = vmatpush.msra.mxu0 %v2787
        %2810 = vmatpush.msra.mxu0 %v2786
        %2811 = vmatmul.f32.gmra.mxu0 %v2576
        %v2812 = vpop.f32.mrf.mxu0
        %v2813 = vadd.f32 %v2793, %v2812
        %2814 = vmatmul.f32.gmra.mxu0 %v2579
        %v2815 = vpop.f32.mrf.mxu0
        %v2816 = vadd.f32 %v2793, %v2815
        %2817 = vdwg.mxu0
        %s2818 = scalar_lea.vmem %s1440, 32
        %v2819 = vld [vmem:[%s2818] sm:$0xff]
        %v2820 = vld [vmem:[%s2818 + $0x8] sm:$0xff]
        %v2821 = vld [vmem:[%s2818 + $0x10] sm:$0xff]
        %v2822 = vld [vmem:[%s2818 + $0x18] sm:$0xff]
        %s2823 = scalar_lea.vmem %s1444, 1
        %v2824 = vld [vmem:[%s2823] sm:$0x1]
        %v2826 = vperm.slane %v2824, 0
        %2828 = vmatpush.msra.mxu0 0.0
        %2829 = vmatpush.msra.mxu0 0.0
        %2830 = vmatpush.msra.mxu0 0.0
        %2831 = vmatpush.msra.mxu0 0.0
        %2832 = vmatpush.msra.mxu0 0.0
        %2833 = vmatpush.msra.mxu0 0.0
        %2834 = vmatpush.msra.mxu0 0.0
        %2835 = vmatpush.msra.mxu0 0.0
        %2836 = vmatpush.msra.mxu0 0.0
        %2837 = vmatpush.msra.mxu0 0.0
        %2838 = vmatpush.msra.mxu0 0.0
        %2839 = vmatpush.msra.mxu0 0.0
        %2840 = vmatpush.msra.mxu0 %v2822
        %2841 = vmatpush.msra.mxu0 %v2821
        %2842 = vmatpush.msra.mxu0 %v2820
        %2843 = vmatpush.msra.mxu0 %v2819
        %2844 = vmatmul.f32.gmra.mxu0 %v2613
        %v2845 = vpop.f32.mrf.mxu0
        %v2846 = vadd.f32 %v2826, %v2845
        %2847 = vmatmul.f32.gmra.mxu0 %v2616
        %v2848 = vpop.f32.mrf.mxu0
        %v2849 = vadd.f32 %v2826, %v2848
        %2850 = vdwg.mxu0
        %s2851 = scalar_lea.vmem %s1449, 32
        %v2852 = vld [vmem:[%s2851] sm:$0xff]
        %v2853 = vld [vmem:[%s2851 + $0x8] sm:$0xff]
        %v2854 = vld [vmem:[%s2851 + $0x10] sm:$0xff]
        %v2855 = vld [vmem:[%s2851 + $0x18] sm:$0xff]
        %s2856 = scalar_lea.vmem %s1453, 1
        %v2857 = vld [vmem:[%s2856] sm:$0x1]
        %v2859 = vperm.slane %v2857, 0
        %2861 = vmatpush.msra.mxu0 0.0
        %2862 = vmatpush.msra.mxu0 0.0
        %2863 = vmatpush.msra.mxu0 0.0
        %2864 = vmatpush.msra.mxu0 0.0
        %2865 = vmatpush.msra.mxu0 0.0
        %2866 = vmatpush.msra.mxu0 0.0
        %2867 = vmatpush.msra.mxu0 0.0
        %2868 = vmatpush.msra.mxu0 0.0
        %2869 = vmatpush.msra.mxu0 0.0
        %2870 = vmatpush.msra.mxu0 0.0
        %2871 = vmatpush.msra.mxu0 0.0
        %2872 = vmatpush.msra.mxu0 0.0
        %2873 = vmatpush.msra.mxu0 %v2855
        %2874 = vmatpush.msra.mxu0 %v2854
        %2875 = vmatpush.msra.mxu0 %v2853
        %2876 = vmatpush.msra.mxu0 %v2852
        %2877 = vmatmul.f32.gmra.mxu0 %v2613
        %v2878 = vpop.f32.mrf.mxu0
        %v2879 = vadd.f32 %v2859, %v2878
        %2880 = vmatmul.f32.gmra.mxu0 %v2616
        %v2881 = vpop.f32.mrf.mxu0
        %v2882 = vadd.f32 %v2859, %v2881
        %2883 = vdwg.mxu0
        %v2885 = vsel %vm1610, %v2813, 0
        %v2888 = vsel %vm1610, %v2816, 0
        %v2891 = vsel %vm1610, %v2846, 0
        %v2894 = vsel %vm1610, %v2849, 0
        %2896 = vmatpush.xpose.msra.mxu0 0.0
        %2897 = vmatpush.xpose.msra.mxu0 0.0
        %2898 = vmatpush.xpose.msra.mxu0 0.0
        %2899 = vmatpush.xpose.msra.mxu0 0.0
        %2900 = vmatpush.xpose.msra.mxu0 0.0
        %2901 = vmatpush.xpose.msra.mxu0 0.0
        %2902 = vmatpush.xpose.msra.mxu0 0.0
        %2903 = vmatpush.xpose.msra.mxu0 0.0
        %2904 = vmatpush.xpose.msra.mxu0 0.0
        %2905 = vmatpush.xpose.msra.mxu0 0.0
        %2906 = vmatpush.xpose.msra.mxu0 0.0
        %2907 = vmatpush.xpose.msra.mxu0 0.0
        %2908 = vmatpush.xpose.msra.mxu0 0.0
        %2909 = vmatpush.xpose.msra.mxu0 0.0
        %2910 = vmatpush.xpose.msra.mxu0 %v2894
        %2911 = vmatpush.xpose.msra.mxu0 %v2891
        %2912 = vmatmul.f32.gmra.mxu0 %v2885
        %v2913 = vpop.f32.mrf.mxu0
        %v2914 = vadd.f32 %v1508, %v2913
        %2915 = vmatmul.f32.gmra.mxu0 %v2888
        %v2916 = vpop.f32.mrf.mxu0
        %v2917 = vadd.f32 %v1509, %v2916
        %2918 = vdwg.mxu0
        %v2919 = vsel %vm1646, %v2914, -inf
        %2920 = vmax.xlane.f32.xlu0 %v2919
        %v2921 = vpop.xlane.xlu0 %2920
        %v2922 = vsel %vm1646, %v2917, -inf
        %2923 = vmax.xlane.f32.xlu0 %v2922
        %v2924 = vpop.xlane.xlu0 %2923
        %v2925 = vsub.f32 %v2914, %v2921
        %v2926 = vsub.f32 %v2917, %v2924
        %v2927 = vmul.f32 %v2925, 1.442695
        %v2928 = vpow.pop %v2927
        %v2929 = vmul.f32 %v2926, 1.442695
        %v2930 = vpow.pop %v2929
        %v2931 = vsel %vm1646, %v2928, 0.0
        %2932 = vadd.xlane.f32.xlu0 %v2931
        %v2933 = vpop.xlane.xlu0 %2932
        %v2934 = vsel %vm1646, %v2930, 0.0
        %2935 = vadd.xlane.f32.xlu0 %v2934
        %v2936 = vpop.xlane.xlu0 %2935
        %v2937 = vrcp.pop %v2933
        %v2938 = vmul.f32 %v2933, %v2937
        %v2939 = vsub.f32 1.0, %v2938
        %v2940 = vmul.f32 %v2937, %v2939
        %v2941 = vadd.f32 %v2937, %v2940
        %vm2942 = vweird.f32 %v2933
        %vm2943 = vweird.f32 %v2937
        %vm2944 = vmor %vm2942, %vm2943
        %v2945 = vsel %vm2944, %v2937, %v2941
        %v2946 = vand.u32 2147483647, %v2933
        %vm2947 = vcmp.eq.f32.partialorder %v2946, 8.507059e+37
        %v2948 = vand.u32 %v2933, 2147483648
        %v2949 = vor.u32 1.1754944e-38, %v2948
        %v2950 = vsel %vm2947, %v2949, %v2945
        %v2951 = vmul.f32 %v2928, %v2950
        %v2952 = vrcp.pop %v2936
        %v2953 = vmul.f32 %v2936, %v2952
        %v2954 = vsub.f32 1.0, %v2953
        %v2955 = vmul.f32 %v2952, %v2954
        %v2956 = vadd.f32 %v2952, %v2955
        %vm2957 = vweird.f32 %v2936
        %vm2958 = vweird.f32 %v2952
        %vm2959 = vmor %vm2957, %vm2958
        %v2960 = vsel %vm2959, %v2952, %v2956
        %v2961 = vand.u32 2147483647, %v2936
        %vm2962 = vcmp.eq.f32.partialorder %v2961, 8.507059e+37
        %v2963 = vand.u32 %v2936, 2147483648
        %v2964 = vor.u32 1.1754944e-38, %v2963
        %v2965 = vsel %vm2962, %v2964, %v2960
        %v2966 = vmul.f32 %v2930, %v2965
        %v2968 = vsel %vm1646, %v2951, 0
        %v2971 = vsel %vm1646, %v2966, 0
        %2973 = vmatpush.msra.mxu0 0.0
        %2974 = vmatpush.msra.mxu0 0.0
        %2975 = vmatpush.msra.mxu0 0.0
        %2976 = vmatpush.msra.mxu0 0.0
        %2977 = vmatpush.msra.mxu0 0.0
        %2978 = vmatpush.msra.mxu0 0.0
        %2979 = vmatpush.msra.mxu0 0.0
        %2980 = vmatpush.msra.mxu0 0.0
        %2981 = vmatpush.msra.mxu0 0.0
        %2982 = vmatpush.msra.mxu0 0.0
        %2983 = vmatpush.msra.mxu0 0.0
        %2984 = vmatpush.msra.mxu0 0.0
        %2985 = vmatpush.msra.mxu0 0.0
        %2986 = vmatpush.msra.mxu0 0.0
        %2987 = vmatpush.msra.mxu0 %v2882
        %2988 = vmatpush.msra.mxu0 %v2879
        %2989 = vmatmul.f32.gmra.mxu0 %v2968
        %v2990 = vpop.f32.mrf.mxu0
        %v2991 = vadd.f32 0.0, %v2990
        %2992 = vmatmul.f32.gmra.mxu0 %v2971
        %v2993 = vpop.f32.mrf.mxu0
        %v2994 = vadd.f32 0.0, %v2993
        %2995 = vdwg.mxu0
        %s2996 = scalar_lea.vmem %s1458, 8
        %v2997 = vld [vmem:[%s2996] sm:$0xff]
        %v2999 = vsel %vm1610, %v2991, 0
        %v3002 = vsel %vm1610, %v2994, 0
        %3004 = vmatpush.msra.mxu0 0.0
        %3005 = vmatpush.msra.mxu0 0.0
        %3006 = vmatpush.msra.mxu0 0.0
        %3007 = vmatpush.msra.mxu0 0.0
        %3008 = vmatpush.msra.mxu0 0.0
        %3009 = vmatpush.msra.mxu0 0.0
        %3010 = vmatpush.msra.mxu0 0.0
        %3011 = vmatpush.msra.mxu0 0.0
        %3012 = vmatpush.msra.mxu0 0.0
        %3013 = vmatpush.msra.mxu0 0.0
        %3014 = vmatpush.msra.mxu0 0.0
        %3015 = vmatpush.msra.mxu0 0.0
        %3016 = vmatpush.msra.mxu0 0.0
        %3017 = vmatpush.msra.mxu0 0.0
        %3018 = vmatpush.msra.mxu0 0.0
        %3019 = vmatpush.msra.mxu0 %v2997
        %3020 = vmatmul.f32.gmra.mxu0 %v2999
        %v3021 = vpop.f32.mrf.mxu0
        %v3022 = vadd.f32 0.0, %v3021
        %3023 = vmatmul.f32.gmra.mxu0 %v3002
        %v3024 = vpop.f32.mrf.mxu0
        %v3025 = vadd.f32 0.0, %v3024
        %3026 = vdwg.mxu0
        %v3028 = vsel %vm1610, %v2779, 0
        %v3031 = vsel %vm1610, %v2782, 0
        %3033 = vmatpush.msra.mxu0 0.0
        %3034 = vmatpush.msra.mxu0 0.0
        %3035 = vmatpush.msra.mxu0 0.0
        %3036 = vmatpush.msra.mxu0 0.0
        %3037 = vmatpush.msra.mxu0 0.0
        %3038 = vmatpush.msra.mxu0 0.0
        %3039 = vmatpush.msra.mxu0 0.0
        %3040 = vmatpush.msra.mxu0 0.0
        %3041 = vmatpush.msra.mxu0 0.0
        %3042 = vmatpush.msra.mxu0 0.0
        %3043 = vmatpush.msra.mxu0 0.0
        %3044 = vmatpush.msra.mxu0 0.0
        %3045 = vmatpush.msra.mxu0 0.0
        %3046 = vmatpush.msra.mxu0 0.0
        %3047 = vmatpush.msra.mxu0 0.0
        %3048 = vmatpush.msra.mxu0 %v2784
        %3049 = vmatmul.f32.gmra.mxu0 %v3028
        %v3050 = vpop.f32.mrf.mxu0
        %v3051 = vadd.f32 %v3022, %v3050
        %3052 = vmatmul.f32.gmra.mxu0 %v3031
        %v3053 = vpop.f32.mrf.mxu0
        %v3054 = vadd.f32 %v3025, %v3053
        %3055 = vdwg.mxu0
        %s3056 = scalar_lea.vmem %s1431, 64
        %v3057 = vld [vmem:[%s3056] sm:$0xff]
        %v3058 = vld [vmem:[%s3056 + $0x8] sm:$0xff]
        %v3059 = vld [vmem:[%s3056 + $0x10] sm:$0xff]
        %v3060 = vld [vmem:[%s3056 + $0x18] sm:$0xff]
        %s3061 = scalar_lea.vmem %s1435, 2
        %v3062 = vld [vmem:[%s3061] sm:$0x1]
        %v3064 = vperm.slane %v3062, 0
        %3066 = vmatpush.msra.mxu0 0.0
        %3067 = vmatpush.msra.mxu0 0.0
        %3068 = vmatpush.msra.mxu0 0.0
        %3069 = vmatpush.msra.mxu0 0.0
        %3070 = vmatpush.msra.mxu0 0.0
        %3071 = vmatpush.msra.mxu0 0.0
        %3072 = vmatpush.msra.mxu0 0.0
        %3073 = vmatpush.msra.mxu0 0.0
        %3074 = vmatpush.msra.mxu0 0.0
        %3075 = vmatpush.msra.mxu0 0.0
        %3076 = vmatpush.msra.mxu0 0.0
        %3077 = vmatpush.msra.mxu0 0.0
        %3078 = vmatpush.msra.mxu0 %v3060
        %3079 = vmatpush.msra.mxu0 %v3059
        %3080 = vmatpush.msra.mxu0 %v3058
        %3081 = vmatpush.msra.mxu0 %v3057
        %3082 = vmatmul.f32.gmra.mxu0 %v2576
        %v3083 = vpop.f32.mrf.mxu0
        %v3084 = vadd.f32 %v3064, %v3083
        %3085 = vmatmul.f32.gmra.mxu0 %v2579
        %v3086 = vpop.f32.mrf.mxu0
        %v3087 = vadd.f32 %v3064, %v3086
        %3088 = vdwg.mxu0
        %s3089 = scalar_lea.vmem %s1440, 64
        %v3090 = vld [vmem:[%s3089] sm:$0xff]
        %v3091 = vld [vmem:[%s3089 + $0x8] sm:$0xff]
        %v3092 = vld [vmem:[%s3089 + $0x10] sm:$0xff]
        %v3093 = vld [vmem:[%s3089 + $0x18] sm:$0xff]
        %s3094 = scalar_lea.vmem %s1444, 2
        %v3095 = vld [vmem:[%s3094] sm:$0x1]
        %v3097 = vperm.slane %v3095, 0
        %3099 = vmatpush.msra.mxu0 0.0
        %3100 = vmatpush.msra.mxu0 0.0
        %3101 = vmatpush.msra.mxu0 0.0
        %3102 = vmatpush.msra.mxu0 0.0
        %3103 = vmatpush.msra.mxu0 0.0
        %3104 = vmatpush.msra.mxu0 0.0
        %3105 = vmatpush.msra.mxu0 0.0
        %3106 = vmatpush.msra.mxu0 0.0
        %3107 = vmatpush.msra.mxu0 0.0
        %3108 = vmatpush.msra.mxu0 0.0
        %3109 = vmatpush.msra.mxu0 0.0
        %3110 = vmatpush.msra.mxu0 0.0
        %3111 = vmatpush.msra.mxu0 %v3093
        %3112 = vmatpush.msra.mxu0 %v3092
        %3113 = vmatpush.msra.mxu0 %v3091
        %3114 = vmatpush.msra.mxu0 %v3090
        %3115 = vmatmul.f32.gmra.mxu0 %v2613
        %v3116 = vpop.f32.mrf.mxu0
        %v3117 = vadd.f32 %v3097, %v3116
        %3118 = vmatmul.f32.gmra.mxu0 %v2616
        %v3119 = vpop.f32.mrf.mxu0
        %v3120 = vadd.f32 %v3097, %v3119
        %3121 = vdwg.mxu0
        %s3122 = scalar_lea.vmem %s1449, 64
        %v3123 = vld [vmem:[%s3122] sm:$0xff]
        %v3124 = vld [vmem:[%s3122 + $0x8] sm:$0xff]
        %v3125 = vld [vmem:[%s3122 + $0x10] sm:$0xff]
        %v3126 = vld [vmem:[%s3122 + $0x18] sm:$0xff]
        %s3127 = scalar_lea.vmem %s1453, 2
        %v3128 = vld [vmem:[%s3127] sm:$0x1]
        %v3130 = vperm.slane %v3128, 0
        %3132 = vmatpush.msra.mxu0 0.0
        %3133 = vmatpush.msra.mxu0 0.0
        %3134 = vmatpush.msra.mxu0 0.0
        %3135 = vmatpush.msra.mxu0 0.0
        %3136 = vmatpush.msra.mxu0 0.0
        %3137 = vmatpush.msra.mxu0 0.0
        %3138 = vmatpush.msra.mxu0 0.0
        %3139 = vmatpush.msra.mxu0 0.0
        %3140 = vmatpush.msra.mxu0 0.0
        %3141 = vmatpush.msra.mxu0 0.0
        %3142 = vmatpush.msra.mxu0 0.0
        %3143 = vmatpush.msra.mxu0 0.0
        %3144 = vmatpush.msra.mxu0 %v3126
        %3145 = vmatpush.msra.mxu0 %v3125
        %3146 = vmatpush.msra.mxu0 %v3124
        %3147 = vmatpush.msra.mxu0 %v3123
        %3148 = vmatmul.f32.gmra.mxu0 %v2613
        %v3149 = vpop.f32.mrf.mxu0
        %v3150 = vadd.f32 %v3130, %v3149
        %3151 = vmatmul.f32.gmra.mxu0 %v2616
        %v3152 = vpop.f32.mrf.mxu0
        %v3153 = vadd.f32 %v3130, %v3152
        %3154 = vdwg.mxu0
        %v3156 = vsel %vm1610, %v3084, 0
        %v3159 = vsel %vm1610, %v3087, 0
        %v3162 = vsel %vm1610, %v3117, 0
        %v3165 = vsel %vm1610, %v3120, 0
        %3167 = vmatpush.xpose.msra.mxu0 0.0
        %3168 = vmatpush.xpose.msra.mxu0 0.0
        %3169 = vmatpush.xpose.msra.mxu0 0.0
        %3170 = vmatpush.xpose.msra.mxu0 0.0
        %3171 = vmatpush.xpose.msra.mxu0 0.0
        %3172 = vmatpush.xpose.msra.mxu0 0.0
        %3173 = vmatpush.xpose.msra.mxu0 0.0
        %3174 = vmatpush.xpose.msra.mxu0 0.0
        %3175 = vmatpush.xpose.msra.mxu0 0.0
        %3176 = vmatpush.xpose.msra.mxu0 0.0
        %3177 = vmatpush.xpose.msra.mxu0 0.0
        %3178 = vmatpush.xpose.msra.mxu0 0.0
        %3179 = vmatpush.xpose.msra.mxu0 0.0
        %3180 = vmatpush.xpose.msra.mxu0 0.0
        %3181 = vmatpush.xpose.msra.mxu0 %v3165
        %3182 = vmatpush.xpose.msra.mxu0 %v3162
        %3183 = vmatmul.f32.gmra.mxu0 %v3156
        %v3184 = vpop.f32.mrf.mxu0
        %v3185 = vadd.f32 %v1508, %v3184
        %3186 = vmatmul.f32.gmra.mxu0 %v3159
        %v3187 = vpop.f32.mrf.mxu0
        %v3188 = vadd.f32 %v1509, %v3187
        %3189 = vdwg.mxu0
        %v3190 = vsel %vm1646, %v3185, -inf
        %3191 = vmax.xlane.f32.xlu0 %v3190
        %v3192 = vpop.xlane.xlu0 %3191
        %v3193 = vsel %vm1646, %v3188, -inf
        %3194 = vmax.xlane.f32.xlu0 %v3193
        %v3195 = vpop.xlane.xlu0 %3194
        %v3196 = vsub.f32 %v3185, %v3192
        %v3197 = vsub.f32 %v3188, %v3195
        %v3198 = vmul.f32 %v3196, 1.442695
        %v3199 = vpow.pop %v3198
        %v3200 = vmul.f32 %v3197, 1.442695
        %v3201 = vpow.pop %v3200
        %v3202 = vsel %vm1646, %v3199, 0.0
        %3203 = vadd.xlane.f32.xlu0 %v3202
        %v3204 = vpop.xlane.xlu0 %3203
        %v3205 = vsel %vm1646, %v3201, 0.0
        %3206 = vadd.xlane.f32.xlu0 %v3205
        %v3207 = vpop.xlane.xlu0 %3206
        %v3208 = vrcp.pop %v3204
        %v3209 = vmul.f32 %v3204, %v3208
        %v3210 = vsub.f32 1.0, %v3209
        %v3211 = vmul.f32 %v3208, %v3210
        %v3212 = vadd.f32 %v3208, %v3211
        %vm3213 = vweird.f32 %v3204
        %vm3214 = vweird.f32 %v3208
        %vm3215 = vmor %vm3213, %vm3214
        %v3216 = vsel %vm3215, %v3208, %v3212
        %v3217 = vand.u32 2147483647, %v3204
        %vm3218 = vcmp.eq.f32.partialorder %v3217, 8.507059e+37
        %v3219 = vand.u32 %v3204, 2147483648
        %v3220 = vor.u32 1.1754944e-38, %v3219
        %v3221 = vsel %vm3218, %v3220, %v3216
        %v3222 = vmul.f32 %v3199, %v3221
        %v3223 = vrcp.pop %v3207
        %v3224 = vmul.f32 %v3207, %v3223
        %v3225 = vsub.f32 1.0, %v3224
        %v3226 = vmul.f32 %v3223, %v3225
        %v3227 = vadd.f32 %v3223, %v3226
        %vm3228 = vweird.f32 %v3207
        %vm3229 = vweird.f32 %v3223
        %vm3230 = vmor %vm3228, %vm3229
        %v3231 = vsel %vm3230, %v3223, %v3227
        %v3232 = vand.u32 2147483647, %v3207
        %vm3233 = vcmp.eq.f32.partialorder %v3232, 8.507059e+37
        %v3234 = vand.u32 %v3207, 2147483648
        %v3235 = vor.u32 1.1754944e-38, %v3234
        %v3236 = vsel %vm3233, %v3235, %v3231
        %v3237 = vmul.f32 %v3201, %v3236
        %v3239 = vsel %vm1646, %v3222, 0
        %v3242 = vsel %vm1646, %v3237, 0
        %3244 = vmatpush.msra.mxu0 0.0
        %3245 = vmatpush.msra.mxu0 0.0
        %3246 = vmatpush.msra.mxu0 0.0
        %3247 = vmatpush.msra.mxu0 0.0
        %3248 = vmatpush.msra.mxu0 0.0
        %3249 = vmatpush.msra.mxu0 0.0
        %3250 = vmatpush.msra.mxu0 0.0
        %3251 = vmatpush.msra.mxu0 0.0
        %3252 = vmatpush.msra.mxu0 0.0
        %3253 = vmatpush.msra.mxu0 0.0
        %3254 = vmatpush.msra.mxu0 0.0
        %3255 = vmatpush.msra.mxu0 0.0
        %3256 = vmatpush.msra.mxu0 0.0
        %3257 = vmatpush.msra.mxu0 0.0
        %3258 = vmatpush.msra.mxu0 %v3153
        %3259 = vmatpush.msra.mxu0 %v3150
        %3260 = vmatmul.f32.gmra.mxu0 %v3239
        %v3261 = vpop.f32.mrf.mxu0
        %v3262 = vadd.f32 0.0, %v3261
        %3263 = vmatmul.f32.gmra.mxu0 %v3242
        %v3264 = vpop.f32.mrf.mxu0
        %v3265 = vadd.f32 0.0, %v3264
        %3266 = vdwg.mxu0
        %s3267 = scalar_lea.vmem %s1458, 16
        %v3268 = vld [vmem:[%s3267] sm:$0xff]
        %v3270 = vsel %vm1610, %v3262, 0
        %v3273 = vsel %vm1610, %v3265, 0
        %3275 = vmatpush.msra.mxu0 0.0
        %3276 = vmatpush.msra.mxu0 0.0
        %3277 = vmatpush.msra.mxu0 0.0
        %3278 = vmatpush.msra.mxu0 0.0
        %3279 = vmatpush.msra.mxu0 0.0
        %3280 = vmatpush.msra.mxu0 0.0
        %3281 = vmatpush.msra.mxu0 0.0
        %3282 = vmatpush.msra.mxu0 0.0
        %3283 = vmatpush.msra.mxu0 0.0
        %3284 = vmatpush.msra.mxu0 0.0
        %3285 = vmatpush.msra.mxu0 0.0
        %3286 = vmatpush.msra.mxu0 0.0
        %3287 = vmatpush.msra.mxu0 0.0
        %3288 = vmatpush.msra.mxu0 0.0
        %3289 = vmatpush.msra.mxu0 0.0
        %3290 = vmatpush.msra.mxu0 %v3268
        %3291 = vmatmul.f32.gmra.mxu0 %v3270
        %v3292 = vpop.f32.mrf.mxu0
        %v3293 = vadd.f32 0.0, %v3292
        %3294 = vmatmul.f32.gmra.mxu0 %v3273
        %v3295 = vpop.f32.mrf.mxu0
        %v3296 = vadd.f32 0.0, %v3295
        %3297 = vdwg.mxu0
        %v3298 = vadd.f32 %v3051, %v3293
        %v3299 = vadd.f32 %v3054, %v3296
        %s3300 = scalar_lea.vmem %s1431, 96
        %v3301 = vld [vmem:[%s3300] sm:$0xff]
        %v3302 = vld [vmem:[%s3300 + $0x8] sm:$0xff]
        %v3303 = vld [vmem:[%s3300 + $0x10] sm:$0xff]
        %v3304 = vld [vmem:[%s3300 + $0x18] sm:$0xff]
        %s3305 = scalar_lea.vmem %s1435, 3
        %v3306 = vld [vmem:[%s3305] sm:$0x1]
        %v3308 = vperm.slane %v3306, 0
        %3310 = vmatpush.msra.mxu0 0.0
        %3311 = vmatpush.msra.mxu0 0.0
        %3312 = vmatpush.msra.mxu0 0.0
        %3313 = vmatpush.msra.mxu0 0.0
        %3314 = vmatpush.msra.mxu0 0.0
        %3315 = vmatpush.msra.mxu0 0.0
        %3316 = vmatpush.msra.mxu0 0.0
        %3317 = vmatpush.msra.mxu0 0.0
        %3318 = vmatpush.msra.mxu0 0.0
        %3319 = vmatpush.msra.mxu0 0.0
        %3320 = vmatpush.msra.mxu0 0.0
        %3321 = vmatpush.msra.mxu0 0.0
        %3322 = vmatpush.msra.mxu0 %v3304
        %3323 = vmatpush.msra.mxu0 %v3303
        %3324 = vmatpush.msra.mxu0 %v3302
        %3325 = vmatpush.msra.mxu0 %v3301
        %3326 = vmatmul.f32.gmra.mxu0 %v2576
        %v3327 = vpop.f32.mrf.mxu0
        %v3328 = vadd.f32 %v3308, %v3327
        %3329 = vmatmul.f32.gmra.mxu0 %v2579
        %v3330 = vpop.f32.mrf.mxu0
        %v3331 = vadd.f32 %v3308, %v3330
        %3332 = vdwg.mxu0
        %s3333 = scalar_lea.vmem %s1440, 96
        %v3334 = vld [vmem:[%s3333] sm:$0xff]
        %v3335 = vld [vmem:[%s3333 + $0x8] sm:$0xff]
        %v3336 = vld [vmem:[%s3333 + $0x10] sm:$0xff]
        %v3337 = vld [vmem:[%s3333 + $0x18] sm:$0xff]
        %s3338 = scalar_lea.vmem %s1444, 3
        %v3339 = vld [vmem:[%s3338] sm:$0x1]
        %v3341 = vperm.slane %v3339, 0
        %3343 = vmatpush.msra.mxu0 0.0
        %3344 = vmatpush.msra.mxu0 0.0
        %3345 = vmatpush.msra.mxu0 0.0
        %3346 = vmatpush.msra.mxu0 0.0
        %3347 = vmatpush.msra.mxu0 0.0
        %3348 = vmatpush.msra.mxu0 0.0
        %3349 = vmatpush.msra.mxu0 0.0
        %3350 = vmatpush.msra.mxu0 0.0
        %3351 = vmatpush.msra.mxu0 0.0
        %3352 = vmatpush.msra.mxu0 0.0
        %3353 = vmatpush.msra.mxu0 0.0
        %3354 = vmatpush.msra.mxu0 0.0
        %3355 = vmatpush.msra.mxu0 %v3337
        %3356 = vmatpush.msra.mxu0 %v3336
        %3357 = vmatpush.msra.mxu0 %v3335
        %3358 = vmatpush.msra.mxu0 %v3334
        %3359 = vmatmul.f32.gmra.mxu0 %v2613
        %v3360 = vpop.f32.mrf.mxu0
        %v3361 = vadd.f32 %v3341, %v3360
        %3362 = vmatmul.f32.gmra.mxu0 %v2616
        %v3363 = vpop.f32.mrf.mxu0
        %v3364 = vadd.f32 %v3341, %v3363
        %3365 = vdwg.mxu0
        %s3366 = scalar_lea.vmem %s1449, 96
        %v3367 = vld [vmem:[%s3366] sm:$0xff]
        %v3368 = vld [vmem:[%s3366 + $0x8] sm:$0xff]
        %v3369 = vld [vmem:[%s3366 + $0x10] sm:$0xff]
        %v3370 = vld [vmem:[%s3366 + $0x18] sm:$0xff]
        %s3371 = scalar_lea.vmem %s1453, 3
        %v3372 = vld [vmem:[%s3371] sm:$0x1]
        %v3374 = vperm.slane %v3372, 0
        %3376 = vmatpush.msra.mxu0 0.0
        %3377 = vmatpush.msra.mxu0 0.0
        %3378 = vmatpush.msra.mxu0 0.0
        %3379 = vmatpush.msra.mxu0 0.0
        %3380 = vmatpush.msra.mxu0 0.0
        %3381 = vmatpush.msra.mxu0 0.0
        %3382 = vmatpush.msra.mxu0 0.0
        %3383 = vmatpush.msra.mxu0 0.0
        %3384 = vmatpush.msra.mxu0 0.0
        %3385 = vmatpush.msra.mxu0 0.0
        %3386 = vmatpush.msra.mxu0 0.0
        %3387 = vmatpush.msra.mxu0 0.0
        %3388 = vmatpush.msra.mxu0 %v3370
        %3389 = vmatpush.msra.mxu0 %v3369
        %3390 = vmatpush.msra.mxu0 %v3368
        %3391 = vmatpush.msra.mxu0 %v3367
        %3392 = vmatmul.f32.gmra.mxu0 %v2613
        %v3393 = vpop.f32.mrf.mxu0
        %v3394 = vadd.f32 %v3374, %v3393
        %3395 = vmatmul.f32.gmra.mxu0 %v2616
        %v3396 = vpop.f32.mrf.mxu0
        %v3397 = vadd.f32 %v3374, %v3396
        %3398 = vdwg.mxu0
        %v3400 = vsel %vm1610, %v3328, 0
        %v3403 = vsel %vm1610, %v3331, 0
        %v3406 = vsel %vm1610, %v3361, 0
        %v3409 = vsel %vm1610, %v3364, 0
        %3411 = vmatpush.xpose.msra.mxu0 0.0
        %3412 = vmatpush.xpose.msra.mxu0 0.0
        %3413 = vmatpush.xpose.msra.mxu0 0.0
        %3414 = vmatpush.xpose.msra.mxu0 0.0
        %3415 = vmatpush.xpose.msra.mxu0 0.0
        %3416 = vmatpush.xpose.msra.mxu0 0.0
        %3417 = vmatpush.xpose.msra.mxu0 0.0
        %3418 = vmatpush.xpose.msra.mxu0 0.0
        %3419 = vmatpush.xpose.msra.mxu0 0.0
        %3420 = vmatpush.xpose.msra.mxu0 0.0
        %3421 = vmatpush.xpose.msra.mxu0 0.0
        %3422 = vmatpush.xpose.msra.mxu0 0.0
        %3423 = vmatpush.xpose.msra.mxu0 0.0
        %3424 = vmatpush.xpose.msra.mxu0 0.0
        %3425 = vmatpush.xpose.msra.mxu0 %v3409
        %3426 = vmatpush.xpose.msra.mxu0 %v3406
        %3427 = vmatmul.f32.gmra.mxu0 %v3400
        %v3428 = vpop.f32.mrf.mxu0
        %v3429 = vadd.f32 %v1508, %v3428
        %3430 = vmatmul.f32.gmra.mxu0 %v3403
        %v3431 = vpop.f32.mrf.mxu0
        %v3432 = vadd.f32 %v1509, %v3431
        %3433 = vdwg.mxu0
        %v3434 = vsel %vm1646, %v3429, -inf
        %3435 = vmax.xlane.f32.xlu0 %v3434
        %v3436 = vpop.xlane.xlu0 %3435
        %v3437 = vsel %vm1646, %v3432, -inf
        %3438 = vmax.xlane.f32.xlu0 %v3437
        %v3439 = vpop.xlane.xlu0 %3438
        %v3440 = vsub.f32 %v3429, %v3436
        %v3441 = vsub.f32 %v3432, %v3439
        %v3442 = vmul.f32 %v3440, 1.442695
        %v3443 = vpow.pop %v3442
        %v3444 = vmul.f32 %v3441, 1.442695
        %v3445 = vpow.pop %v3444
        %v3446 = vsel %vm1646, %v3443, 0.0
        %3447 = vadd.xlane.f32.xlu0 %v3446
        %v3448 = vpop.xlane.xlu0 %3447
        %v3449 = vsel %vm1646, %v3445, 0.0
        %3450 = vadd.xlane.f32.xlu0 %v3449
        %v3451 = vpop.xlane.xlu0 %3450
        %v3452 = vrcp.pop %v3448
        %v3453 = vmul.f32 %v3448, %v3452
        %v3454 = vsub.f32 1.0, %v3453
        %v3455 = vmul.f32 %v3452, %v3454
        %v3456 = vadd.f32 %v3452, %v3455
        %vm3457 = vweird.f32 %v3448
        %vm3458 = vweird.f32 %v3452
        %vm3459 = vmor %vm3457, %vm3458
        %v3460 = vsel %vm3459, %v3452, %v3456
        %v3461 = vand.u32 2147483647, %v3448
        %vm3462 = vcmp.eq.f32.partialorder %v3461, 8.507059e+37
        %v3463 = vand.u32 %v3448, 2147483648
        %v3464 = vor.u32 1.1754944e-38, %v3463
        %v3465 = vsel %vm3462, %v3464, %v3460
        %v3466 = vmul.f32 %v3443, %v3465
        %v3467 = vrcp.pop %v3451
        %v3468 = vmul.f32 %v3451, %v3467
        %v3469 = vsub.f32 1.0, %v3468
        %v3470 = vmul.f32 %v3467, %v3469
        %v3471 = vadd.f32 %v3467, %v3470
        %vm3472 = vweird.f32 %v3451
        %vm3473 = vweird.f32 %v3467
        %vm3474 = vmor %vm3472, %vm3473
        %v3475 = vsel %vm3474, %v3467, %v3471
        %v3476 = vand.u32 2147483647, %v3451
        %vm3477 = vcmp.eq.f32.partialorder %v3476, 8.507059e+37
        %v3478 = vand.u32 %v3451, 2147483648
        %v3479 = vor.u32 1.1754944e-38, %v3478
        %v3480 = vsel %vm3477, %v3479, %v3475
        %v3481 = vmul.f32 %v3445, %v3480
        %v3483 = vsel %vm1646, %v3466, 0
        %v3486 = vsel %vm1646, %v3481, 0
        %3488 = vmatpush.msra.mxu0 0.0
        %3489 = vmatpush.msra.mxu0 0.0
        %3490 = vmatpush.msra.mxu0 0.0
        %3491 = vmatpush.msra.mxu0 0.0
        %3492 = vmatpush.msra.mxu0 0.0
        %3493 = vmatpush.msra.mxu0 0.0
        %3494 = vmatpush.msra.mxu0 0.0
        %3495 = vmatpush.msra.mxu0 0.0
        %3496 = vmatpush.msra.mxu0 0.0
        %3497 = vmatpush.msra.mxu0 0.0
        %3498 = vmatpush.msra.mxu0 0.0
        %3499 = vmatpush.msra.mxu0 0.0
        %3500 = vmatpush.msra.mxu0 0.0
        %3501 = vmatpush.msra.mxu0 0.0
        %3502 = vmatpush.msra.mxu0 %v3397
        %3503 = vmatpush.msra.mxu0 %v3394
        %3504 = vmatmul.f32.gmra.mxu0 %v3483
        %v3505 = vpop.f32.mrf.mxu0
        %v3506 = vadd.f32 0.0, %v3505
        %3507 = vmatmul.f32.gmra.mxu0 %v3486
        %v3508 = vpop.f32.mrf.mxu0
        %v3509 = vadd.f32 0.0, %v3508
        %3510 = vdwg.mxu0
        %s3511 = scalar_lea.vmem %s1458, 24
        %v3512 = vld [vmem:[%s3511] sm:$0xff]
        %v3514 = vsel %vm1610, %v3506, 0
        %v3517 = vsel %vm1610, %v3509, 0
        %3519 = vmatpush.msra.mxu0 0.0
        %3520 = vmatpush.msra.mxu0 0.0
        %3521 = vmatpush.msra.mxu0 0.0
        %3522 = vmatpush.msra.mxu0 0.0
        %3523 = vmatpush.msra.mxu0 0.0
        %3524 = vmatpush.msra.mxu0 0.0
        %3525 = vmatpush.msra.mxu0 0.0
        %3526 = vmatpush.msra.mxu0 0.0
        %3527 = vmatpush.msra.mxu0 0.0
        %3528 = vmatpush.msra.mxu0 0.0
        %3529 = vmatpush.msra.mxu0 0.0
        %3530 = vmatpush.msra.mxu0 0.0
        %3531 = vmatpush.msra.mxu0 0.0
        %3532 = vmatpush.msra.mxu0 0.0
        %3533 = vmatpush.msra.mxu0 0.0
        %3534 = vmatpush.msra.mxu0 %v3512
        %3535 = vmatmul.f32.gmra.mxu0 %v3514
        %v3536 = vpop.f32.mrf.mxu0
        %v3537 = vadd.f32 0.0, %v3536
        %3538 = vmatmul.f32.gmra.mxu0 %v3517
        %v3539 = vpop.f32.mrf.mxu0
        %v3540 = vadd.f32 0.0, %v3539
        %3541 = vdwg.mxu0
        %v3542 = vadd.f32 %v3298, %v3537
        %v3543 = vadd.f32 %v3299, %v3540
        %v3544 = vld [vmem:[%s1461] sm:$0x1]
        %v3546 = vperm.slane %v3544, 0
        %v3548 = vadd.f32 %v3542, %v3546
        %v3549 = vadd.f32 %v3543, %v3546
        %v3550 = vld [vmem:[%s1464] sm:$0x1]
        %v3551 = vld [vmem:[%s1467] sm:$0x1]
        %v3552 = vadd.f32 %v3548, %v2565
        %v3553 = vadd.f32 %v3549, %v2566
        %v3554 = vsel %vm1518, %v3552, 0.0
        %3555 = vadd.xlane.f32.xlu0 %v3554
        %v3556 = vpop.xlane.xlu0 %3555
        %v3557 = vsel %vm1518, %v3553, 0.0
        %3558 = vadd.xlane.f32.xlu0 %v3557
        %v3559 = vpop.xlane.xlu0 %3558
        %v3560 = vmul.f32 %v3556, %v2506
        %v3561 = vmul.f32 %v3559, %v2506
        %v3562 = vsub.f32 %v3552, %v3560
        %v3563 = vsub.f32 %v3553, %v3561
        %v3564 = vmul.f32 %v3562, %v3562
        %v3565 = vmul.f32 %v3563, %v3563
        %v3566 = vsel %vm1518, %v3564, 0.0
        %3567 = vadd.xlane.f32.xlu0 %v3566
        %v3568 = vpop.xlane.xlu0 %3567
        %v3569 = vsel %vm1518, %v3565, 0.0
        %3570 = vadd.xlane.f32.xlu0 %v3569
        %v3571 = vpop.xlane.xlu0 %3570
        %v3572 = vmul.f32 %v3568, %v2506
        %v3573 = vmul.f32 %v3571, %v2506
        %v3574 = vadd.f32 %v3572, 1e-05
        %v3575 = vadd.f32 %v3573, 1e-05
        %v3576 = vrsqrt.pop %v3574
        %v3577 = vmul.f32 %v3576, %v3574
        %v3578 = vmul.f32 %v3577, %v3576
        %v3579 = vmul.f32 0.5, %v3578
        %v3580 = vsub.f32 1.5, %v3579
        %v3581 = vmul.f32 %v3576, %v3580
        %vm3582 = vweird.f32 %v3574
        %vm3583 = vweird.f32 %v3576
        %vm3584 = vmor %vm3582, %vm3583
        %v3585 = vsel %vm3584, %v3576, %v3581
        %v3586 = vrsqrt.pop %v3575
        %v3587 = vmul.f32 %v3586, %v3575
        %v3588 = vmul.f32 %v3587, %v3586
        %v3589 = vmul.f32 0.5, %v3588
        %v3590 = vsub.f32 1.5, %v3589
        %v3591 = vmul.f32 %v3586, %v3590
        %vm3592 = vweird.f32 %v3575
        %vm3593 = vweird.f32 %v3586
        %vm3594 = vmor %vm3592, %vm3593
        %v3595 = vsel %vm3594, %v3586, %v3591
        %v3596 = vmul.f32 %v3562, %v3585
        %v3597 = vmul.f32 %v3563, %v3595
        %v3599 = vperm.slane %v3550, 0
        %v3601 = vmul.f32 %v3596, %v3599
        %v3602 = vmul.f32 %v3597, %v3599
        %v3604 = vperm.slane %v3551, 0
        %v3606 = vadd.f32 %v3601, %v3604
        %v3607 = vadd.f32 %v3602, %v3604
        %v3608 = vmul.f32 %v3606, %v2558
        %v3609 = vmul.f32 %v3607, %v2563
        %v3610 = vld [vmem:[%s1472] sm:$0xff]
        %v3611 = vld [vmem:[%s1472 + $0x8] sm:$0xff]
        %v3612 = vld [vmem:[%s1472 + $0x10] sm:$0xff]
        %v3613 = vld [vmem:[%s1472 + $0x18] sm:$0xff]
        %v3614 = vld [vmem:[%s1475] sm:$0x1]
        %v3616 = vperm.slane %v3614, 0
        %v3619 = vsel %vm1518, %v3608, 0
        %v3622 = vsel %vm1518, %v3609, 0
        %3624 = vmatpush.msra.mxu0 0.0
        %3625 = vmatpush.msra.mxu0 0.0
        %3626 = vmatpush.msra.mxu0 0.0
        %3627 = vmatpush.msra.mxu0 0.0
        %3628 = vmatpush.msra.mxu0 0.0
        %3629 = vmatpush.msra.mxu0 0.0
        %3630 = vmatpush.msra.mxu0 0.0
        %3631 = vmatpush.msra.mxu0 0.0
        %3632 = vmatpush.msra.mxu0 0.0
        %3633 = vmatpush.msra.mxu0 0.0
        %3634 = vmatpush.msra.mxu0 0.0
        %3635 = vmatpush.msra.mxu0 0.0
        %3636 = vmatpush.msra.mxu0 %v3613
        %3637 = vmatpush.msra.mxu0 %v3612
        %3638 = vmatpush.msra.mxu0 %v3611
        %3639 = vmatpush.msra.mxu0 %v3610
        %3640 = vmatmul.f32.gmra.mxu0 %v3619
        %v3641 = vpop.f32.mrf.mxu0
        %v3642 = vadd.f32 %v3616, %v3641
        %3643 = vmatmul.f32.gmra.mxu0 %v3622
        %v3644 = vpop.f32.mrf.mxu0
        %v3645 = vadd.f32 %v3616, %v3644
        %3646 = vdwg.mxu0
        %v3647 = vmax.f32 %v3642, 0.0
        %v3648 = vmax.f32 %v3645, 0.0
        %v3649 = vld [vmem:[%s1480] sm:$0xff]
        %v3650 = vld [vmem:[%s1480 + $0x8] sm:$0xff]
        %v3651 = vld [vmem:[%s1480 + $0x10] sm:$0xff]
        %v3652 = vld [vmem:[%s1480 + $0x18] sm:$0xff]
        %v3653 = vld [vmem:[%s1480 + $0x20] sm:$0xff]
        %v3654 = vld [vmem:[%s1480 + $0x28] sm:$0xff]
        %v3655 = vld [vmem:[%s1480 + $0x30] sm:$0xff]
        %v3656 = vld [vmem:[%s1480 + $0x38] sm:$0xff]
        %v3657 = vld [vmem:[%s1483] sm:$0x1]
        %v3659 = vperm.slane %v3657, 0
        %vm3661 = vcmask 523264
        %v3663 = vsel %vm3661, %v3647, 0
        %v3666 = vsel %vm3661, %v3648, 0
        %3668 = vmatpush.msra.mxu0 0.0
        %3669 = vmatpush.msra.mxu0 0.0
        %3670 = vmatpush.msra.mxu0 0.0
        %3671 = vmatpush.msra.mxu0 0.0
        %3672 = vmatpush.msra.mxu0 0.0
        %3673 = vmatpush.msra.mxu0 0.0
        %3674 = vmatpush.msra.mxu0 0.0
        %3675 = vmatpush.msra.mxu0 0.0
        %3676 = vmatpush.msra.mxu0 %v3656
        %3677 = vmatpush.msra.mxu0 %v3655
        %3678 = vmatpush.msra.mxu0 %v3654
        %3679 = vmatpush.msra.mxu0 %v3653
        %3680 = vmatpush.msra.mxu0 %v3652
        %3681 = vmatpush.msra.mxu0 %v3651
        %3682 = vmatpush.msra.mxu0 %v3650
        %3683 = vmatpush.msra.mxu0 %v3649
        %3684 = vmatmul.f32.gmra.mxu0 %v3663
        %v3685 = vpop.f32.mrf.mxu0
        %v3686 = vadd.f32 %v3659, %v3685
        %3687 = vmatmul.f32.gmra.mxu0 %v3666
        %v3688 = vpop.f32.mrf.mxu0
        %v3689 = vadd.f32 %v3659, %v3688
        %3690 = vdwg.mxu0
        %v3691 = vld [vmem:[%s1486] sm:$0x1]
        %v3692 = vld [vmem:[%s1489] sm:$0x1]
        %v3693 = vadd.f32 %v3686, %v3608
        %v3694 = vadd.f32 %v3689, %v3609
        %v3695 = vsel %vm1518, %v3693, 0.0
        %3696 = vadd.xlane.f32.xlu0 %v3695
        %v3697 = vpop.xlane.xlu0 %3696
        %v3698 = vsel %vm1518, %v3694, 0.0
        %3699 = vadd.xlane.f32.xlu0 %v3698
        %v3700 = vpop.xlane.xlu0 %3699
        %v3701 = vmul.f32 %v3697, %v2506
        %v3702 = vmul.f32 %v3700, %v2506
        %v3703 = vsub.f32 %v3693, %v3701
        %v3704 = vsub.f32 %v3694, %v3702
        %v3705 = vmul.f32 %v3703, %v3703
        %v3706 = vmul.f32 %v3704, %v3704
        %v3707 = vsel %vm1518, %v3705, 0.0
        %3708 = vadd.xlane.f32.xlu0 %v3707
        %v3709 = vpop.xlane.xlu0 %3708
        %v3710 = vsel %vm1518, %v3706, 0.0
        %3711 = vadd.xlane.f32.xlu0 %v3710
        %v3712 = vpop.xlane.xlu0 %3711
        %v3713 = vmul.f32 %v3709, %v2506
        %v3714 = vmul.f32 %v3712, %v2506
        %v3715 = vadd.f32 %v3713, 1e-05
        %v3716 = vadd.f32 %v3714, 1e-05
        %v3717 = vrsqrt.pop %v3715
        %v3718 = vmul.f32 %v3717, %v3715
        %v3719 = vmul.f32 %v3718, %v3717
        %v3720 = vmul.f32 0.5, %v3719
        %v3721 = vsub.f32 1.5, %v3720
        %v3722 = vmul.f32 %v3717, %v3721
        %vm3723 = vweird.f32 %v3715
        %vm3724 = vweird.f32 %v3717
        %vm3725 = vmor %vm3723, %vm3724
        %v3726 = vsel %vm3725, %v3717, %v3722
        %v3727 = vrsqrt.pop %v3716
        %v3728 = vmul.f32 %v3727, %v3716
        %v3729 = vmul.f32 %v3728, %v3727
        %v3730 = vmul.f32 0.5, %v3729
        %v3731 = vsub.f32 1.5, %v3730
        %v3732 = vmul.f32 %v3727, %v3731
        %vm3733 = vweird.f32 %v3716
        %vm3734 = vweird.f32 %v3727
        %vm3735 = vmor %vm3733, %vm3734
        %v3736 = vsel %vm3735, %v3727, %v3732
        %v3737 = vmul.f32 %v3703, %v3726
        %v3738 = vmul.f32 %v3704, %v3736
        %v3740 = vperm.slane %v3691, 0
        %v3742 = vmul.f32 %v3737, %v3740
        %v3743 = vmul.f32 %v3738, %v3740
        %v3745 = vperm.slane %v3692, 0
        %v3747 = vadd.f32 %v3742, %v3745
        %v3748 = vadd.f32 %v3743, %v3745
        %v3749 = vmul.f32 %v3747, %v2558
        %v3750 = vmul.f32 %v3748, %v2563
        %3751 = vst.msk [vmem:[#allocation2] sm:$0xff] %vm1518, %v3749
        %3752 = vst.msk [vmem:[#allocation2 + $0x8] sm:$0xff] %vm1518, %v3750
        %p3753 = scmp.eq.s32.totalorder %s80, 1
        // Predicated region
        $region149: #{tpu_custom_call.1} parent=143 // pred_check
          %p3754 = pneg %p3753
        $region150: #{tpu_custom_call.1} parent=143 // pred_check_branch
          %3756 = sbr.rel (%p3754) target = $region152
        $region151: #{tpu_custom_call.1} parent=143 // pred_region
          %3757 = vst.msk [vmem:[#allocation3] sm:$0xff] %vm1518, %v3749
          %3758 = vst.msk [vmem:[#allocation3 + $0x8] sm:$0xff] %vm1518, %v3750
        $region152: #{tpu_custom_call.1} parent=143 // pred_fallthru
          _
        // Predicated region
        $region153: #{tpu_custom_call.1} parent=143 // pred_check
          %p3759 = pneg %p911
        $region154: #{tpu_custom_call.1} parent=143 // pred_check_branch
          %3761 = sbr.rel (%p3759) target = $region156
        $region155: #{tpu_custom_call.1} parent=143 // pred_region
          %s3762 = smul.u32 2, %s79
          %3764 = vsyncadd [#allocation4], 0
          %s3765 = smul.addr %s3762, 8
          %s3766 = scalar_lea.hbm %s63, %s3765
          %s3767 = sshll.u32 [#allocation3], 4
          %s3768 = int_to_ptr.vmem [resolvable:$true] %s3767
          %s3769 = sshll.u32 %s3766, 4
          %s3770 = int_to_ptr.hbm [resolvable:$true] %s3769
          %3775 = dma.vmem_to_hbm [thread:$0]  %s3768, 256, %s3770, [#allocation4], 128, 128, 8
        $region156: #{tpu_custom_call.1} parent=143 // pred_fallthru
          _
        // Predicated region
        $region157: #{tpu_custom_call.1} parent=143 // pred_check
          %p3776 = pneg %p911
        $region158: #{tpu_custom_call.1} parent=143 // pred_check_branch
          %3778 = sbr.rel (%p3776) target = $region160
        $region159: #{tpu_custom_call.1} parent=143 // pred_region
          %3780 = dma.done [#allocation4], 256
        $region160: #{tpu_custom_call.1} parent=143 // pred_fallthru
          _
      $region144: #{tpu_custom_call.1} parent=5 // pred_fallthru
        _
      %p3781 = scmp.le.s32.totalorder 2, %s70
      // Predicated region
      $region161: #{tpu_custom_call.1} parent=5 // pred_check
        %p3782 = pneg %p3781
      $region162: #{tpu_custom_call.1} parent=5 // pred_check_branch
        %3784 = sbr.rel (%p3782) target = $region164
      $region163: #{tpu_custom_call.1} parent=5 // pred_region
        %s3785 = ssub.s32 %s70, 2
      $region164: #{tpu_custom_call.1} parent=5 // pred_fallthru
        _
    $region6: #{tpu_custom_call.1} parent=1 // loop_footer
      %s74 = sadd.s32 1, %s70
    $region7: #{tpu_custom_call.1} parent=1 // loop_footer_branch
      %69 = sbr.rel target = $region3
    $region8: #{tpu_custom_call.1} parent=1 // loop_exit
      _
    %3786 = vsyncpa [#allocation4], 1
    %s3787 = scalar_lea.sflag [#allocation4], 1
    %3788 = vsyncpa %s3787, 1

</llo_original>
